<compile_context>
chip_gen: v7x
topology: tpu7x:2x2x1
jax: 0.10.0
libtpu: 0.0.40
codegen_flags: <defaults>
</compile_context>

<pallas_src>
import functools

import jax
import jax.numpy as jnp
from jax import lax
from jax.experimental import pallas as pl
from jax.experimental.pallas import tpu as pltpu


def attention_kernel(x_ref, wqkv_ref, mk_ref, mv_ref, mbias_ref, wout_ref,
                     bout_ref, o_ref, qkv_scratch, out_scratch, *,
                     heads, dim_head, q_tile, compute_dtype):
    # x_ref:       (1, C, N)          image, channels-major (NCHW flattened)
    # wqkv_ref:    (3H, C)  compute   qkv weight; gain*sqrt(C) folded into the
    #                                 columns, attn scale folded into q rows
    # mk_ref:      (heads, d, Mp)     memory keys   (transposed, padded)
    # mv_ref:      (heads, d, Mp)     memory values (transposed, zero padded)
    # mbias_ref:   (Mp, 1)  f32       additive bias (0 real key / -1e30 pad)
    # wout_ref:    (C, H)   compute   output projection weight
    # bout_ref:    (C, 1)   f32       output projection bias
    # o_ref:       (1, C, Tq)         output tile (lane-dense, tokens on lanes)
    # qkv_scratch: (3H, N)  compute   per-batch qkv projection (persists)
    # out_scratch: (H, Tq)  compute   per-head attention outputs, head-major
    H = heads * dim_head
    qi = pl.program_id(1)

    # --- once per batch (first q-tile): RMSNorm + full qkv projection ---
    @pl.when(qi == 0)
    def _():
        x = x_ref[0]                                          # (C, N) f32
        # F.normalize(x, dim=1): x / max(||x||, 1e-12) == x * rsqrt(max(ss,1e-24))
        ss = jnp.sum(x * x, axis=0, keepdims=True)            # (1, N)
        x_n = (x * lax.rsqrt(jnp.maximum(ss, 1e-24))).astype(compute_dtype)
        qkv_scratch[...] = jnp.dot(
            wqkv_ref[...], x_n,
            preferred_element_type=jnp.float32).astype(compute_dtype)  # (3H, N)

    col0 = qi * q_tile
    if q_tile % 128 == 0:
        col0 = pl.multiple_of(col0, 128)
    mbias = mbias_ref[...]                                    # (Mp, 1) f32

    # --- per-head attention over this q-tile; no transposes, no kv concat ---
    # TODO(synk): for very large N also tile the key axis (online softmax) and
    # batch the tiny memory-key dots across heads; not needed at these sizes.
    for h in range(heads):
        q_t = qkv_scratch[h * dim_head:(h + 1) * dim_head,
                          pl.ds(col0, q_tile)]                          # (d, Tq)
        k_t = qkv_scratch[H + h * dim_head:H + (h + 1) * dim_head, :]   # (d, N)
        v_t = qkv_scratch[2 * H + h * dim_head:2 * H + (h + 1) * dim_head, :]

        # scores transposed: rows = keys, cols = queries (scale already in q)
        s_img = lax.dot_general(k_t, q_t, (((0,), (0,)), ((), ())),
                                preferred_element_type=jnp.float32)     # (N, Tq)
        s_mem = lax.dot_general(mk_ref[h], q_t, (((0,), (0,)), ((), ())),
                                preferred_element_type=jnp.float32) + mbias  # (Mp, Tq)

        # softmax over the (memory + image) key axis, all in f32
        m = jnp.maximum(jnp.max(s_img, axis=0, keepdims=True),
                        jnp.max(s_mem, axis=0, keepdims=True))          # (1, Tq)
        p_img = jnp.exp(s_img - m)                                      # (N, Tq)
        p_mem = jnp.exp(s_mem - m)                                      # (Mp, Tq)
        l = (jnp.sum(p_img, axis=0, keepdims=True) +
             jnp.sum(p_mem, axis=0, keepdims=True))                     # (1, Tq)

        o_t = (jnp.dot(v_t, p_img.astype(compute_dtype),
                       preferred_element_type=jnp.float32) +
               jnp.dot(mv_ref[h], p_mem.astype(compute_dtype),
                       preferred_element_type=jnp.float32))             # (d, Tq)
        o_t = o_t * pl.reciprocal(l, approx=True)
        out_scratch[h * dim_head:(h + 1) * dim_head, :] = o_t.astype(compute_dtype)

    # --- 1x1-conv output projection: single matmul, lane-dense store ---
    y_t = jnp.dot(wout_ref[...], out_scratch[...],
                  preferred_element_type=jnp.float32) + bout_ref[...]   # (C, Tq)
    o_ref[0] = y_t.astype(o_ref.dtype)


def _pick_q_tile(n):
    for t in (512, 256, 128):
        if n % t == 0:
            return t
    return n  # small / odd token counts: single full-width tile


def attention_forward(x_nchw, params, *, heads, dim_head, q_tile=None,
                      compute_dtype=jnp.bfloat16):
    # compute_dtype is used only for MXU operands (weights, qkv, probs); all
    # softmax / normalization math stays f32, so bf16 is safe on v5e too.
    b, c, hh, ww = x_nchw.shape
    n = hh * ww
    hidden = heads * dim_head

    if q_tile is None:
        q_tile = _pick_q_tile(n)
    assert n % q_tile == 0, "q_tile must divide the token count"
    nq = n // q_tile

    # NCHW -> (b, C, N): pure reshape, no transpose (kernel is channels-major).
    x_tok = x_nchw.reshape(b, c, n)

    # Fold RMSNorm gain * sqrt(C) into the qkv weight columns and the attention
    # scale into its q rows; pre-cast all weights / memory kv to compute dtype.
    g_scale = params['g'].reshape(c) * (c ** 0.5)                        # (C,)
    wqkv = params['w_qkv'].reshape(3 * hidden, c)                        # (3H, C)
    row_scale = jnp.where(jnp.arange(3 * hidden) < hidden,
                          dim_head ** -0.5, 1.0).astype(jnp.float32)
    wqkv_eff = (wqkv * g_scale[None, :] * row_scale[:, None]).astype(compute_dtype)

    # Memory kv: pad the memory axis to a multiple of 8 (sublane alignment),
    # transpose to (heads, d, Mp); padded keys are disabled via additive bias.
    mem = params['mem_kv']                                               # (2,h,M,d)
    m_real = mem.shape[2]
    m_pad = max(8, ((m_real + 7) // 8) * 8)
    mem_p = jnp.pad(mem, ((0, 0), (0, 0), (0, m_pad - m_real), (0, 0)))
    mk_t = mem_p[0].transpose(0, 2, 1).astype(compute_dtype)             # (h,d,Mp)
    mv_t = mem_p[1].transpose(0, 2, 1).astype(compute_dtype)             # (h,d,Mp)
    mem_bias = jnp.where(jnp.arange(m_pad) < m_real, 0.0,
                         -1e30).astype(jnp.float32).reshape(m_pad, 1)

    wout = params['w_out'].reshape(c, hidden).astype(compute_dtype)      # (C, H)
    bout = params['b_out'].reshape(c, 1).astype(jnp.float32)             # (C, 1)

    kernel = functools.partial(attention_kernel, heads=heads,
                               dim_head=dim_head, q_tile=q_tile,
                               compute_dtype=compute_dtype)

    out_tok = pl.pallas_call(
        kernel,
        out_shape=jax.ShapeDtypeStruct((b, c, n), x_tok.dtype),
        grid_spec=pltpu.PrefetchScalarGridSpec(
            num_scalar_prefetch=0,
            grid=(b, nq),
            in_specs=[
                pl.BlockSpec((1, c, n), lambda i, j: (i, 0, 0)),             # x (constant across q-tiles)
                pl.BlockSpec((3 * hidden, c), lambda i, j: (0, 0)),          # Wqkv
                pl.BlockSpec((heads, dim_head, m_pad), lambda i, j: (0, 0, 0)),  # mem k
                pl.BlockSpec((heads, dim_head, m_pad), lambda i, j: (0, 0, 0)),  # mem v
                pl.BlockSpec((m_pad, 1), lambda i, j: (0, 0)),               # mem bias
                pl.BlockSpec((c, hidden), lambda i, j: (0, 0)),              # Wout
                pl.BlockSpec((c, 1), lambda i, j: (0, 0)),                   # bout
            ],
            out_specs=pl.BlockSpec((1, c, q_tile), lambda i, j: (i, 0, j)),
            scratch_shapes=[
                pltpu.VMEM((3 * hidden, n), compute_dtype),   # per-batch qkv
                pltpu.VMEM((hidden, q_tile), compute_dtype),  # per-tile head outs
            ],
        ),
        compiler_params=pltpu.CompilerParams(
            # batch axis parallel (megacore); q-tile axis carries the qkv
            # scratch so it must stay "arbitrary".
            dimension_semantics=("parallel", "arbitrary"),
            # <= 48 MiB keeps double-buffering headroom on v7x (64 MiB VMEM);
            # raise on v5e/v6e (128 MiB) together with q_tile for large N.
            vmem_limit_bytes=48 * 1024 * 1024,
        ),
    )(x_tok, wqkv_eff, mk_t, mv_t, mem_bias, wout, bout)

    # (b, C, N) -> NCHW is a pure reshape (output already channels-major).
    return out_tok.reshape(b, c, hh, ww)


def reference_forward(x_nchw, params, *, heads, dim_head):
    """Pure-JAX reference mirroring the PyTorch forward, for sanity checking."""
    b, c, h, w = x_nchw.shape
    n = h * w
    hidden = heads * dim_head
    x = x_nchw.reshape(b, c, n).transpose(0, 2, 1)                      # (b, N, C)
    l2 = jnp.sqrt(jnp.sum(x * x, axis=-1, keepdims=True))
    x = x / jnp.maximum(l2, 1e-12) * params['g'].reshape(1, 1, c) * (c ** 0.5)
    qkv = x @ params['w_qkv'].reshape(3 * hidden, c).T                  # (b, N, 3H)
    q, k, v = jnp.split(qkv, 3, axis=-1)

    def to_heads(t):
        return t.reshape(b, n, heads, dim_head).transpose(0, 2, 1, 3)

    q, k, v = map(to_heads, (q, k, v))
    mk = jnp.broadcast_to(params['mem_kv'][0], (b,) + params['mem_kv'][0].shape)
    mv = jnp.broadcast_to(params['mem_kv'][1], (b,) + params['mem_kv'][1].shape)
    k = jnp.concatenate([mk, k], axis=2)
    v = jnp.concatenate([mv, v], axis=2)
    sim = jnp.einsum('bhid,bhjd->bhij', q, k) * (dim_head ** -0.5)
    attn = jax.nn.softmax(sim, axis=-1)
    out = jnp.einsum('bhij,bhjd->bhid', attn, v)
    out = out.transpose(0, 2, 1, 3).reshape(b, n, hidden)
    y = out @ params['w_out'].reshape(c, hidden).T + params['b_out'].reshape(1, 1, c)
    return y.transpose(0, 2, 1).reshape(b, c, h, w)


if __name__ == "__main__":
    # Small shapes consistent with the module (heads/dim_head/num_mem_kv = defaults)
    B, DIM, HW = 2, 16, 16                       # N = 256 tokens per image
    HEADS, DIM_HEAD, NUM_MEM_KV = 4, 32, 4
    HIDDEN = HEADS * DIM_HEAD

    key = jax.random.PRNGKey(0)
    kx, kg, kq, ko, kb, km = jax.random.split(key, 6)

    x = jax.random.normal(kx, (B, DIM, HW, HW), dtype=jnp.float32)
    params = {
        'g': 1.0 + 0.1 * jax.random.normal(kg, (DIM,), jnp.float32),    # RMSNorm gain
        'w_qkv': jax.random.normal(kq, (3 * HIDDEN, DIM), jnp.float32) * 0.1,
        'w_out': jax.random.normal(ko, (DIM, HIDDEN), jnp.float32) * 0.1,
        'b_out': jax.random.normal(kb, (DIM,), jnp.float32) * 0.1,
        'mem_kv': jax.random.normal(km, (2, HEADS, NUM_MEM_KV, DIM_HEAD),
                                    jnp.float32),
    }

    # q_tile=128 exercises the multi-q-tile path (2 tiles at N=256); default
    # compute dtype is bf16 (MXU operands only; softmax math stays f32).
    out = attention_forward(x, params, heads=HEADS, dim_head=DIM_HEAD,
                            q_tile=128, compute_dtype=jnp.bfloat16)
    out = jax.block_until_ready(out)

    ref = reference_forward(x, params, heads=HEADS, dim_head=DIM_HEAD)
    assert out.shape == (B, DIM, HW, HW)
    # Tolerance covers the bf16 MXU operands and the approximate EUP reciprocal
    # in the softmax normalization (accumulation / softmax math is f32).
    max_err = float(jnp.max(jnp.abs(out - ref)))
    assert jnp.allclose(out, ref, atol=5e-2, rtol=5e-2), f"mismatch: {max_err}"

    print("KERNEL_OK")
</pallas_src>

<mosaic_0001>
module attributes {stable_mosaic.version = 11 : i64} {
  func.func @attention_kernel(%arg0: i32, %arg1: i32, %arg2: memref<1x16x256xf32, #tpu.memory_space<vmem>>, %arg3: memref<384x16xbf16, #tpu.memory_space<vmem>>, %arg4: memref<4x32x8xbf16, #tpu.memory_space<vmem>>, %arg5: memref<4x32x8xbf16, #tpu.memory_space<vmem>>, %arg6: memref<8x1xf32, #tpu.memory_space<vmem>>, %arg7: memref<16x128xbf16, #tpu.memory_space<vmem>>, %arg8: memref<16x1xf32, #tpu.memory_space<vmem>>, %arg9: memref<1x16x128xf32, #tpu.memory_space<vmem>>, %arg10: memref<384x256xbf16, #tpu.memory_space<vmem>>, %arg11: memref<128x128xbf16, #tpu.memory_space<vmem>>) attributes {dimension_semantics = [#tpu.dimension_semantics<parallel>, #tpu.dimension_semantics<arbitrary>], iteration_bounds = array<i64: 2, 2>, scalar_prefetch = 0 : i64, scratch_operands = 2 : i64, tpu.core_type = #tpu.core_type<tc>, window_params = [{transform_indices = @transform_0, window_bounds = array<i64: 1, 16, 256>}, {pipeline_mode = #tpu.pipeline_mode<synchronous>, transform_indices = @transform_1, window_bounds = array<i64: 384, 16>}, {pipeline_mode = #tpu.pipeline_mode<synchronous>, transform_indices = @transform_2, window_bounds = array<i64: 4, 32, 8>}, {pipeline_mode = #tpu.pipeline_mode<synchronous>, transform_indices = @transform_3, window_bounds = array<i64: 4, 32, 8>}, {pipeline_mode = #tpu.pipeline_mode<synchronous>, transform_indices = @transform_4, window_bounds = array<i64: 8, 1>}, {pipeline_mode = #tpu.pipeline_mode<synchronous>, transform_indices = @transform_5, window_bounds = array<i64: 16, 128>}, {pipeline_mode = #tpu.pipeline_mode<synchronous>, transform_indices = @transform_6, window_bounds = array<i64: 16, 1>}, {transform_indices = @transform_7, window_bounds = array<i64: 1, 16, 128>}]} {
    %c0_i32 = arith.constant 0 : i32
    %0 = arith.cmpi eq, %arg1, %c0_i32 : i32
    %1 = arith.extui %0 : i1 to i32
    %c0_i32_0 = arith.constant 0 : i32
    %2 = arith.cmpi ne, %1, %c0_i32_0 : i32
    scf.if %2 {
      %c0_81 = arith.constant 0 : index
      %c0_82 = arith.constant 0 : index
      %c0_83 = arith.constant 0 : index
      %167 = vector.load %arg2[%c0_81, %c0_82, %c0_83] : memref<1x16x256xf32, #tpu.memory_space<vmem>>, vector<1x16x256xf32>
      %168 = vector.shape_cast %167 : vector<1x16x256xf32> to vector<16x256xf32>
      %169 = arith.mulf %168, %168 : vector<16x256xf32>
      %cst_84 = arith.constant dense<0.000000e+00> : vector<256xf32>
      %170 = vector.multi_reduction <add>, %169, %cst_84 [0] : vector<16x256xf32> to vector<256xf32>
      %171 = vector.shape_cast %170 : vector<256xf32> to vector<1x256xf32>
      %cst_85 = arith.constant 1.000000e-24 : f32
      %172 = vector.broadcast %cst_85 : f32 to vector<1x256xf32>
      %173 = arith.maximumf %171, %172 : vector<1x256xf32>
      %174 = math.rsqrt %173 : vector<1x256xf32>
      %175 = vector.broadcast %174 : vector<1x256xf32> to vector<16x256xf32>
      %176 = arith.mulf %168, %175 : vector<16x256xf32>
      %177 = arith.truncf %176 : vector<16x256xf32> to vector<16x256xbf16>
      %c0_86 = arith.constant 0 : index
      %c0_87 = arith.constant 0 : index
      %178 = vector.load %arg3[%c0_86, %c0_87] : memref<384x16xbf16, #tpu.memory_space<vmem>>, vector<384x16xbf16>
      %cst_88 = arith.constant dense<0.000000e+00> : vector<384x256xf32>
      %179 = tpu.matmul %178, %177, %cst_88 {dimension_numbers = #tpu.dot_dimension_numbers<[1], [0], [0], [1], [0, 0, 1, 1], [], []>} : vector<384x16xbf16>, vector<16x256xbf16>, vector<384x256xf32> -> vector<384x256xf32>
      %180 = arith.truncf %179 : vector<384x256xf32> to vector<384x256xbf16>
      %c0_89 = arith.constant 0 : index
      %c0_90 = arith.constant 0 : index
      %181 = vector.load %arg10[%c0_89, %c0_90] : memref<384x256xbf16, #tpu.memory_space<vmem>>, vector<384x256xbf16>
      tpu.vector_store %arg10[%c0_89, %c0_90], %180 {strides = array<i32>} : memref<384x256xbf16, #tpu.memory_space<vmem>>, vector<384x256xbf16>,
    } else {
    }
    %c128_i32 = arith.constant 128 : i32
    %3 = arith.muli %arg1, %c128_i32 : i32
    %4 = tpu.assume_multiple %3, 128 : i32
    %c0 = arith.constant 0 : index
    %c0_1 = arith.constant 0 : index
    %5 = vector.load %arg6[%c0, %c0_1] : memref<8x1xf32, #tpu.memory_space<vmem>>, vector<8x1xf32>
    %c0_2 = arith.constant 0 : index
    %6 = arith.index_cast %4 : i32 to index
    %7 = vector.load %arg10[%c0_2, %6] : memref<384x256xbf16, #tpu.memory_space<vmem>>, vector<32x128xbf16>
    %c128 = arith.constant 128 : index
    %c0_3 = arith.constant 0 : index
    %8 = vector.load %arg10[%c128, %c0_3] : memref<384x256xbf16, #tpu.memory_space<vmem>>, vector<32x256xbf16>
    %c256 = arith.constant 256 : index
    %c0_4 = arith.constant 0 : index
    %9 = vector.load %arg10[%c256, %c0_4] : memref<384x256xbf16, #tpu.memory_space<vmem>>, vector<32x256xbf16>
    %cst = arith.constant dense<0.000000e+00> : vector<256x128xf32>
    %10 = tpu.matmul %8, %7, %cst {dimension_numbers = #tpu.dot_dimension_numbers<[0], [0], [1], [1], [0, 1, 1, 1], [], []>} : vector<32x256xbf16>, vector<32x128xbf16>, vector<256x128xf32> -> vector<256x128xf32>
    %c0_5 = arith.constant 0 : index
    %c0_6 = arith.constant 0 : index
    %c0_7 = arith.constant 0 : index
    %11 = vector.load %arg4[%c0_5, %c0_6, %c0_7] : memref<4x32x8xbf16, #tpu.memory_space<vmem>>, vector<1x32x8xbf16>
    %12 = vector.shape_cast %11 : vector<1x32x8xbf16> to vector<32x8xbf16>
    %cst_8 = arith.constant dense<0.000000e+00> : vector<8x128xf32>
    %13 = tpu.matmul %12, %7, %cst_8 {dimension_numbers = #tpu.dot_dimension_numbers<[0], [0], [1], [1], [0, 1, 1, 1], [], []>} : vector<32x8xbf16>, vector<32x128xbf16>, vector<8x128xf32> -> vector<8x128xf32>
    %14 = vector.broadcast %5 : vector<8x1xf32> to vector<8x128xf32>
    %15 = arith.addf %13, %14 : vector<8x128xf32>
    %cst_9 = arith.constant dense<0xFF800000> : vector<128xf32>
    %16 = vector.multi_reduction <maximumf>, %10, %cst_9 [0] : vector<256x128xf32> to vector<128xf32>
    %17 = vector.shape_cast %16 : vector<128xf32> to vector<1x128xf32>
    %cst_10 = arith.constant dense<0xFF800000> : vector<128xf32>
    %18 = vector.multi_reduction <maximumf>, %15, %cst_10 [0] : vector<8x128xf32> to vector<128xf32>
    %19 = vector.shape_cast %18 : vector<128xf32> to vector<1x128xf32>
    %20 = arith.maximumf %17, %19 : vector<1x128xf32>
    %21 = vector.broadcast %20 : vector<1x128xf32> to vector<256x128xf32>
    %22 = arith.subf %10, %21 : vector<256x128xf32>
    %23 = math.exp %22 : vector<256x128xf32>
    %24 = vector.broadcast %20 : vector<1x128xf32> to vector<8x128xf32>
    %25 = arith.subf %15, %24 : vector<8x128xf32>
    %26 = math.exp %25 : vector<8x128xf32>
    %cst_11 = arith.constant dense<0.000000e+00> : vector<128xf32>
    %27 = vector.multi_reduction <add>, %23, %cst_11 [0] : vector<256x128xf32> to vector<128xf32>
    %28 = vector.shape_cast %27 : vector<128xf32> to vector<1x128xf32>
    %cst_12 = arith.constant dense<0.000000e+00> : vector<128xf32>
    %29 = vector.multi_reduction <add>, %26, %cst_12 [0] : vector<8x128xf32> to vector<128xf32>
    %30 = vector.shape_cast %29 : vector<128xf32> to vector<1x128xf32>
    %31 = arith.addf %28, %30 : vector<1x128xf32>
    %32 = arith.truncf %23 : vector<256x128xf32> to vector<256x128xbf16>
    %cst_13 = arith.constant dense<0.000000e+00> : vector<32x128xf32>
    %33 = tpu.matmul %9, %32, %cst_13 {dimension_numbers = #tpu.dot_dimension_numbers<[1], [0], [0], [1], [0, 0, 1, 1], [], []>} : vector<32x256xbf16>, vector<256x128xbf16>, vector<32x128xf32> -> vector<32x128xf32>
    %c0_14 = arith.constant 0 : index
    %c0_15 = arith.constant 0 : index
    %c0_16 = arith.constant 0 : index
    %34 = vector.load %arg5[%c0_14, %c0_15, %c0_16] : memref<4x32x8xbf16, #tpu.memory_space<vmem>>, vector<1x32x8xbf16>
    %35 = vector.shape_cast %34 : vector<1x32x8xbf16> to vector<32x8xbf16>
    %36 = arith.truncf %26 : vector<8x128xf32> to vector<8x128xbf16>
    %cst_17 = arith.constant dense<0.000000e+00> : vector<32x128xf32>
    %37 = tpu.matmul %35, %36, %cst_17 {dimension_numbers = #tpu.dot_dimension_numbers<[1], [0], [0], [1], [0, 0, 1, 1], [], []>} : vector<32x8xbf16>, vector<8x128xbf16>, vector<32x128xf32> -> vector<32x128xf32>
    %38 = arith.addf %33, %37 : vector<32x128xf32>
    %39 = tpu.reciprocal %31 {approx = true} : vector<1x128xf32> -> vector<1x128xf32>
    %40 = vector.broadcast %39 : vector<1x128xf32> to vector<32x128xf32>
    %41 = arith.mulf %38, %40 : vector<32x128xf32>
    %42 = arith.truncf %41 : vector<32x128xf32> to vector<32x128xbf16>
    %c0_18 = arith.constant 0 : index
    %c0_19 = arith.constant 0 : index
    %43 = vector.load %arg11[%c0_18, %c0_19] : memref<128x128xbf16, #tpu.memory_space<vmem>>, vector<32x128xbf16>
    tpu.vector_store %arg11[%c0_18, %c0_19], %42 {strides = array<i32>} : memref<128x128xbf16, #tpu.memory_space<vmem>>, vector<32x128xbf16>,
    %c32 = arith.constant 32 : index
    %44 = arith.index_cast %4 : i32 to index
    %45 = vector.load %arg10[%c32, %44] : memref<384x256xbf16, #tpu.memory_space<vmem>>, vector<32x128xbf16>
    %c160 = arith.constant 160 : index
    %c0_20 = arith.constant 0 : index
    %46 = vector.load %arg10[%c160, %c0_20] : memref<384x256xbf16, #tpu.memory_space<vmem>>, vector<32x256xbf16>
    %c288 = arith.constant 288 : index
    %c0_21 = arith.constant 0 : index
    %47 = vector.load %arg10[%c288, %c0_21] : memref<384x256xbf16, #tpu.memory_space<vmem>>, vector<32x256xbf16>
    %cst_22 = arith.constant dense<0.000000e+00> : vector<256x128xf32>
    %48 = tpu.matmul %46, %45, %cst_22 {dimension_numbers = #tpu.dot_dimension_numbers<[0], [0], [1], [1], [0, 1, 1, 1], [], []>} : vector<32x256xbf16>, vector<32x128xbf16>, vector<256x128xf32> -> vector<256x128xf32>
    %c1 = arith.constant 1 : index
    %c0_23 = arith.constant 0 : index
    %c0_24 = arith.constant 0 : index
    %49 = vector.load %arg4[%c1, %c0_23, %c0_24] : memref<4x32x8xbf16, #tpu.memory_space<vmem>>, vector<1x32x8xbf16>
    %50 = vector.shape_cast %49 : vector<1x32x8xbf16> to vector<32x8xbf16>
    %cst_25 = arith.constant dense<0.000000e+00> : vector<8x128xf32>
    %51 = tpu.matmul %50, %45, %cst_25 {dimension_numbers = #tpu.dot_dimension_numbers<[0], [0], [1], [1], [0, 1, 1, 1], [], []>} : vector<32x8xbf16>, vector<32x128xbf16>, vector<8x128xf32> -> vector<8x128xf32>
    %52 = vector.broadcast %5 : vector<8x1xf32> to vector<8x128xf32>
    %53 = arith.addf %51, %52 : vector<8x128xf32>
    %cst_26 = arith.constant dense<0xFF800000> : vector<128xf32>
    %54 = vector.multi_reduction <maximumf>, %48, %cst_26 [0] : vector<256x128xf32> to vector<128xf32>
    %55 = vector.shape_cast %54 : vector<128xf32> to vector<1x128xf32>
    %cst_27 = arith.constant dense<0xFF800000> : vector<128xf32>
    %56 = vector.multi_reduction <maximumf>, %53, %cst_27 [0] : vector<8x128xf32> to vector<128xf32>
    %57 = vector.shape_cast %56 : vector<128xf32> to vector<1x128xf32>
    %58 = arith.maximumf %55, %57 : vector<1x128xf32>
    %59 = vector.broadcast %58 : vector<1x128xf32> to vector<256x128xf32>
    %60 = arith.subf %48, %59 : vector<256x128xf32>
    %61 = math.exp %60 : vector<256x128xf32>
    %62 = vector.broadcast %58 : vector<1x128xf32> to vector<8x128xf32>
    %63 = arith.subf %53, %62 : vector<8x128xf32>
    %64 = math.exp %63 : vector<8x128xf32>
    %cst_28 = arith.constant dense<0.000000e+00> : vector<128xf32>
    %65 = vector.multi_reduction <add>, %61, %cst_28 [0] : vector<256x128xf32> to vector<128xf32>
    %66 = vector.shape_cast %65 : vector<128xf32> to vector<1x128xf32>
    %cst_29 = arith.constant dense<0.000000e+00> : vector<128xf32>
    %67 = vector.multi_reduction <add>, %64, %cst_29 [0] : vector<8x128xf32> to vector<128xf32>
    %68 = vector.shape_cast %67 : vector<128xf32> to vector<1x128xf32>
    %69 = arith.addf %66, %68 : vector<1x128xf32>
    %70 = arith.truncf %61 : vector<256x128xf32> to vector<256x128xbf16>
    %cst_30 = arith.constant dense<0.000000e+00> : vector<32x128xf32>
    %71 = tpu.matmul %47, %70, %cst_30 {dimension_numbers = #tpu.dot_dimension_numbers<[1], [0], [0], [1], [0, 0, 1, 1], [], []>} : vector<32x256xbf16>, vector<256x128xbf16>, vector<32x128xf32> -> vector<32x128xf32>
    %c1_31 = arith.constant 1 : index
    %c0_32 = arith.constant 0 : index
    %c0_33 = arith.constant 0 : index
    %72 = vector.load %arg5[%c1_31, %c0_32, %c0_33] : memref<4x32x8xbf16, #tpu.memory_space<vmem>>, vector<1x32x8xbf16>
    %73 = vector.shape_cast %72 : vector<1x32x8xbf16> to vector<32x8xbf16>
    %74 = arith.truncf %64 : vector<8x128xf32> to vector<8x128xbf16>
    %cst_34 = arith.constant dense<0.000000e+00> : vector<32x128xf32>
    %75 = tpu.matmul %73, %74, %cst_34 {dimension_numbers = #tpu.dot_dimension_numbers<[1], [0], [0], [1], [0, 0, 1, 1], [], []>} : vector<32x8xbf16>, vector<8x128xbf16>, vector<32x128xf32> -> vector<32x128xf32>
    %76 = arith.addf %71, %75 : vector<32x128xf32>
    %77 = tpu.reciprocal %69 {approx = true} : vector<1x128xf32> -> vector<1x128xf32>
    %78 = vector.broadcast %77 : vector<1x128xf32> to vector<32x128xf32>
    %79 = arith.mulf %76, %78 : vector<32x128xf32>
    %80 = arith.truncf %79 : vector<32x128xf32> to vector<32x128xbf16>
    %c32_35 = arith.constant 32 : index
    %c0_36 = arith.constant 0 : index
    %81 = vector.load %arg11[%c32_35, %c0_36] : memref<128x128xbf16, #tpu.memory_space<vmem>>, vector<32x128xbf16>
    tpu.vector_store %arg11[%c32_35, %c0_36], %80 {strides = array<i32>} : memref<128x128xbf16, #tpu.memory_space<vmem>>, vector<32x128xbf16>,
    %c64 = arith.constant 64 : index
    %82 = arith.index_cast %4 : i32 to index
    %83 = vector.load %arg10[%c64, %82] : memref<384x256xbf16, #tpu.memory_space<vmem>>, vector<32x128xbf16>
    %c192 = arith.constant 192 : index
    %c0_37 = arith.constant 0 : index
    %84 = vector.load %arg10[%c192, %c0_37] : memref<384x256xbf16, #tpu.memory_space<vmem>>, vector<32x256xbf16>
    %c320 = arith.constant 320 : index
    %c0_38 = arith.constant 0 : index
    %85 = vector.load %arg10[%c320, %c0_38] : memref<384x256xbf16, #tpu.memory_space<vmem>>, vector<32x256xbf16>
    %cst_39 = arith.constant dense<0.000000e+00> : vector<256x128xf32>
    %86 = tpu.matmul %84, %83, %cst_39 {dimension_numbers = #tpu.dot_dimension_numbers<[0], [0], [1], [1], [0, 1, 1, 1], [], []>} : vector<32x256xbf16>, vector<32x128xbf16>, vector<256x128xf32> -> vector<256x128xf32>
    %c2 = arith.constant 2 : index
    %c0_40 = arith.constant 0 : index
    %c0_41 = arith.constant 0 : index
    %87 = vector.load %arg4[%c2, %c0_40, %c0_41] : memref<4x32x8xbf16, #tpu.memory_space<vmem>>, vector<1x32x8xbf16>
    %88 = vector.shape_cast %87 : vector<1x32x8xbf16> to vector<32x8xbf16>
    %cst_42 = arith.constant dense<0.000000e+00> : vector<8x128xf32>
    %89 = tpu.matmul %88, %83, %cst_42 {dimension_numbers = #tpu.dot_dimension_numbers<[0], [0], [1], [1], [0, 1, 1, 1], [], []>} : vector<32x8xbf16>, vector<32x128xbf16>, vector<8x128xf32> -> vector<8x128xf32>
    %90 = vector.broadcast %5 : vector<8x1xf32> to vector<8x128xf32>
    %91 = arith.addf %89, %90 : vector<8x128xf32>
    %cst_43 = arith.constant dense<0xFF800000> : vector<128xf32>
    %92 = vector.multi_reduction <maximumf>, %86, %cst_43 [0] : vector<256x128xf32> to vector<128xf32>
    %93 = vector.shape_cast %92 : vector<128xf32> to vector<1x128xf32>
    %cst_44 = arith.constant dense<0xFF800000> : vector<128xf32>
    %94 = vector.multi_reduction <maximumf>, %91, %cst_44 [0] : vector<8x128xf32> to vector<128xf32>
    %95 = vector.shape_cast %94 : vector<128xf32> to vector<1x128xf32>
    %96 = arith.maximumf %93, %95 : vector<1x128xf32>
    %97 = vector.broadcast %96 : vector<1x128xf32> to vector<256x128xf32>
    %98 = arith.subf %86, %97 : vector<256x128xf32>
    %99 = math.exp %98 : vector<256x128xf32>
    %100 = vector.broadcast %96 : vector<1x128xf32> to vector<8x128xf32>
    %101 = arith.subf %91, %100 : vector<8x128xf32>
    %102 = math.exp %101 : vector<8x128xf32>
    %cst_45 = arith.constant dense<0.000000e+00> : vector<128xf32>
    %103 = vector.multi_reduction <add>, %99, %cst_45 [0] : vector<256x128xf32> to vector<128xf32>
    %104 = vector.shape_cast %103 : vector<128xf32> to vector<1x128xf32>
    %cst_46 = arith.constant dense<0.000000e+00> : vector<128xf32>
    %105 = vector.multi_reduction <add>, %102, %cst_46 [0] : vector<8x128xf32> to vector<128xf32>
    %106 = vector.shape_cast %105 : vector<128xf32> to vector<1x128xf32>
    %107 = arith.addf %104, %106 : vector<1x128xf32>
    %108 = arith.truncf %99 : vector<256x128xf32> to vector<256x128xbf16>
    %cst_47 = arith.constant dense<0.000000e+00> : vector<32x128xf32>
    %109 = tpu.matmul %85, %108, %cst_47 {dimension_numbers = #tpu.dot_dimension_numbers<[1], [0], [0], [1], [0, 0, 1, 1], [], []>} : vector<32x256xbf16>, vector<256x128xbf16>, vector<32x128xf32> -> vector<32x128xf32>
    %c2_48 = arith.constant 2 : index
    %c0_49 = arith.constant 0 : index
    %c0_50 = arith.constant 0 : index
    %110 = vector.load %arg5[%c2_48, %c0_49, %c0_50] : memref<4x32x8xbf16, #tpu.memory_space<vmem>>, vector<1x32x8xbf16>
    %111 = vector.shape_cast %110 : vector<1x32x8xbf16> to vector<32x8xbf16>
    %112 = arith.truncf %102 : vector<8x128xf32> to vector<8x128xbf16>
    %cst_51 = arith.constant dense<0.000000e+00> : vector<32x128xf32>
    %113 = tpu.matmul %111, %112, %cst_51 {dimension_numbers = #tpu.dot_dimension_numbers<[1], [0], [0], [1], [0, 0, 1, 1], [], []>} : vector<32x8xbf16>, vector<8x128xbf16>, vector<32x128xf32> -> vector<32x128xf32>
    %114 = arith.addf %109, %113 : vector<32x128xf32>
    %115 = tpu.reciprocal %107 {approx = true} : vector<1x128xf32> -> vector<1x128xf32>
    %116 = vector.broadcast %115 : vector<1x128xf32> to vector<32x128xf32>
    %117 = arith.mulf %114, %116 : vector<32x128xf32>
    %118 = arith.truncf %117 : vector<32x128xf32> to vector<32x128xbf16>
    %c64_52 = arith.constant 64 : index
    %c0_53 = arith.constant 0 : index
    %119 = vector.load %arg11[%c64_52, %c0_53] : memref<128x128xbf16, #tpu.memory_space<vmem>>, vector<32x128xbf16>
    tpu.vector_store %arg11[%c64_52, %c0_53], %118 {strides = array<i32>} : memref<128x128xbf16, #tpu.memory_space<vmem>>, vector<32x128xbf16>,
    %c96 = arith.constant 96 : index
    %120 = arith.index_cast %4 : i32 to index
    %121 = vector.load %arg10[%c96, %120] : memref<384x256xbf16, #tpu.memory_space<vmem>>, vector<32x128xbf16>
    %c224 = arith.constant 224 : index
    %c0_54 = arith.constant 0 : index
    %122 = vector.load %arg10[%c224, %c0_54] : memref<384x256xbf16, #tpu.memory_space<vmem>>, vector<32x256xbf16>
    %c352 = arith.constant 352 : index
    %c0_55 = arith.constant 0 : index
    %123 = vector.load %arg10[%c352, %c0_55] : memref<384x256xbf16, #tpu.memory_space<vmem>>, vector<32x256xbf16>
    %cst_56 = arith.constant dense<0.000000e+00> : vector<256x128xf32>
    %124 = tpu.matmul %122, %121, %cst_56 {dimension_numbers = #tpu.dot_dimension_numbers<[0], [0], [1], [1], [0, 1, 1, 1], [], []>} : vector<32x256xbf16>, vector<32x128xbf16>, vector<256x128xf32> -> vector<256x128xf32>
    %c3 = arith.constant 3 : index
    %c0_57 = arith.constant 0 : index
    %c0_58 = arith.constant 0 : index
    %125 = vector.load %arg4[%c3, %c0_57, %c0_58] : memref<4x32x8xbf16, #tpu.memory_space<vmem>>, vector<1x32x8xbf16>
    %126 = vector.shape_cast %125 : vector<1x32x8xbf16> to vector<32x8xbf16>
    %cst_59 = arith.constant dense<0.000000e+00> : vector<8x128xf32>
    %127 = tpu.matmul %126, %121, %cst_59 {dimension_numbers = #tpu.dot_dimension_numbers<[0], [0], [1], [1], [0, 1, 1, 1], [], []>} : vector<32x8xbf16>, vector<32x128xbf16>, vector<8x128xf32> -> vector<8x128xf32>
    %128 = vector.broadcast %5 : vector<8x1xf32> to vector<8x128xf32>
    %129 = arith.addf %127, %128 : vector<8x128xf32>
    %cst_60 = arith.constant dense<0xFF800000> : vector<128xf32>
    %130 = vector.multi_reduction <maximumf>, %124, %cst_60 [0] : vector<256x128xf32> to vector<128xf32>
    %131 = vector.shape_cast %130 : vector<128xf32> to vector<1x128xf32>
    %cst_61 = arith.constant dense<0xFF800000> : vector<128xf32>
    %132 = vector.multi_reduction <maximumf>, %129, %cst_61 [0] : vector<8x128xf32> to vector<128xf32>
    %133 = vector.shape_cast %132 : vector<128xf32> to vector<1x128xf32>
    %134 = arith.maximumf %131, %133 : vector<1x128xf32>
    %135 = vector.broadcast %134 : vector<1x128xf32> to vector<256x128xf32>
    %136 = arith.subf %124, %135 : vector<256x128xf32>
    %137 = math.exp %136 : vector<256x128xf32>
    %138 = vector.broadcast %134 : vector<1x128xf32> to vector<8x128xf32>
    %139 = arith.subf %129, %138 : vector<8x128xf32>
    %140 = math.exp %139 : vector<8x128xf32>
    %cst_62 = arith.constant dense<0.000000e+00> : vector<128xf32>
    %141 = vector.multi_reduction <add>, %137, %cst_62 [0] : vector<256x128xf32> to vector<128xf32>
    %142 = vector.shape_cast %141 : vector<128xf32> to vector<1x128xf32>
    %cst_63 = arith.constant dense<0.000000e+00> : vector<128xf32>
    %143 = vector.multi_reduction <add>, %140, %cst_63 [0] : vector<8x128xf32> to vector<128xf32>
    %144 = vector.shape_cast %143 : vector<128xf32> to vector<1x128xf32>
    %145 = arith.addf %142, %144 : vector<1x128xf32>
    %146 = arith.truncf %137 : vector<256x128xf32> to vector<256x128xbf16>
    %cst_64 = arith.constant dense<0.000000e+00> : vector<32x128xf32>
    %147 = tpu.matmul %123, %146, %cst_64 {dimension_numbers = #tpu.dot_dimension_numbers<[1], [0], [0], [1], [0, 0, 1, 1], [], []>} : vector<32x256xbf16>, vector<256x128xbf16>, vector<32x128xf32> -> vector<32x128xf32>
    %c3_65 = arith.constant 3 : index
    %c0_66 = arith.constant 0 : index
    %c0_67 = arith.constant 0 : index
    %148 = vector.load %arg5[%c3_65, %c0_66, %c0_67] : memref<4x32x8xbf16, #tpu.memory_space<vmem>>, vector<1x32x8xbf16>
    %149 = vector.shape_cast %148 : vector<1x32x8xbf16> to vector<32x8xbf16>
    %150 = arith.truncf %140 : vector<8x128xf32> to vector<8x128xbf16>
    %cst_68 = arith.constant dense<0.000000e+00> : vector<32x128xf32>
    %151 = tpu.matmul %149, %150, %cst_68 {dimension_numbers = #tpu.dot_dimension_numbers<[1], [0], [0], [1], [0, 0, 1, 1], [], []>} : vector<32x8xbf16>, vector<8x128xbf16>, vector<32x128xf32> -> vector<32x128xf32>
    %152 = arith.addf %147, %151 : vector<32x128xf32>
    %153 = tpu.reciprocal %145 {approx = true} : vector<1x128xf32> -> vector<1x128xf32>
    %154 = vector.broadcast %153 : vector<1x128xf32> to vector<32x128xf32>
    %155 = arith.mulf %152, %154 : vector<32x128xf32>
    %156 = arith.truncf %155 : vector<32x128xf32> to vector<32x128xbf16>
    %c96_69 = arith.constant 96 : index
    %c0_70 = arith.constant 0 : index
    %157 = vector.load %arg11[%c96_69, %c0_70] : memref<128x128xbf16, #tpu.memory_space<vmem>>, vector<32x128xbf16>
    tpu.vector_store %arg11[%c96_69, %c0_70], %156 {strides = array<i32>} : memref<128x128xbf16, #tpu.memory_space<vmem>>, vector<32x128xbf16>,
    %c0_71 = arith.constant 0 : index
    %c0_72 = arith.constant 0 : index
    %158 = vector.load %arg7[%c0_71, %c0_72] : memref<16x128xbf16, #tpu.memory_space<vmem>>, vector<16x128xbf16>
    %c0_73 = arith.constant 0 : index
    %c0_74 = arith.constant 0 : index
    %159 = vector.load %arg11[%c0_73, %c0_74] : memref<128x128xbf16, #tpu.memory_space<vmem>>, vector<128x128xbf16>
    %cst_75 = arith.constant dense<0.000000e+00> : vector<16x128xf32>
    %160 = tpu.matmul %158, %159, %cst_75 {dimension_numbers = #tpu.dot_dimension_numbers<[1], [0], [0], [1], [0, 0, 1, 1], [], []>} : vector<16x128xbf16>, vector<128x128xbf16>, vector<16x128xf32> -> vector<16x128xf32>
    %c0_76 = arith.constant 0 : index
    %c0_77 = arith.constant 0 : index
    %161 = vector.load %arg8[%c0_76, %c0_77] : memref<16x1xf32, #tpu.memory_space<vmem>>, vector<16x1xf32>
    %162 = vector.broadcast %161 : vector<16x1xf32> to vector<16x128xf32>
    %163 = arith.addf %160, %162 : vector<16x128xf32>
    %c0_78 = arith.constant 0 : index
    %c0_79 = arith.constant 0 : index
    %c0_80 = arith.constant 0 : index
    %164 = vector.load %arg9[%c0_78, %c0_79, %c0_80] : memref<1x16x128xf32, #tpu.memory_space<vmem>>, vector<1x16x128xf32>
    %165 = vector.shape_cast %164 : vector<1x16x128xf32> to vector<16x128xf32>
    %166 = vector.shape_cast %163 : vector<16x128xf32> to vector<1x16x128xf32>
    tpu.vector_store %arg9[%c0_78, %c0_79, %c0_80], %166 {strides = array<i32>} : memref<1x16x128xf32, #tpu.memory_space<vmem>>, vector<1x16x128xf32>,
    return
  }
  func.func @transform_0(%arg0: i32, %arg1: i32) -> (i32, i32, i32) {
    %c0_i32 = arith.constant 0 : i32
    %c0_i32_0 = arith.constant 0 : i32
    %c0_i32_1 = arith.constant 0 : i32
    return %arg0, %c0_i32, %c0_i32_0 : i32, i32, i32
  }
  func.func @transform_1(%arg0: i32, %arg1: i32) -> (i32, i32) {
    %c0_i32 = arith.constant 0 : i32
    %c0_i32_0 = arith.constant 0 : i32
    %c0_i32_1 = arith.constant 0 : i32
    return %c0_i32, %c0_i32_0 : i32, i32
  }
  func.func @transform_2(%arg0: i32, %arg1: i32) -> (i32, i32, i32) {
    %c0_i32 = arith.constant 0 : i32
    %c0_i32_0 = arith.constant 0 : i32
    %c0_i32_1 = arith.constant 0 : i32
    %c0_i32_2 = arith.constant 0 : i32
    return %c0_i32, %c0_i32_0, %c0_i32_1 : i32, i32, i32
  }
  func.func @transform_3(%arg0: i32, %arg1: i32) -> (i32, i32, i32) {
    %c0_i32 = arith.constant 0 : i32
    %c0_i32_0 = arith.constant 0 : i32
    %c0_i32_1 = arith.constant 0 : i32
    %c0_i32_2 = arith.constant 0 : i32
    return %c0_i32, %c0_i32_0, %c0_i32_1 : i32, i32, i32
  }
  func.func @transform_4(%arg0: i32, %arg1: i32) -> (i32, i32) {
    %c0_i32 = arith.constant 0 : i32
    %c0_i32_0 = arith.constant 0 : i32
    %c0_i32_1 = arith.constant 0 : i32
    return %c0_i32, %c0_i32_0 : i32, i32
  }
  func.func @transform_5(%arg0: i32, %arg1: i32) -> (i32, i32) {
    %c0_i32 = arith.constant 0 : i32
    %c0_i32_0 = arith.constant 0 : i32
    %c0_i32_1 = arith.constant 0 : i32
    return %c0_i32, %c0_i32_0 : i32, i32
  }
  func.func @transform_6(%arg0: i32, %arg1: i32) -> (i32, i32) {
    %c0_i32 = arith.constant 0 : i32
    %c0_i32_0 = arith.constant 0 : i32
    %c0_i32_1 = arith.constant 0 : i32
    return %c0_i32, %c0_i32_0 : i32, i32
  }
  func.func @transform_7(%arg0: i32, %arg1: i32) -> (i32, i32, i32) {
    %c0_i32 = arith.constant 0 : i32
    %c0_i32_0 = arith.constant 0 : i32
    return %arg0, %c0_i32, %arg1 : i32, i32, i32
  }
}

</mosaic_0001>

<llo_original>
// kernel: tpu_custom_call.1
$region0: #{tpu_custom_call.1}
  #allocation0 [shape = 'u32[]', space=smem, size = 0x4, offset = 0x4, fixed_abs, tag = 'smem constant byte address 0x4 - core index']
  #allocation1 [shape = 'u32[144,128]{1,0:T(1,128)}', space=vmem, size = 0x12000, scoped, tag = 'internal scratch']
  #allocation2 [shape = 'bf16[384,256]{1,0:T(16,128)(2,1)}', space=vmem, size = 0x30000, scoped, tag = 'scratch operand']
  #allocation3 [shape = 'bf16[128,128]{1,0:T(16,128)(2,1)}', space=vmem, size = 0x8000, scoped, tag = 'scratch operand']
  %s0 = inlined_call_operand.vmem [shape: f32[2,16,256], index: 0, kind: input, shape index: {}]
  %s1 = inlined_call_operand.vmem [shape: bf16[384,16], index: 1, kind: input, shape index: {}]
  %s2 = inlined_call_operand.vmem [shape: bf16[4,32,8], index: 2, kind: input, shape index: {}]
  %s3 = inlined_call_operand.vmem [shape: bf16[4,32,8], index: 3, kind: input, shape index: {}]
  %s4 = inlined_call_operand.vmem [shape: f32[8,1], index: 4, kind: input, shape index: {}]
  %s5 = inlined_call_operand.vmem [shape: bf16[16,128], index: 5, kind: input, shape index: {}]
  %s6 = inlined_call_operand.vmem [shape: f32[16,1], index: 6, kind: input, shape index: {}]
  %s7 = inlined_call_operand.hbm [shape: f32[2,16,256], index: 7, kind: output, shape index: {}]
  %s8 = sld [smem:[#allocation0]]
  $region65: #{tpu_custom_call.1} parent=0
    _
  %s10 = ssub.s32 1, %s8
  %s11 = scalar_select 0, %s10, %s8
  $region1: #{tpu_custom_call.1} parent=0
    #allocation4 [shape = 'u8[16384]{0}', space=vmem, size = 0x4000, scoped, tag = 'output window, operand 0']
    #allocation5 [shape = 's32[2]{0}', space=sflag, size = 0x8, scoped, tag = 'scoped memory for tpu_custom_call.1']
    %12 = vsyncpa [#allocation5], 0
    %s13 = scalar_lea.sflag [#allocation5], 1
    %14 = vsyncpa %s13, 0
    loop: start=0, step=1, limit=6
    $region2: #{tpu_custom_call.1} parent=1 // loop_pre_header
      _
    $region3: #{tpu_custom_call.1} parent=1 // loop_header
      %s16 = sphi 0, %s20
      %p17 = scmp.ge.s32.totalorder %s16, 6
      %s23 = sphi 0, %s35
      %s24 = sphi 0, %s31
      %s25 = sphi 0, %s23
      %s26 = sphi 0, %s24
      %s27 = sphi 0, %s25
      %s28 = sphi 0, %s26
      %s38 = sphi 0, %s40
      %s41 = sphi 0, %s38
      %s42 = sphi 0, %s41
      %s58 = sphi 0, %s42
      %s62 = sphi 0, %s62
      %s64 = sphi 0, %s62
      %s65 = sphi 0, %s64
      %s79 = sphi 0, %s65
      %s83 = sphi 0, %s83
      %s85 = sphi 0, %s83
      %s86 = sphi 0, %s85
      %s100 = sphi 0, %s86
      %s104 = sphi 0, %s104
      %s106 = sphi 0, %s104
      %s107 = sphi 0, %s106
      %s121 = sphi 0, %s107
      %s125 = sphi 0, %s125
      %s127 = sphi 0, %s125
      %s128 = sphi 0, %s127
      %s142 = sphi 0, %s128
      %s146 = sphi 0, %s146
      %s148 = sphi 0, %s146
      %s149 = sphi 0, %s148
      %s163 = sphi 0, %s149
      %s167 = sphi 0, %s167
      %s169 = sphi 0, %s167
      %s170 = sphi 0, %s169
      %s184 = sphi 0, %s170
      %s192 = sphi 0, %s194
      %s195 = sphi 0, %s192
      %s196 = sphi 0, %s195
      %s212 = sphi 0, %s196
    $region4: #{tpu_custom_call.1} parent=1 // loop_header_branch
      %19 = sbr.rel (%p17) target = $region8
    $region5: #{tpu_custom_call.1} parent=1 // loop_body
      %s21 = ssub.s32 %s16, 1
      %s22 = ssub.s32 %s16, 2
      %s29 = sadd.s32 1, %s24
      %p30 = scmp.ge.s32.totalorder %s29, 2
      %s31 = scalar_select %p30, 0, %s29
      %s32 = sadd.s32 1, %s23
      %s33 = scalar_select %p30, %s32, %s23
      %p34 = scmp.ge.s32.totalorder %s33, 2
      %s35 = scalar_select %p34, 0, %s33
      %s36 = ssub.s32 %s23, %s35
      %p37 = scmp.eq.s32.totalorder %s36, 0
      %s39 = sadd.s32 %s38, 1
      %s40 = scalar_select %p37, %s38, %s39
      %p43 = pneg %p37
      %p44 = scmp.eq.s32.totalorder %s16, 3
      %p45 = por %p43, %p44
      %p46 = scmp.ne.s32.totalorder %s38, %s41
      %p47 = scmp.eq.s32.totalorder %s16, 0
      %p48 = por %p46, %p47
      %p49 = scmp.ne.s32.totalorder %s38, %s41
      %p50 = scmp.eq.s32.totalorder %s21, 3
      %p51 = por %p49, %p50
      %p52 = scmp.ne.s32.totalorder %s41, %s42
      %p53 = scmp.eq.s32.totalorder %s21, 0
      %p54 = por %p52, %p53
      %p55 = scmp.ne.s32.totalorder %s41, %s42
      %p56 = scmp.eq.s32.totalorder %s22, 3
      %p57 = por %p55, %p56
      %p59 = scmp.ne.s32.totalorder %s42, %s58
      %p60 = scmp.eq.s32.totalorder %s22, 0
      %p61 = por %p59, %p60
      %s63 = sadd.s32 %s62, 1
      %p66 = scmp.eq.s32.totalorder %s16, 3
      %p67 = scmp.ne.s32.totalorder %s62, %s64
      %p68 = scmp.eq.s32.totalorder %s16, 0
      %p69 = por %p67, %p68
      %p70 = scmp.ne.s32.totalorder %s62, %s64
      %p71 = scmp.eq.s32.totalorder %s21, 3
      %p72 = por %p70, %p71
      %p73 = scmp.ne.s32.totalorder %s64, %s65
      %p74 = scmp.eq.s32.totalorder %s21, 0
      %p75 = por %p73, %p74
      %p76 = scmp.ne.s32.totalorder %s64, %s65
      %p77 = scmp.eq.s32.totalorder %s22, 3
      %p78 = por %p76, %p77
      %p80 = scmp.ne.s32.totalorder %s65, %s79
      %p81 = scmp.eq.s32.totalorder %s22, 0
      %p82 = por %p80, %p81
      %s84 = sadd.s32 %s83, 1
      %p87 = scmp.eq.s32.totalorder %s16, 3
      %p88 = scmp.ne.s32.totalorder %s83, %s85
      %p89 = scmp.eq.s32.totalorder %s16, 0
      %p90 = por %p88, %p89
      %p91 = scmp.ne.s32.totalorder %s83, %s85
      %p92 = scmp.eq.s32.totalorder %s21, 3
      %p93 = por %p91, %p92
      %p94 = scmp.ne.s32.totalorder %s85, %s86
      %p95 = scmp.eq.s32.totalorder %s21, 0
      %p96 = por %p94, %p95
      %p97 = scmp.ne.s32.totalorder %s85, %s86
      %p98 = scmp.eq.s32.totalorder %s22, 3
      %p99 = por %p97, %p98
      %p101 = scmp.ne.s32.totalorder %s86, %s100
      %p102 = scmp.eq.s32.totalorder %s22, 0
      %p103 = por %p101, %p102
      %s105 = sadd.s32 %s104, 1
      %p108 = scmp.eq.s32.totalorder %s16, 3
      %p109 = scmp.ne.s32.totalorder %s104, %s106
      %p110 = scmp.eq.s32.totalorder %s16, 0
      %p111 = por %p109, %p110
      %p112 = scmp.ne.s32.totalorder %s104, %s106
      %p113 = scmp.eq.s32.totalorder %s21, 3
      %p114 = por %p112, %p113
      %p115 = scmp.ne.s32.totalorder %s106, %s107
      %p116 = scmp.eq.s32.totalorder %s21, 0
      %p117 = por %p115, %p116
      %p118 = scmp.ne.s32.totalorder %s106, %s107
      %p119 = scmp.eq.s32.totalorder %s22, 3
      %p120 = por %p118, %p119
      %p122 = scmp.ne.s32.totalorder %s107, %s121
      %p123 = scmp.eq.s32.totalorder %s22, 0
      %p124 = por %p122, %p123
      %s126 = sadd.s32 %s125, 1
      %p129 = scmp.eq.s32.totalorder %s16, 3
      %p130 = scmp.ne.s32.totalorder %s125, %s127
      %p131 = scmp.eq.s32.totalorder %s16, 0
      %p132 = por %p130, %p131
      %p133 = scmp.ne.s32.totalorder %s125, %s127
      %p134 = scmp.eq.s32.totalorder %s21, 3
      %p135 = por %p133, %p134
      %p136 = scmp.ne.s32.totalorder %s127, %s128
      %p137 = scmp.eq.s32.totalorder %s21, 0
      %p138 = por %p136, %p137
      %p139 = scmp.ne.s32.totalorder %s127, %s128
      %p140 = scmp.eq.s32.totalorder %s22, 3
      %p141 = por %p139, %p140
      %p143 = scmp.ne.s32.totalorder %s128, %s142
      %p144 = scmp.eq.s32.totalorder %s22, 0
      %p145 = por %p143, %p144
      %s147 = sadd.s32 %s146, 1
      %p150 = scmp.eq.s32.totalorder %s16, 3
      %p151 = scmp.ne.s32.totalorder %s146, %s148
      %p152 = scmp.eq.s32.totalorder %s16, 0
      %p153 = por %p151, %p152
      %p154 = scmp.ne.s32.totalorder %s146, %s148
      %p155 = scmp.eq.s32.totalorder %s21, 3
      %p156 = por %p154, %p155
      %p157 = scmp.ne.s32.totalorder %s148, %s149
      %p158 = scmp.eq.s32.totalorder %s21, 0
      %p159 = por %p157, %p158
      %p160 = scmp.ne.s32.totalorder %s148, %s149
      %p161 = scmp.eq.s32.totalorder %s22, 3
      %p162 = por %p160, %p161
      %p164 = scmp.ne.s32.totalorder %s149, %s163
      %p165 = scmp.eq.s32.totalorder %s22, 0
      %p166 = por %p164, %p165
      %s168 = sadd.s32 %s167, 1
      %p171 = scmp.eq.s32.totalorder %s16, 3
      %p172 = scmp.ne.s32.totalorder %s167, %s169
      %p173 = scmp.eq.s32.totalorder %s16, 0
      %p174 = por %p172, %p173
      %p175 = scmp.ne.s32.totalorder %s167, %s169
      %p176 = scmp.eq.s32.totalorder %s21, 3
      %p177 = por %p175, %p176
      %p178 = scmp.ne.s32.totalorder %s169, %s170
      %p179 = scmp.eq.s32.totalorder %s21, 0
      %p180 = por %p178, %p179
      %p181 = scmp.ne.s32.totalorder %s169, %s170
      %p182 = scmp.eq.s32.totalorder %s22, 3
      %p183 = por %p181, %p182
      %p185 = scmp.ne.s32.totalorder %s170, %s184
      %p186 = scmp.eq.s32.totalorder %s22, 0
      %p187 = por %p185, %p186
      %s188 = ssub.s32 %s23, %s35
      %s189 = ssub.s32 %s24, %s31
      %s190 = sor.u32 %s188, %s189
      %p191 = scmp.eq.s32.totalorder %s190, 0
      %s193 = sadd.s32 %s192, 1
      %s194 = scalar_select %p191, %s192, %s193
      %p197 = pneg %p191
      %p198 = scmp.eq.s32.totalorder %s16, 3
      %p199 = por %p197, %p198
      %p200 = scmp.ne.s32.totalorder %s192, %s195
      %p201 = scmp.eq.s32.totalorder %s16, 0
      %p202 = por %p200, %p201
      %p203 = scmp.ne.s32.totalorder %s192, %s195
      %p204 = scmp.eq.s32.totalorder %s21, 3
      %p205 = por %p203, %p204
      %p206 = scmp.ne.s32.totalorder %s195, %s196
      %p207 = scmp.eq.s32.totalorder %s21, 0
      %p208 = por %p206, %p207
      %p209 = scmp.ne.s32.totalorder %s195, %s196
      %p210 = scmp.eq.s32.totalorder %s22, 3
      %p211 = por %p209, %p210
      %p213 = scmp.ne.s32.totalorder %s196, %s212
      %p214 = scmp.eq.s32.totalorder %s22, 0
      %p215 = por %p213, %p214
      %p216 = scmp.le.s32.totalorder 1, %s16
      %p217 = scmp.lt.s32.totalorder %s16, 5
      %p218 = pnand %p216, %p217
      %p219 = pneg %p218
      // Predicated region
      $region9: #{tpu_custom_call.1} parent=5 // pred_check
        _
      $region10: #{tpu_custom_call.1} parent=5 // pred_check_branch
        %221 = sbr.rel (%p218) target = $region12
      $region11: #{tpu_custom_call.1} parent=5 // pred_region
        %s222 = ssub.s32 %s16, 1
        // Predicated region
        $region13: #{tpu_custom_call.1} parent=11 // pred_check
          %p223 = pneg %p75
        $region14: #{tpu_custom_call.1} parent=11 // pred_check_branch
          %225 = sbr.rel (%p223) target = $region16
        $region15: #{tpu_custom_call.1} parent=11 // pred_region
          _
        $region16: #{tpu_custom_call.1} parent=11 // pred_fallthru
          _
        // Predicated region
        $region17: #{tpu_custom_call.1} parent=11 // pred_check
          %p226 = pneg %p96
        $region18: #{tpu_custom_call.1} parent=11 // pred_check_branch
          %228 = sbr.rel (%p226) target = $region20
        $region19: #{tpu_custom_call.1} parent=11 // pred_region
          _
        $region20: #{tpu_custom_call.1} parent=11 // pred_fallthru
          _
        // Predicated region
        $region21: #{tpu_custom_call.1} parent=11 // pred_check
          %p229 = pneg %p117
        $region22: #{tpu_custom_call.1} parent=11 // pred_check_branch
          %231 = sbr.rel (%p229) target = $region24
        $region23: #{tpu_custom_call.1} parent=11 // pred_region
          _
        $region24: #{tpu_custom_call.1} parent=11 // pred_fallthru
          _
        // Predicated region
        $region25: #{tpu_custom_call.1} parent=11 // pred_check
          %p232 = pneg %p138
        $region26: #{tpu_custom_call.1} parent=11 // pred_check_branch
          %234 = sbr.rel (%p232) target = $region28
        $region27: #{tpu_custom_call.1} parent=11 // pred_region
          _
        $region28: #{tpu_custom_call.1} parent=11 // pred_fallthru
          _
        // Predicated region
        $region29: #{tpu_custom_call.1} parent=11 // pred_check
          %p235 = pneg %p159
        $region30: #{tpu_custom_call.1} parent=11 // pred_check_branch
          %237 = sbr.rel (%p235) target = $region32
        $region31: #{tpu_custom_call.1} parent=11 // pred_region
          _
        $region32: #{tpu_custom_call.1} parent=11 // pred_fallthru
          _
        // Predicated region
        $region33: #{tpu_custom_call.1} parent=11 // pred_check
          %p238 = pneg %p180
        $region34: #{tpu_custom_call.1} parent=11 // pred_check_branch
          %240 = sbr.rel (%p238) target = $region36
        $region35: #{tpu_custom_call.1} parent=11 // pred_region
          _
        $region36: #{tpu_custom_call.1} parent=11 // pred_fallthru
          _
      $region12: #{tpu_custom_call.1} parent=5 // pred_fallthru
        _
      %p241 = scmp.lt.s32.totalorder %s16, 4
      // Predicated region
      $region37: #{tpu_custom_call.1} parent=5 // pred_check
        %p242 = pneg %p241
      $region38: #{tpu_custom_call.1} parent=5 // pred_check_branch
        %244 = sbr.rel (%p242) target = $region40
      $region39: #{tpu_custom_call.1} parent=5 // pred_region
        // Predicated region
        $region41: #{tpu_custom_call.1} parent=39 // pred_check
          %p245 = pneg %p48
        $region42: #{tpu_custom_call.1} parent=39 // pred_check_branch
          %247 = sbr.rel (%p245) target = $region44
        $region43: #{tpu_custom_call.1} parent=39 // pred_region
          %p248 = scmp.lt.s32.totalorder %s23, 1
          %s249 = scalar_select %p248, %s23, 1
          %s250 = smul.addr %s249, 4
          %s251 = smul.addr %s250, 8
          %s252 = scalar_lea.vmem %s0, %s251
        $region44: #{tpu_custom_call.1} parent=39 // pred_fallthru
          _
      $region40: #{tpu_custom_call.1} parent=5 // pred_fallthru
        _
      %p253 = scmp.le.s32.totalorder 1, %s16
      %p254 = scmp.lt.s32.totalorder %s16, 5
      %p255 = pnand %p253, %p254
      %p256 = pneg %p255
      // Predicated region
      $region45: #{tpu_custom_call.1} parent=5 // pred_check
        _
      $region46: #{tpu_custom_call.1} parent=5 // pred_check_branch
        %258 = sbr.rel (%p255) target = $region48
      $region47: #{tpu_custom_call.1} parent=5 // pred_region
        %s259 = ssub.s32 %s16, 1
        %p260 = scmp.lt.s32.totalorder %s25, 1
        %s261 = scalar_select %p260, %s25, 1
        %s262 = smul.addr %s261, 4
        %s263 = smul.addr %s262, 8
        %s264 = scalar_lea.vmem %s0, %s263
        %p265 = pneg %p54
        %p266 = pneg %p51
        %p267 = pneg %p75
        %p268 = pneg %p72
        %p269 = pneg %p96
        %p270 = pneg %p93
        %p271 = pneg %p117
        %p272 = pneg %p114
        %p273 = pneg %p138
        %p274 = pneg %p135
        %p275 = pneg %p159
        %p276 = pneg %p156
        %p277 = pneg %p180
        %p278 = pneg %p177
        %p279 = pneg %p208
        %p280 = pneg %p205
        %s281 = sand.u32 %s195, 1
        %s282 = scalar_lea.sflag [#allocation5], %s281
        %s283 = sand.u32 %s195, 1
        %s284 = smul.addr %s283, 16
        %s285 = scalar_lea.vmem [#allocation4], %s284
        %p286 = scmp.lt.s32.totalorder %s25, 1
        %s287 = scalar_select %p286, %s25, 1
        %s288 = smul.addr %s287, 4
        %s289 = smul.addr %s288, 8
        %s290 = scalar_lea.vmem %s0, %s289
        %p292 = scmp.eq.s32.totalorder %s26, 0
        // Predicated region
        $region49: #{tpu_custom_call.1} parent=47 // pred_check
          %p293 = pneg %p292
        $region50: #{tpu_custom_call.1} parent=47 // pred_check_branch
          %295 = sbr.rel (%p293) target = $region52
        $region51: #{tpu_custom_call.1} parent=47 // pred_region
          %v296 = vld [vmem:[%s290] sm:$0xff]
          %v297 = vld [vmem:[%s290 + $0x8] sm:$0xff]
          %v298 = vld [vmem:[%s290 + $0x10] sm:$0xff]
          %v299 = vld [vmem:[%s290 + $0x18] sm:$0xff]
          %v300 = vmul.f32 %v296, %v296
          %v301 = vmul.f32 %v297, %v297
          %v302 = vmul.f32 %v298, %v298
          %v303 = vmul.f32 %v299, %v299
          %v304 = vadd.f32 %v300, %v302
          %v305 = vrot.slane %v304, 4
          %v306 = vadd.f32 %v304, %v305
          %v307 = vrot.slane %v306, 2
          %v308 = vadd.f32 %v306, %v307
          %v309 = vrot.slane %v308, 1
          %v310 = vadd.f32 %v308, %v309
          %v311 = vadd.f32 %v301, %v303
          %v312 = vrot.slane %v311, 4
          %v313 = vadd.f32 %v311, %v312
          %v314 = vrot.slane %v313, 2
          %v315 = vadd.f32 %v313, %v314
          %v316 = vrot.slane %v315, 1
          %v317 = vadd.f32 %v315, %v316
          %v318 = vmax.f32 %v310, 1e-24
          %v319 = vmax.f32 %v317, 1e-24
          %v320 = vrsqrt.pop %v318
          %v321 = vrsqrt.pop %v319
          %v322 = vmul.f32 %v296, %v320
          %v323 = vmul.f32 %v297, %v321
          %v324 = vmul.f32 %v298, %v320
          %v325 = vmul.f32 %v299, %v321
          %v326 = vpack.c.bf16 %v324, %v322
          %v327 = vpack.c.bf16 %v325, %v323
          %v328 = vld [vmem:[%s1] sm:$0xf]
          %v329 = vld [vmem:[%s1 + $0x4] sm:$0xf]
          %v330 = vld [vmem:[%s1 + $0x8] sm:$0xf]
          %v331 = vld [vmem:[%s1 + $0xc] sm:$0xf]
          %v332 = vld [vmem:[%s1 + $0x10] sm:$0xf]
          %v333 = vld [vmem:[%s1 + $0x14] sm:$0xf]
          %v334 = vld [vmem:[%s1 + $0x18] sm:$0xf]
          %v335 = vld [vmem:[%s1 + $0x1c] sm:$0xf]
          %v336 = vld [vmem:[%s1 + $0x20] sm:$0xf]
          %v337 = vld [vmem:[%s1 + $0x24] sm:$0xf]
          %v338 = vld [vmem:[%s1 + $0x28] sm:$0xf]
          %v339 = vld [vmem:[%s1 + $0x2c] sm:$0xf]
          %v340 = vld [vmem:[%s1 + $0x30] sm:$0xf]
          %v341 = vld [vmem:[%s1 + $0x34] sm:$0xf]
          %v342 = vld [vmem:[%s1 + $0x38] sm:$0xf]
          %v343 = vld [vmem:[%s1 + $0x3c] sm:$0xf]
          %v344 = vld [vmem:[%s1 + $0x40] sm:$0xf]
          %v345 = vld [vmem:[%s1 + $0x44] sm:$0xf]
          %v346 = vld [vmem:[%s1 + $0x48] sm:$0xf]
          %v347 = vld [vmem:[%s1 + $0x4c] sm:$0xf]
          %v348 = vld [vmem:[%s1 + $0x50] sm:$0xf]
          %v349 = vld [vmem:[%s1 + $0x54] sm:$0xf]
          %v350 = vld [vmem:[%s1 + $0x58] sm:$0xf]
          %v351 = vld [vmem:[%s1 + $0x5c] sm:$0xf]
          %v352 = vld [vmem:[%s1 + $0x60] sm:$0xf]
          %v353 = vld [vmem:[%s1 + $0x64] sm:$0xf]
          %v354 = vld [vmem:[%s1 + $0x68] sm:$0xf]
          %v355 = vld [vmem:[%s1 + $0x6c] sm:$0xf]
          %v356 = vld [vmem:[%s1 + $0x70] sm:$0xf]
          %v357 = vld [vmem:[%s1 + $0x74] sm:$0xf]
          %v358 = vld [vmem:[%s1 + $0x78] sm:$0xf]
          %v359 = vld [vmem:[%s1 + $0x7c] sm:$0xf]
          %v360 = vld [vmem:[%s1 + $0x80] sm:$0xf]
          %v361 = vld [vmem:[%s1 + $0x84] sm:$0xf]
          %v362 = vld [vmem:[%s1 + $0x88] sm:$0xf]
          %v363 = vld [vmem:[%s1 + $0x8c] sm:$0xf]
          %v364 = vld [vmem:[%s1 + $0x90] sm:$0xf]
          %v365 = vld [vmem:[%s1 + $0x94] sm:$0xf]
          %v366 = vld [vmem:[%s1 + $0x98] sm:$0xf]
          %v367 = vld [vmem:[%s1 + $0x9c] sm:$0xf]
          %v368 = vld [vmem:[%s1 + $0xa0] sm:$0xf]
          %v369 = vld [vmem:[%s1 + $0xa4] sm:$0xf]
          %v370 = vld [vmem:[%s1 + $0xa8] sm:$0xf]
          %v371 = vld [vmem:[%s1 + $0xac] sm:$0xf]
          %v372 = vld [vmem:[%s1 + $0xb0] sm:$0xf]
          %v373 = vld [vmem:[%s1 + $0xb4] sm:$0xf]
          %v374 = vld [vmem:[%s1 + $0xb8] sm:$0xf]
          %v375 = vld [vmem:[%s1 + $0xbc] sm:$0xf]
          %v424 = vunpack.c.l.b16 %v328
          %v425 = vunpack.c.l.b16 %v329
          %v426 = vunpack.c.l.b16 %v330
          %v427 = vunpack.c.l.b16 %v331
          %v428 = vunpack.c.l.b16 %v332
          %v429 = vunpack.c.l.b16 %v333
          %v430 = vunpack.c.l.b16 %v334
          %v431 = vunpack.c.l.b16 %v335
          %v432 = vunpack.c.l.b16 %v336
          %v433 = vunpack.c.l.b16 %v337
          %v434 = vunpack.c.l.b16 %v338
          %v435 = vunpack.c.l.b16 %v339
          %v436 = vunpack.c.l.b16 %v340
          %v437 = vunpack.c.l.b16 %v341
          %v438 = vunpack.c.l.b16 %v342
          %v439 = vunpack.c.l.b16 %v343
          %v440 = vunpack.c.l.b16 %v344
          %v441 = vunpack.c.l.b16 %v345
          %v442 = vunpack.c.l.b16 %v346
          %v443 = vunpack.c.l.b16 %v347
          %v444 = vunpack.c.l.b16 %v348
          %v445 = vunpack.c.l.b16 %v349
          %v446 = vunpack.c.l.b16 %v350
          %v447 = vunpack.c.l.b16 %v351
          %v448 = vunpack.c.l.b16 %v352
          %v449 = vunpack.c.l.b16 %v353
          %v450 = vunpack.c.l.b16 %v354
          %v451 = vunpack.c.l.b16 %v355
          %v452 = vunpack.c.l.b16 %v356
          %v453 = vunpack.c.l.b16 %v357
          %v454 = vunpack.c.l.b16 %v358
          %v455 = vunpack.c.l.b16 %v359
          %v456 = vunpack.c.l.b16 %v360
          %v457 = vunpack.c.l.b16 %v361
          %v458 = vunpack.c.l.b16 %v362
          %v459 = vunpack.c.l.b16 %v363
          %v460 = vunpack.c.l.b16 %v364
          %v461 = vunpack.c.l.b16 %v365
          %v462 = vunpack.c.l.b16 %v366
          %v463 = vunpack.c.l.b16 %v367
          %v464 = vunpack.c.l.b16 %v368
          %v465 = vunpack.c.l.b16 %v369
          %v466 = vunpack.c.l.b16 %v370
          %v467 = vunpack.c.l.b16 %v371
          %v468 = vunpack.c.l.b16 %v372
          %v469 = vunpack.c.l.b16 %v373
          %v470 = vunpack.c.l.b16 %v374
          %v471 = vunpack.c.l.b16 %v375
          %v472 = vpack.c.b16 %v425, %v424
          %v473 = vpack.c.b16 %v427, %v426
          %v474 = vpack.c.b16 %v429, %v428
          %v475 = vpack.c.b16 %v431, %v430
          %v476 = vpack.c.b16 %v433, %v432
          %v477 = vpack.c.b16 %v435, %v434
          %v478 = vpack.c.b16 %v437, %v436
          %v479 = vpack.c.b16 %v439, %v438
          %v480 = vpack.c.b16 %v441, %v440
          %v481 = vpack.c.b16 %v443, %v442
          %v482 = vpack.c.b16 %v445, %v444
          %v483 = vpack.c.b16 %v447, %v446
          %v484 = vpack.c.b16 %v449, %v448
          %v485 = vpack.c.b16 %v451, %v450
          %v486 = vpack.c.b16 %v453, %v452
          %v487 = vpack.c.b16 %v455, %v454
          %v488 = vpack.c.b16 %v457, %v456
          %v489 = vpack.c.b16 %v459, %v458
          %v490 = vpack.c.b16 %v461, %v460
          %v491 = vpack.c.b16 %v463, %v462
          %v492 = vpack.c.b16 %v465, %v464
          %v493 = vpack.c.b16 %v467, %v466
          %v494 = vpack.c.b16 %v469, %v468
          %v495 = vpack.c.b16 %v471, %v470
          %vm496 = vcmask 130048
          %v498 = vsel %vm496, %v472, 0
          %v501 = vsel %vm496, %v473, 0
          %v504 = vsel %vm496, %v474, 0
          %v507 = vsel %vm496, %v475, 0
          %v510 = vsel %vm496, %v476, 0
          %v513 = vsel %vm496, %v477, 0
          %v516 = vsel %vm496, %v478, 0
          %v519 = vsel %vm496, %v479, 0
          %v522 = vsel %vm496, %v480, 0
          %v525 = vsel %vm496, %v481, 0
          %v528 = vsel %vm496, %v482, 0
          %v531 = vsel %vm496, %v483, 0
          %v534 = vsel %vm496, %v484, 0
          %v537 = vsel %vm496, %v485, 0
          %v540 = vsel %vm496, %v486, 0
          %v543 = vsel %vm496, %v487, 0
          %v546 = vsel %vm496, %v488, 0
          %v549 = vsel %vm496, %v489, 0
          %v552 = vsel %vm496, %v490, 0
          %v555 = vsel %vm496, %v491, 0
          %v558 = vsel %vm496, %v492, 0
          %v561 = vsel %vm496, %v493, 0
          %v564 = vsel %vm496, %v494, 0
          %v567 = vsel %vm496, %v495, 0
          %569 = vmatprep.subr.bf16.mxu0 %v327
          %570 = vmatpush1.bf16.msra.mxu0 %v326
          %571 = vmatprep.subr.bf16.mxu0 0
          %572 = vmatpush1.bf16.msra.mxu0 0
          %573 = vmatprep.subr.bf16.mxu0 0
          %574 = vmatpush1.bf16.msra.mxu0 0
          %575 = vmatprep.subr.bf16.mxu0 0
          %576 = vmatpush1.bf16.msra.mxu0 0
          %577 = vmatprep.subr.bf16.mxu0 0
          %578 = vmatpush1.bf16.msra.mxu0 0
          %579 = vmatprep.subr.bf16.mxu0 0
          %580 = vmatpush1.bf16.msra.mxu0 0
          %581 = vmatprep.subr.bf16.mxu0 0
          %582 = vmatpush1.bf16.msra.mxu0 0
          %583 = vmatprep.subr.bf16.mxu0 0
          %584 = vmatpush1.bf16.msra.mxu0 0
          %585 = vmatprep.subr.bf16.mxu0 0
          %586 = vmatpush1.bf16.msra.mxu0 0
          %587 = vmatprep.subr.bf16.mxu0 0
          %588 = vmatpush1.bf16.msra.mxu0 0
          %589 = vmatprep.subr.bf16.mxu0 0
          %590 = vmatpush1.bf16.msra.mxu0 0
          %591 = vmatprep.subr.bf16.mxu0 0
          %592 = vmatpush1.bf16.msra.mxu0 0
          %593 = vmatprep.subr.bf16.mxu0 0
          %594 = vmatpush1.bf16.msra.mxu0 0
          %595 = vmatprep.subr.bf16.mxu0 0
          %596 = vmatpush1.bf16.msra.mxu0 0
          %597 = vmatprep.subr.bf16.mxu0 0
          %598 = vmatpush1.bf16.msra.mxu0 0
          %599 = vmatprep.subr.bf16.mxu0 0
          %600 = vmatpush1.bf16.msra.mxu0 0
          %601 = vmatprep.mubr.bf16.mxu0 0
          %602 = vmatmul.mubr.bf16.gmra.mrb[0].mxu0 %v498
          %v603 = vpop.f32.mrb[0].mxu0
          %v604 = vadd.f32 0.0, %v603
          %v605 = vpop.f32.mrb[0].mxu0
          %v606 = vadd.f32 0.0, %v605
          %v607 = vpop.f32.mrb[0].mxu0
          %v608 = vadd.f32 0.0, %v607
          %v609 = vpop.f32.mrb[0].mxu0
          %v610 = vadd.f32 0.0, %v609
          %611 = vmatprep.mubr.bf16.mxu0 0
          %612 = vmatmul.mubr.bf16.gmra.mrb[0].mxu0 %v501
          %v613 = vpop.f32.mrb[0].mxu0
          %v614 = vadd.f32 0.0, %v613
          %v615 = vpop.f32.mrb[0].mxu0
          %v616 = vadd.f32 0.0, %v615
          %v617 = vpop.f32.mrb[0].mxu0
          %v618 = vadd.f32 0.0, %v617
          %v619 = vpop.f32.mrb[0].mxu0
          %v620 = vadd.f32 0.0, %v619
          %621 = vmatprep.mubr.bf16.mxu0 0
          %622 = vmatmul.mubr.bf16.gmra.mrb[0].mxu0 %v504
          %v623 = vpop.f32.mrb[0].mxu0
          %v624 = vadd.f32 0.0, %v623
          %v625 = vpop.f32.mrb[0].mxu0
          %v626 = vadd.f32 0.0, %v625
          %v627 = vpop.f32.mrb[0].mxu0
          %v628 = vadd.f32 0.0, %v627
          %v629 = vpop.f32.mrb[0].mxu0
          %v630 = vadd.f32 0.0, %v629
          %631 = vmatprep.mubr.bf16.mxu0 0
          %632 = vmatmul.mubr.bf16.gmra.mrb[0].mxu0 %v507
          %v633 = vpop.f32.mrb[0].mxu0
          %v634 = vadd.f32 0.0, %v633
          %v635 = vpop.f32.mrb[0].mxu0
          %v636 = vadd.f32 0.0, %v635
          %v637 = vpop.f32.mrb[0].mxu0
          %v638 = vadd.f32 0.0, %v637
          %v639 = vpop.f32.mrb[0].mxu0
          %v640 = vadd.f32 0.0, %v639
          %641 = vmatprep.mubr.bf16.mxu0 0
          %642 = vmatmul.mubr.bf16.gmra.mrb[0].mxu0 %v510
          %v643 = vpop.f32.mrb[0].mxu0
          %v644 = vadd.f32 0.0, %v643
          %v645 = vpop.f32.mrb[0].mxu0
          %v646 = vadd.f32 0.0, %v645
          %v647 = vpop.f32.mrb[0].mxu0
          %v648 = vadd.f32 0.0, %v647
          %v649 = vpop.f32.mrb[0].mxu0
          %v650 = vadd.f32 0.0, %v649
          %651 = vmatprep.mubr.bf16.mxu0 0
          %652 = vmatmul.mubr.bf16.gmra.mrb[0].mxu0 %v513
          %v653 = vpop.f32.mrb[0].mxu0
          %v654 = vadd.f32 0.0, %v653
          %v655 = vpop.f32.mrb[0].mxu0
          %v656 = vadd.f32 0.0, %v655
          %v657 = vpop.f32.mrb[0].mxu0
          %v658 = vadd.f32 0.0, %v657
          %v659 = vpop.f32.mrb[0].mxu0
          %v660 = vadd.f32 0.0, %v659
          %661 = vmatprep.mubr.bf16.mxu0 0
          %662 = vmatmul.mubr.bf16.gmra.mrb[0].mxu0 %v516
          %v663 = vpop.f32.mrb[0].mxu0
          %v664 = vadd.f32 0.0, %v663
          %v665 = vpop.f32.mrb[0].mxu0
          %v666 = vadd.f32 0.0, %v665
          %v667 = vpop.f32.mrb[0].mxu0
          %v668 = vadd.f32 0.0, %v667
          %v669 = vpop.f32.mrb[0].mxu0
          %v670 = vadd.f32 0.0, %v669
          %671 = vmatprep.mubr.bf16.mxu0 0
          %672 = vmatmul.mubr.bf16.gmra.mrb[0].mxu0 %v519
          %v673 = vpop.f32.mrb[0].mxu0
          %v674 = vadd.f32 0.0, %v673
          %v675 = vpop.f32.mrb[0].mxu0
          %v676 = vadd.f32 0.0, %v675
          %v677 = vpop.f32.mrb[0].mxu0
          %v678 = vadd.f32 0.0, %v677
          %v679 = vpop.f32.mrb[0].mxu0
          %v680 = vadd.f32 0.0, %v679
          %681 = vmatprep.mubr.bf16.mxu0 0
          %682 = vmatmul.mubr.bf16.gmra.mrb[0].mxu0 %v522
          %v683 = vpop.f32.mrb[0].mxu0
          %v684 = vadd.f32 0.0, %v683
          %v685 = vpop.f32.mrb[0].mxu0
          %v686 = vadd.f32 0.0, %v685
          %v687 = vpop.f32.mrb[0].mxu0
          %v688 = vadd.f32 0.0, %v687
          %v689 = vpop.f32.mrb[0].mxu0
          %v690 = vadd.f32 0.0, %v689
          %691 = vmatprep.mubr.bf16.mxu0 0
          %692 = vmatmul.mubr.bf16.gmra.mrb[0].mxu0 %v525
          %v693 = vpop.f32.mrb[0].mxu0
          %v694 = vadd.f32 0.0, %v693
          %v695 = vpop.f32.mrb[0].mxu0
          %v696 = vadd.f32 0.0, %v695
          %v697 = vpop.f32.mrb[0].mxu0
          %v698 = vadd.f32 0.0, %v697
          %v699 = vpop.f32.mrb[0].mxu0
          %v700 = vadd.f32 0.0, %v699
          %701 = vmatprep.mubr.bf16.mxu0 0
          %702 = vmatmul.mubr.bf16.gmra.mrb[0].mxu0 %v528
          %v703 = vpop.f32.mrb[0].mxu0
          %v704 = vadd.f32 0.0, %v703
          %v705 = vpop.f32.mrb[0].mxu0
          %v706 = vadd.f32 0.0, %v705
          %v707 = vpop.f32.mrb[0].mxu0
          %v708 = vadd.f32 0.0, %v707
          %v709 = vpop.f32.mrb[0].mxu0
          %v710 = vadd.f32 0.0, %v709
          %711 = vmatprep.mubr.bf16.mxu0 0
          %712 = vmatmul.mubr.bf16.gmra.mrb[0].mxu0 %v531
          %v713 = vpop.f32.mrb[0].mxu0
          %v714 = vadd.f32 0.0, %v713
          %v715 = vpop.f32.mrb[0].mxu0
          %v716 = vadd.f32 0.0, %v715
          %v717 = vpop.f32.mrb[0].mxu0
          %v718 = vadd.f32 0.0, %v717
          %v719 = vpop.f32.mrb[0].mxu0
          %v720 = vadd.f32 0.0, %v719
          %721 = vmatprep.mubr.bf16.mxu0 0
          %722 = vmatmul.mubr.bf16.gmra.mrb[0].mxu0 %v534
          %v723 = vpop.f32.mrb[0].mxu0
          %v724 = vadd.f32 0.0, %v723
          %v725 = vpop.f32.mrb[0].mxu0
          %v726 = vadd.f32 0.0, %v725
          %v727 = vpop.f32.mrb[0].mxu0
          %v728 = vadd.f32 0.0, %v727
          %v729 = vpop.f32.mrb[0].mxu0
          %v730 = vadd.f32 0.0, %v729
          %731 = vmatprep.mubr.bf16.mxu0 0
          %732 = vmatmul.mubr.bf16.gmra.mrb[0].mxu0 %v537
          %v733 = vpop.f32.mrb[0].mxu0
          %v734 = vadd.f32 0.0, %v733
          %v735 = vpop.f32.mrb[0].mxu0
          %v736 = vadd.f32 0.0, %v735
          %v737 = vpop.f32.mrb[0].mxu0
          %v738 = vadd.f32 0.0, %v737
          %v739 = vpop.f32.mrb[0].mxu0
          %v740 = vadd.f32 0.0, %v739
          %741 = vmatprep.mubr.bf16.mxu0 0
          %742 = vmatmul.mubr.bf16.gmra.mrb[0].mxu0 %v540
          %v743 = vpop.f32.mrb[0].mxu0
          %v744 = vadd.f32 0.0, %v743
          %v745 = vpop.f32.mrb[0].mxu0
          %v746 = vadd.f32 0.0, %v745
          %v747 = vpop.f32.mrb[0].mxu0
          %v748 = vadd.f32 0.0, %v747
          %v749 = vpop.f32.mrb[0].mxu0
          %v750 = vadd.f32 0.0, %v749
          %751 = vmatprep.mubr.bf16.mxu0 0
          %752 = vmatmul.mubr.bf16.gmra.mrb[0].mxu0 %v543
          %v753 = vpop.f32.mrb[0].mxu0
          %v754 = vadd.f32 0.0, %v753
          %v755 = vpop.f32.mrb[0].mxu0
          %v756 = vadd.f32 0.0, %v755
          %v757 = vpop.f32.mrb[0].mxu0
          %v758 = vadd.f32 0.0, %v757
          %v759 = vpop.f32.mrb[0].mxu0
          %v760 = vadd.f32 0.0, %v759
          %761 = vmatprep.mubr.bf16.mxu0 0
          %762 = vmatmul.mubr.bf16.gmra.mrb[0].mxu0 %v546
          %v763 = vpop.f32.mrb[0].mxu0
          %v764 = vadd.f32 0.0, %v763
          %v765 = vpop.f32.mrb[0].mxu0
          %v766 = vadd.f32 0.0, %v765
          %v767 = vpop.f32.mrb[0].mxu0
          %v768 = vadd.f32 0.0, %v767
          %v769 = vpop.f32.mrb[0].mxu0
          %v770 = vadd.f32 0.0, %v769
          %771 = vmatprep.mubr.bf16.mxu0 0
          %772 = vmatmul.mubr.bf16.gmra.mrb[0].mxu0 %v549
          %v773 = vpop.f32.mrb[0].mxu0
          %v774 = vadd.f32 0.0, %v773
          %v775 = vpop.f32.mrb[0].mxu0
          %v776 = vadd.f32 0.0, %v775
          %v777 = vpop.f32.mrb[0].mxu0
          %v778 = vadd.f32 0.0, %v777
          %v779 = vpop.f32.mrb[0].mxu0
          %v780 = vadd.f32 0.0, %v779
          %781 = vmatprep.mubr.bf16.mxu0 0
          %782 = vmatmul.mubr.bf16.gmra.mrb[0].mxu0 %v552
          %v783 = vpop.f32.mrb[0].mxu0
          %v784 = vadd.f32 0.0, %v783
          %v785 = vpop.f32.mrb[0].mxu0
          %v786 = vadd.f32 0.0, %v785
          %v787 = vpop.f32.mrb[0].mxu0
          %v788 = vadd.f32 0.0, %v787
          %v789 = vpop.f32.mrb[0].mxu0
          %v790 = vadd.f32 0.0, %v789
          %791 = vmatprep.mubr.bf16.mxu0 0
          %792 = vmatmul.mubr.bf16.gmra.mrb[0].mxu0 %v555
          %v793 = vpop.f32.mrb[0].mxu0
          %v794 = vadd.f32 0.0, %v793
          %v795 = vpop.f32.mrb[0].mxu0
          %v796 = vadd.f32 0.0, %v795
          %v797 = vpop.f32.mrb[0].mxu0
          %v798 = vadd.f32 0.0, %v797
          %v799 = vpop.f32.mrb[0].mxu0
          %v800 = vadd.f32 0.0, %v799
          %801 = vmatprep.mubr.bf16.mxu0 0
          %802 = vmatmul.mubr.bf16.gmra.mrb[0].mxu0 %v558
          %v803 = vpop.f32.mrb[0].mxu0
          %v804 = vadd.f32 0.0, %v803
          %v805 = vpop.f32.mrb[0].mxu0
          %v806 = vadd.f32 0.0, %v805
          %v807 = vpop.f32.mrb[0].mxu0
          %v808 = vadd.f32 0.0, %v807
          %v809 = vpop.f32.mrb[0].mxu0
          %v810 = vadd.f32 0.0, %v809
          %811 = vmatprep.mubr.bf16.mxu0 0
          %812 = vmatmul.mubr.bf16.gmra.mrb[0].mxu0 %v561
          %v813 = vpop.f32.mrb[0].mxu0
          %v814 = vadd.f32 0.0, %v813
          %v815 = vpop.f32.mrb[0].mxu0
          %v816 = vadd.f32 0.0, %v815
          %v817 = vpop.f32.mrb[0].mxu0
          %v818 = vadd.f32 0.0, %v817
          %v819 = vpop.f32.mrb[0].mxu0
          %v820 = vadd.f32 0.0, %v819
          %821 = vmatprep.mubr.bf16.mxu0 0
          %822 = vmatmul.mubr.bf16.gmra.mrb[0].mxu0 %v564
          %v823 = vpop.f32.mrb[0].mxu0
          %v824 = vadd.f32 0.0, %v823
          %v825 = vpop.f32.mrb[0].mxu0
          %v826 = vadd.f32 0.0, %v825
          %v827 = vpop.f32.mrb[0].mxu0
          %v828 = vadd.f32 0.0, %v827
          %v829 = vpop.f32.mrb[0].mxu0
          %v830 = vadd.f32 0.0, %v829
          %831 = vmatprep.mubr.bf16.mxu0 0
          %832 = vmatmul.mubr.bf16.gmra.mrb[0].mxu0 %v567
          %v833 = vpop.f32.mrb[0].mxu0
          %v834 = vadd.f32 0.0, %v833
          %v835 = vpop.f32.mrb[0].mxu0
          %v836 = vadd.f32 0.0, %v835
          %v837 = vpop.f32.mrb[0].mxu0
          %v838 = vadd.f32 0.0, %v837
          %v839 = vpop.f32.mrb[0].mxu0
          %v840 = vadd.f32 0.0, %v839
          %841 = vdwg.mxu0
          %v842 = vpack.c.bf16 %v608, %v604
          %v843 = vpack.c.bf16 %v610, %v606
          %v844 = vpack.c.bf16 %v618, %v614
          %v845 = vpack.c.bf16 %v620, %v616
          %v846 = vpack.c.bf16 %v628, %v624
          %v847 = vpack.c.bf16 %v630, %v626
          %v848 = vpack.c.bf16 %v638, %v634
          %v849 = vpack.c.bf16 %v640, %v636
          %v850 = vpack.c.bf16 %v648, %v644
          %v851 = vpack.c.bf16 %v650, %v646
          %v852 = vpack.c.bf16 %v658, %v654
          %v853 = vpack.c.bf16 %v660, %v656
          %v854 = vpack.c.bf16 %v668, %v664
          %v855 = vpack.c.bf16 %v670, %v666
          %v856 = vpack.c.bf16 %v678, %v674
          %v857 = vpack.c.bf16 %v680, %v676
          %v858 = vpack.c.bf16 %v688, %v684
          %v859 = vpack.c.bf16 %v690, %v686
          %v860 = vpack.c.bf16 %v698, %v694
          %v861 = vpack.c.bf16 %v700, %v696
          %v862 = vpack.c.bf16 %v708, %v704
          %v863 = vpack.c.bf16 %v710, %v706
          %v864 = vpack.c.bf16 %v718, %v714
          %v865 = vpack.c.bf16 %v720, %v716
          %v866 = vpack.c.bf16 %v728, %v724
          %v867 = vpack.c.bf16 %v730, %v726
          %v868 = vpack.c.bf16 %v738, %v734
          %v869 = vpack.c.bf16 %v740, %v736
          %v870 = vpack.c.bf16 %v748, %v744
          %v871 = vpack.c.bf16 %v750, %v746
          %v872 = vpack.c.bf16 %v758, %v754
          %v873 = vpack.c.bf16 %v760, %v756
          %v874 = vpack.c.bf16 %v768, %v764
          %v875 = vpack.c.bf16 %v770, %v766
          %v876 = vpack.c.bf16 %v778, %v774
          %v877 = vpack.c.bf16 %v780, %v776
          %v878 = vpack.c.bf16 %v788, %v784
          %v879 = vpack.c.bf16 %v790, %v786
          %v880 = vpack.c.bf16 %v798, %v794
          %v881 = vpack.c.bf16 %v800, %v796
          %v882 = vpack.c.bf16 %v808, %v804
          %v883 = vpack.c.bf16 %v810, %v806
          %v884 = vpack.c.bf16 %v818, %v814
          %v885 = vpack.c.bf16 %v820, %v816
          %v886 = vpack.c.bf16 %v828, %v824
          %v887 = vpack.c.bf16 %v830, %v826
          %v888 = vpack.c.bf16 %v838, %v834
          %v889 = vpack.c.bf16 %v840, %v836
          %890 = vst [vmem:[#allocation2] sm:$0xff] %v842
          %891 = vst [vmem:[#allocation2 + $0x8] sm:$0xff] %v843
          %892 = vst [vmem:[#allocation2 + $0x10] sm:$0xff] %v844
          %893 = vst [vmem:[#allocation2 + $0x18] sm:$0xff] %v845
          %894 = vst [vmem:[#allocation2 + $0x20] sm:$0xff] %v846
          %895 = vst [vmem:[#allocation2 + $0x28] sm:$0xff] %v847
          %896 = vst [vmem:[#allocation2 + $0x30] sm:$0xff] %v848
          %897 = vst [vmem:[#allocation2 + $0x38] sm:$0xff] %v849
          %898 = vst [vmem:[#allocation2 + $0x40] sm:$0xff] %v850
          %899 = vst [vmem:[#allocation2 + $0x48] sm:$0xff] %v851
          %900 = vst [vmem:[#allocation2 + $0x50] sm:$0xff] %v852
          %901 = vst [vmem:[#allocation2 + $0x58] sm:$0xff] %v853
          %902 = vst [vmem:[#allocation2 + $0x60] sm:$0xff] %v854
          %903 = vst [vmem:[#allocation2 + $0x68] sm:$0xff] %v855
          %904 = vst [vmem:[#allocation2 + $0x70] sm:$0xff] %v856
          %905 = vst [vmem:[#allocation2 + $0x78] sm:$0xff] %v857
          %906 = vst [vmem:[#allocation2 + $0x80] sm:$0xff] %v858
          %907 = vst [vmem:[#allocation2 + $0x88] sm:$0xff] %v859
          %908 = vst [vmem:[#allocation2 + $0x90] sm:$0xff] %v860
          %909 = vst [vmem:[#allocation2 + $0x98] sm:$0xff] %v861
          %910 = vst [vmem:[#allocation2 + $0xa0] sm:$0xff] %v862
          %911 = vst [vmem:[#allocation2 + $0xa8] sm:$0xff] %v863
          %912 = vst [vmem:[#allocation2 + $0xb0] sm:$0xff] %v864
          %913 = vst [vmem:[#allocation2 + $0xb8] sm:$0xff] %v865
          %914 = vst [vmem:[#allocation2 + $0xc0] sm:$0xff] %v866
          %915 = vst [vmem:[#allocation2 + $0xc8] sm:$0xff] %v867
          %916 = vst [vmem:[#allocation2 + $0xd0] sm:$0xff] %v868
          %917 = vst [vmem:[#allocation2 + $0xd8] sm:$0xff] %v869
          %918 = vst [vmem:[#allocation2 + $0xe0] sm:$0xff] %v870
          %919 = vst [vmem:[#allocation2 + $0xe8] sm:$0xff] %v871
          %920 = vst [vmem:[#allocation2 + $0xf0] sm:$0xff] %v872
          %921 = vst [vmem:[#allocation2 + $0xf8] sm:$0xff] %v873
          %922 = vst [vmem:[#allocation2 + $0x100] sm:$0xff] %v874
          %923 = vst [vmem:[#allocation2 + $0x108] sm:$0xff] %v875
          %924 = vst [vmem:[#allocation2 + $0x110] sm:$0xff] %v876
          %925 = vst [vmem:[#allocation2 + $0x118] sm:$0xff] %v877
          %926 = vst [vmem:[#allocation2 + $0x120] sm:$0xff] %v878
          %927 = vst [vmem:[#allocation2 + $0x128] sm:$0xff] %v879
          %928 = vst [vmem:[#allocation2 + $0x130] sm:$0xff] %v880
          %929 = vst [vmem:[#allocation2 + $0x138] sm:$0xff] %v881
          %930 = vst [vmem:[#allocation2 + $0x140] sm:$0xff] %v882
          %931 = vst [vmem:[#allocation2 + $0x148] sm:$0xff] %v883
          %932 = vst [vmem:[#allocation2 + $0x150] sm:$0xff] %v884
          %933 = vst [vmem:[#allocation2 + $0x158] sm:$0xff] %v885
          %934 = vst [vmem:[#allocation2 + $0x160] sm:$0xff] %v886
          %935 = vst [vmem:[#allocation2 + $0x168] sm:$0xff] %v887
          %936 = vst [vmem:[#allocation2 + $0x170] sm:$0xff] %v888
          %937 = vst [vmem:[#allocation2 + $0x178] sm:$0xff] %v889
        $region52: #{tpu_custom_call.1} parent=47 // pred_fallthru
          _
        %s938 = smul.u32 %s26, 128
        %v939 = vld [vmem:[%s4] sm:$0xff]
        %s940 = sshra.s32 %s938, 7
        %s941 = sand.u32 %s938, 127
        %s942 = smul.addr %s940, 8
        %s943 = scalar_lea.vmem [#allocation2], %s942
        %v944 = vld [vmem:[%s943] sm:$0xff]
        %v945 = vld [vmem:[%s943 + $0x10] sm:$0xff]
        %v946 = vld [vmem:[#allocation2 + $0x80] sm:$0xff]
        %v947 = vld [vmem:[#allocation2 + $0x88] sm:$0xff]
        %v948 = vld [vmem:[#allocation2 + $0x90] sm:$0xff]
        %v949 = vld [vmem:[#allocation2 + $0x98] sm:$0xff]
        %v950 = vld [vmem:[#allocation2 + $0x100] sm:$0xff]
        %v951 = vld [vmem:[#allocation2 + $0x108] sm:$0xff]
        %v952 = vld [vmem:[#allocation2 + $0x110] sm:$0xff]
        %v953 = vld [vmem:[#allocation2 + $0x118] sm:$0xff]
        %954 = vxpose.xlu0.c.b16.start [1/8] %v946, 128
        %955 = vxpose.xlu0.c.b16.cont [2/8] %v948, 128
        %956 = vxpose.xlu0.c.b16.cont [3/8] 0, 128
        %957 = vxpose.xlu0.c.b16.cont [4/8] 0, 128
        %958 = vxpose.xlu0.c.b16.cont [5/8] 0, 128
        %959 = vxpose.xlu0.c.b16.cont [6/8] 0, 128
        %960 = vxpose.xlu0.c.b16.cont [7/8] 0, 128
        %961 = vxpose.xlu0.c.b16.end [8/8] 0, 128
        %v962 = vpop.trf.xlu0
        %v963 = vpop.trf.xlu0
        %v964 = vpop.trf.xlu0
        %v965 = vpop.trf.xlu0
        %v966 = vpop.trf.xlu0
        %v967 = vpop.trf.xlu0
        %v968 = vpop.trf.xlu0
        %v969 = vpop.trf.xlu0
        %970 = vxpose.xlu0.c.b16.start [1/8] %v947, 128
        %971 = vxpose.xlu0.c.b16.cont [2/8] %v949, 128
        %972 = vxpose.xlu0.c.b16.cont [3/8] 0, 128
        %973 = vxpose.xlu0.c.b16.cont [4/8] 0, 128
        %974 = vxpose.xlu0.c.b16.cont [5/8] 0, 128
        %975 = vxpose.xlu0.c.b16.cont [6/8] 0, 128
        %976 = vxpose.xlu0.c.b16.cont [7/8] 0, 128
        %977 = vxpose.xlu0.c.b16.end [8/8] 0, 128
        %v978 = vpop.trf.xlu0
        %v979 = vpop.trf.xlu0
        %v980 = vpop.trf.xlu0
        %v981 = vpop.trf.xlu0
        %v982 = vpop.trf.xlu0
        %v983 = vpop.trf.xlu0
        %v984 = vpop.trf.xlu0
        %v985 = vpop.trf.xlu0
        %vm986 = vcmask 261120
        %v988 = vsel %vm986, %v962, 0
        %v991 = vsel %vm986, %v963, 0
        %v994 = vsel %vm986, %v964, 0
        %v997 = vsel %vm986, %v965, 0
        %v1000 = vsel %vm986, %v966, 0
        %v1003 = vsel %vm986, %v967, 0
        %v1006 = vsel %vm986, %v968, 0
        %v1009 = vsel %vm986, %v969, 0
        %v1012 = vsel %vm986, %v978, 0
        %v1015 = vsel %vm986, %v979, 0
        %v1018 = vsel %vm986, %v980, 0
        %v1021 = vsel %vm986, %v981, 0
        %v1024 = vsel %vm986, %v982, 0
        %v1027 = vsel %vm986, %v983, 0
        %v1030 = vsel %vm986, %v984, 0
        %v1033 = vsel %vm986, %v985, 0
        %1035 = vmatprep.subr.bf16.mxu0 0
        %1036 = vmatpush1.bf16.msra.mxu0 %v944
        %1037 = vmatprep.subr.bf16.mxu0 0
        %1038 = vmatpush1.bf16.msra.mxu0 %v945
        %1039 = vmatprep.subr.bf16.mxu0 0
        %1040 = vmatpush1.bf16.msra.mxu0 0
        %1041 = vmatprep.subr.bf16.mxu0 0
        %1042 = vmatpush1.bf16.msra.mxu0 0
        %1043 = vmatprep.subr.bf16.mxu0 0
        %1044 = vmatpush1.bf16.msra.mxu0 0
        %1045 = vmatprep.subr.bf16.mxu0 0
        %1046 = vmatpush1.bf16.msra.mxu0 0
        %1047 = vmatprep.subr.bf16.mxu0 0
        %1048 = vmatpush1.bf16.msra.mxu0 0
        %1049 = vmatprep.subr.bf16.mxu0 0
        %1050 = vmatpush1.bf16.msra.mxu0 0
        %1051 = vmatprep.subr.bf16.mxu0 0
        %1052 = vmatpush1.bf16.msra.mxu0 0
        %1053 = vmatprep.subr.bf16.mxu0 0
        %1054 = vmatpush1.bf16.msra.mxu0 0
        %1055 = vmatprep.subr.bf16.mxu0 0
        %1056 = vmatpush1.bf16.msra.mxu0 0
        %1057 = vmatprep.subr.bf16.mxu0 0
        %1058 = vmatpush1.bf16.msra.mxu0 0
        %1059 = vmatprep.subr.bf16.mxu0 0
        %1060 = vmatpush1.bf16.msra.mxu0 0
        %1061 = vmatprep.subr.bf16.mxu0 0
        %1062 = vmatpush1.bf16.msra.mxu0 0
        %1063 = vmatprep.subr.bf16.mxu0 0
        %1064 = vmatpush1.bf16.msra.mxu0 0
        %1065 = vmatprep.subr.bf16.mxu0 0
        %1066 = vmatpush1.bf16.msra.mxu0 0
        %1067 = vmatprep.mubr.bf16.mxu0 0
        %1068 = vmatmul.mubr.bf16.gmra.mrb[0].mxu0 %v988
        %v1069 = vpop.f32.mrb[0].mxu0
        %v1070 = vadd.f32 0.0, %v1069
        %v1071 = vpop.f32.mrb[0].mxu0
        %v1072 = vpop.f32.mrb[0].mxu0
        %v1073 = vadd.f32 0.0, %v1072
        %v1074 = vpop.f32.mrb[0].mxu0
        %1075 = vmatprep.mubr.bf16.mxu0 0
        %1076 = vmatmul.mubr.bf16.gmra.mrb[0].mxu0 %v991
        %v1077 = vpop.f32.mrb[0].mxu0
        %v1078 = vadd.f32 0.0, %v1077
        %v1079 = vpop.f32.mrb[0].mxu0
        %v1080 = vpop.f32.mrb[0].mxu0
        %v1081 = vadd.f32 0.0, %v1080
        %v1082 = vpop.f32.mrb[0].mxu0
        %1083 = vmatprep.mubr.bf16.mxu0 0
        %1084 = vmatmul.mubr.bf16.gmra.mrb[0].mxu0 %v994
        %v1085 = vpop.f32.mrb[0].mxu0
        %v1086 = vadd.f32 0.0, %v1085
        %v1087 = vpop.f32.mrb[0].mxu0
        %v1088 = vpop.f32.mrb[0].mxu0
        %v1089 = vadd.f32 0.0, %v1088
        %v1090 = vpop.f32.mrb[0].mxu0
        %1091 = vmatprep.mubr.bf16.mxu0 0
        %1092 = vmatmul.mubr.bf16.gmra.mrb[0].mxu0 %v997
        %v1093 = vpop.f32.mrb[0].mxu0
        %v1094 = vadd.f32 0.0, %v1093
        %v1095 = vpop.f32.mrb[0].mxu0
        %v1096 = vpop.f32.mrb[0].mxu0
        %v1097 = vadd.f32 0.0, %v1096
        %v1098 = vpop.f32.mrb[0].mxu0
        %1099 = vmatprep.mubr.bf16.mxu0 0
        %1100 = vmatmul.mubr.bf16.gmra.mrb[0].mxu0 %v1000
        %v1101 = vpop.f32.mrb[0].mxu0
        %v1102 = vadd.f32 0.0, %v1101
        %v1103 = vpop.f32.mrb[0].mxu0
        %v1104 = vpop.f32.mrb[0].mxu0
        %v1105 = vadd.f32 0.0, %v1104
        %v1106 = vpop.f32.mrb[0].mxu0
        %1107 = vmatprep.mubr.bf16.mxu0 0
        %1108 = vmatmul.mubr.bf16.gmra.mrb[0].mxu0 %v1003
        %v1109 = vpop.f32.mrb[0].mxu0
        %v1110 = vadd.f32 0.0, %v1109
        %v1111 = vpop.f32.mrb[0].mxu0
        %v1112 = vpop.f32.mrb[0].mxu0
        %v1113 = vadd.f32 0.0, %v1112
        %v1114 = vpop.f32.mrb[0].mxu0
        %1115 = vmatprep.mubr.bf16.mxu0 0
        %1116 = vmatmul.mubr.bf16.gmra.mrb[0].mxu0 %v1006
        %v1117 = vpop.f32.mrb[0].mxu0
        %v1118 = vadd.f32 0.0, %v1117
        %v1119 = vpop.f32.mrb[0].mxu0
        %v1120 = vpop.f32.mrb[0].mxu0
        %v1121 = vadd.f32 0.0, %v1120
        %v1122 = vpop.f32.mrb[0].mxu0
        %1123 = vmatprep.mubr.bf16.mxu0 0
        %1124 = vmatmul.mubr.bf16.gmra.mrb[0].mxu0 %v1009
        %v1125 = vpop.f32.mrb[0].mxu0
        %v1126 = vadd.f32 0.0, %v1125
        %v1127 = vpop.f32.mrb[0].mxu0
        %v1128 = vpop.f32.mrb[0].mxu0
        %v1129 = vadd.f32 0.0, %v1128
        %v1130 = vpop.f32.mrb[0].mxu0
        %1131 = vmatprep.mubr.bf16.mxu0 0
        %1132 = vmatmul.mubr.bf16.gmra.mrb[0].mxu0 %v1012
        %v1133 = vpop.f32.mrb[0].mxu0
        %v1134 = vadd.f32 0.0, %v1133
        %v1135 = vpop.f32.mrb[0].mxu0
        %v1136 = vpop.f32.mrb[0].mxu0
        %v1137 = vadd.f32 0.0, %v1136
        %v1138 = vpop.f32.mrb[0].mxu0
        %1139 = vmatprep.mubr.bf16.mxu0 0
        %1140 = vmatmul.mubr.bf16.gmra.mrb[0].mxu0 %v1015
        %v1141 = vpop.f32.mrb[0].mxu0
        %v1142 = vadd.f32 0.0, %v1141
        %v1143 = vpop.f32.mrb[0].mxu0
        %v1144 = vpop.f32.mrb[0].mxu0
        %v1145 = vadd.f32 0.0, %v1144
        %v1146 = vpop.f32.mrb[0].mxu0
        %1147 = vmatprep.mubr.bf16.mxu0 0
        %1148 = vmatmul.mubr.bf16.gmra.mrb[0].mxu0 %v1018
        %v1149 = vpop.f32.mrb[0].mxu0
        %v1150 = vadd.f32 0.0, %v1149
        %v1151 = vpop.f32.mrb[0].mxu0
        %v1152 = vpop.f32.mrb[0].mxu0
        %v1153 = vadd.f32 0.0, %v1152
        %v1154 = vpop.f32.mrb[0].mxu0
        %1155 = vmatprep.mubr.bf16.mxu0 0
        %1156 = vmatmul.mubr.bf16.gmra.mrb[0].mxu0 %v1021
        %v1157 = vpop.f32.mrb[0].mxu0
        %v1158 = vadd.f32 0.0, %v1157
        %v1159 = vpop.f32.mrb[0].mxu0
        %v1160 = vpop.f32.mrb[0].mxu0
        %v1161 = vadd.f32 0.0, %v1160
        %v1162 = vpop.f32.mrb[0].mxu0
        %1163 = vmatprep.mubr.bf16.mxu0 0
        %1164 = vmatmul.mubr.bf16.gmra.mrb[0].mxu0 %v1024
        %v1165 = vpop.f32.mrb[0].mxu0
        %v1166 = vadd.f32 0.0, %v1165
        %v1167 = vpop.f32.mrb[0].mxu0
        %v1168 = vpop.f32.mrb[0].mxu0
        %v1169 = vadd.f32 0.0, %v1168
        %v1170 = vpop.f32.mrb[0].mxu0
        %1171 = vmatprep.mubr.bf16.mxu0 0
        %1172 = vmatmul.mubr.bf16.gmra.mrb[0].mxu0 %v1027
        %v1173 = vpop.f32.mrb[0].mxu0
        %v1174 = vadd.f32 0.0, %v1173
        %v1175 = vpop.f32.mrb[0].mxu0
        %v1176 = vpop.f32.mrb[0].mxu0
        %v1177 = vadd.f32 0.0, %v1176
        %v1178 = vpop.f32.mrb[0].mxu0
        %1179 = vmatprep.mubr.bf16.mxu0 0
        %1180 = vmatmul.mubr.bf16.gmra.mrb[0].mxu0 %v1030
        %v1181 = vpop.f32.mrb[0].mxu0
        %v1182 = vadd.f32 0.0, %v1181
        %v1183 = vpop.f32.mrb[0].mxu0
        %v1184 = vpop.f32.mrb[0].mxu0
        %v1185 = vadd.f32 0.0, %v1184
        %v1186 = vpop.f32.mrb[0].mxu0
        %1187 = vmatprep.mubr.bf16.mxu0 0
        %1188 = vmatmul.mubr.bf16.gmra.mrb[0].mxu0 %v1033
        %v1189 = vpop.f32.mrb[0].mxu0
        %v1190 = vadd.f32 0.0, %v1189
        %v1191 = vpop.f32.mrb[0].mxu0
        %v1192 = vpop.f32.mrb[0].mxu0
        %v1193 = vadd.f32 0.0, %v1192
        %v1194 = vpop.f32.mrb[0].mxu0
        %1195 = vdwg.mxu0
        %v1196 = vld [vmem:[%s2] sm:$0xf]
        %v1197 = vld [vmem:[%s2 + $0x4] sm:$0xf]
        %v1198 = vld [vmem:[%s2 + $0x8] sm:$0xf]
        %v1199 = vld [vmem:[%s2 + $0xc] sm:$0xf]
        %1201 = vset.pattern.permute.xlu0 0
        %1202 = vperm.xlu0 %1201, %v939
        %v1203 = vpop.permute.xlu0 %1202
        %v1209 = vunpack.c.l.b16 %v1196
        %v1210 = vunpack.c.l.b16 %v1197
        %v1211 = vunpack.c.l.b16 %v1198
        %v1212 = vunpack.c.l.b16 %v1199
        %v1213 = vpack.c.b16 %v1210, %v1209
        %v1214 = vpack.c.b16 %v1212, %v1211
        %1217 = vxpose.xlu0.c.b16.start [1/8] %v1213, 128
        %1218 = vxpose.xlu0.c.b16.cont [2/8] %v1214, 128
        %1219 = vxpose.xlu0.c.b16.cont [3/8] 0, 128
        %1220 = vxpose.xlu0.c.b16.cont [4/8] 0, 128
        %1221 = vxpose.xlu0.c.b16.cont [5/8] 0, 128
        %1222 = vxpose.xlu0.c.b16.cont [6/8] 0, 128
        %1223 = vxpose.xlu0.c.b16.cont [7/8] 0, 128
        %1224 = vxpose.xlu0.c.b16.end [8/8] 0, 128
        %v1225 = vpop.trf.xlu0
        %v1226 = vpop.trf.xlu0
        %v1227 = vpop.trf.xlu0
        %v1228 = vpop.trf.xlu0
        %v1229 = vpop.trf.xlu0
        %v1230 = vpop.trf.xlu0
        %v1231 = vpop.trf.xlu0
        %v1232 = vpop.trf.xlu0
        %v1234 = vsel %vm986, %v1225, 0
        %1236 = vmatprep.subr.bf16.mxu0 0
        %1237 = vmatpush1.bf16.msra.mxu0 %v944
        %1238 = vmatprep.subr.bf16.mxu0 0
        %1239 = vmatpush1.bf16.msra.mxu0 %v945
        %1240 = vmatprep.subr.bf16.mxu0 0
        %1241 = vmatpush1.bf16.msra.mxu0 0
        %1242 = vmatprep.subr.bf16.mxu0 0
        %1243 = vmatpush1.bf16.msra.mxu0 0
        %1244 = vmatprep.subr.bf16.mxu0 0
        %1245 = vmatpush1.bf16.msra.mxu0 0
        %1246 = vmatprep.subr.bf16.mxu0 0
        %1247 = vmatpush1.bf16.msra.mxu0 0
        %1248 = vmatprep.subr.bf16.mxu0 0
        %1249 = vmatpush1.bf16.msra.mxu0 0
        %1250 = vmatprep.subr.bf16.mxu0 0
        %1251 = vmatpush1.bf16.msra.mxu0 0
        %1252 = vmatprep.subr.bf16.mxu0 0
        %1253 = vmatpush1.bf16.msra.mxu0 0
        %1254 = vmatprep.subr.bf16.mxu0 0
        %1255 = vmatpush1.bf16.msra.mxu0 0
        %1256 = vmatprep.subr.bf16.mxu0 0
        %1257 = vmatpush1.bf16.msra.mxu0 0
        %1258 = vmatprep.subr.bf16.mxu0 0
        %1259 = vmatpush1.bf16.msra.mxu0 0
        %1260 = vmatprep.subr.bf16.mxu0 0
        %1261 = vmatpush1.bf16.msra.mxu0 0
        %1262 = vmatprep.subr.bf16.mxu0 0
        %1263 = vmatpush1.bf16.msra.mxu0 0
        %1264 = vmatprep.subr.bf16.mxu0 0
        %1265 = vmatpush1.bf16.msra.mxu0 0
        %1266 = vmatprep.subr.bf16.mxu0 0
        %1267 = vmatpush1.bf16.msra.mxu0 0
        %1268 = vmatprep.mubr.bf16.mxu0 0
        %1269 = vmatmul.mubr.bf16.gmra.mrb[0].mxu0 %v1234
        %v1270 = vpop.f32.mrb[0].mxu0
        %v1271 = vadd.f32 %v1203, %v1270
        %v1272 = vpop.f32.mrb[0].mxu0
        %v1273 = vpop.f32.mrb[0].mxu0
        %v1274 = vpop.f32.mrb[0].mxu0
        %1275 = vdwg.mxu0
        %v1276 = vmax.f32 %v1070, %v1086
        %v1277 = vmax.f32 %v1073, %v1089
        %v1278 = vmax.f32 %v1078, %v1094
        %v1279 = vmax.f32 %v1081, %v1097
        %v1280 = vmax.f32 %v1276, %v1102
        %v1281 = vmax.f32 %v1277, %v1105
        %v1282 = vmax.f32 %v1278, %v1110
        %v1283 = vmax.f32 %v1279, %v1113
        %v1284 = vmax.f32 %v1280, %v1118
        %v1285 = vmax.f32 %v1281, %v1121
        %v1286 = vmax.f32 %v1282, %v1126
        %v1287 = vmax.f32 %v1283, %v1129
        %v1288 = vmax.f32 %v1284, %v1134
        %v1289 = vmax.f32 %v1285, %v1137
        %v1290 = vmax.f32 %v1286, %v1142
        %v1291 = vmax.f32 %v1287, %v1145
        %v1292 = vmax.f32 %v1288, %v1150
        %v1293 = vmax.f32 %v1289, %v1153
        %v1294 = vmax.f32 %v1290, %v1158
        %v1295 = vmax.f32 %v1291, %v1161
        %v1296 = vmax.f32 %v1292, %v1166
        %v1297 = vmax.f32 %v1293, %v1169
        %v1298 = vmax.f32 %v1294, %v1174
        %v1299 = vmax.f32 %v1295, %v1177
        %v1300 = vmax.f32 %v1296, %v1182
        %v1301 = vmax.f32 %v1297, %v1185
        %v1302 = vmax.f32 %v1298, %v1190
        %v1303 = vmax.f32 %v1299, %v1193
        %v1304 = vmax.f32 %v1300, %v1301
        %v1305 = vmax.f32 %v1302, %v1303
        %v1306 = vmax.f32 %v1304, %v1305
        %v1307 = vrot.slane %v1306, 4
        %v1308 = vmax.f32 %v1306, %v1307
        %v1309 = vrot.slane %v1308, 2
        %v1310 = vmax.f32 %v1308, %v1309
        %v1311 = vrot.slane %v1310, 1
        %v1312 = vmax.f32 %v1310, %v1311
        %v1313 = vrot.slane %v1271, 4
        %v1314 = vmax.f32 %v1271, %v1313
        %v1315 = vrot.slane %v1314, 2
        %v1316 = vmax.f32 %v1314, %v1315
        %v1317 = vrot.slane %v1316, 1
        %v1318 = vmax.f32 %v1316, %v1317
        %v1319 = vmax.f32 %v1312, %v1318
        %v1320 = vsub.f32 %v1070, %v1319
        %v1321 = vsub.f32 %v1073, %v1319
        %v1322 = vsub.f32 %v1078, %v1319
        %v1323 = vsub.f32 %v1081, %v1319
        %v1324 = vsub.f32 %v1086, %v1319
        %v1325 = vsub.f32 %v1089, %v1319
        %v1326 = vsub.f32 %v1094, %v1319
        %v1327 = vsub.f32 %v1097, %v1319
        %v1328 = vsub.f32 %v1102, %v1319
        %v1329 = vsub.f32 %v1105, %v1319
        %v1330 = vsub.f32 %v1110, %v1319
        %v1331 = vsub.f32 %v1113, %v1319
        %v1332 = vsub.f32 %v1118, %v1319
        %v1333 = vsub.f32 %v1121, %v1319
        %v1334 = vsub.f32 %v1126, %v1319
        %v1335 = vsub.f32 %v1129, %v1319
        %v1336 = vsub.f32 %v1134, %v1319
        %v1337 = vsub.f32 %v1137, %v1319
        %v1338 = vsub.f32 %v1142, %v1319
        %v1339 = vsub.f32 %v1145, %v1319
        %v1340 = vsub.f32 %v1150, %v1319
        %v1341 = vsub.f32 %v1153, %v1319
        %v1342 = vsub.f32 %v1158, %v1319
        %v1343 = vsub.f32 %v1161, %v1319
        %v1344 = vsub.f32 %v1166, %v1319
        %v1345 = vsub.f32 %v1169, %v1319
        %v1346 = vsub.f32 %v1174, %v1319
        %v1347 = vsub.f32 %v1177, %v1319
        %v1348 = vsub.f32 %v1182, %v1319
        %v1349 = vsub.f32 %v1185, %v1319
        %v1350 = vsub.f32 %v1190, %v1319
        %v1351 = vsub.f32 %v1193, %v1319
        %v1352 = vmul.f32 %v1320, 1.442695
        %v1353 = vpow.pop %v1352
        %v1354 = vmul.f32 %v1321, 1.442695
        %v1355 = vpow.pop %v1354
        %v1356 = vmul.f32 %v1322, 1.442695
        %v1357 = vpow.pop %v1356
        %v1358 = vmul.f32 %v1323, 1.442695
        %v1359 = vpow.pop %v1358
        %v1360 = vmul.f32 %v1324, 1.442695
        %v1361 = vpow.pop %v1360
        %v1362 = vmul.f32 %v1325, 1.442695
        %v1363 = vpow.pop %v1362
        %v1364 = vmul.f32 %v1326, 1.442695
        %v1365 = vpow.pop %v1364
        %v1366 = vmul.f32 %v1327, 1.442695
        %v1367 = vpow.pop %v1366
        %v1368 = vmul.f32 %v1328, 1.442695
        %v1369 = vpow.pop %v1368
        %v1370 = vmul.f32 %v1329, 1.442695
        %v1371 = vpow.pop %v1370
        %v1372 = vmul.f32 %v1330, 1.442695
        %v1373 = vpow.pop %v1372
        %v1374 = vmul.f32 %v1331, 1.442695
        %v1375 = vpow.pop %v1374
        %v1376 = vmul.f32 %v1332, 1.442695
        %v1377 = vpow.pop %v1376
        %v1378 = vmul.f32 %v1333, 1.442695
        %v1379 = vpow.pop %v1378
        %v1380 = vmul.f32 %v1334, 1.442695
        %v1381 = vpow.pop %v1380
        %v1382 = vmul.f32 %v1335, 1.442695
        %v1383 = vpow.pop %v1382
        %v1384 = vmul.f32 %v1336, 1.442695
        %v1385 = vpow.pop %v1384
        %v1386 = vmul.f32 %v1337, 1.442695
        %v1387 = vpow.pop %v1386
        %v1388 = vmul.f32 %v1338, 1.442695
        %v1389 = vpow.pop %v1388
        %v1390 = vmul.f32 %v1339, 1.442695
        %v1391 = vpow.pop %v1390
        %v1392 = vmul.f32 %v1340, 1.442695
        %v1393 = vpow.pop %v1392
        %v1394 = vmul.f32 %v1341, 1.442695
        %v1395 = vpow.pop %v1394
        %v1396 = vmul.f32 %v1342, 1.442695
        %v1397 = vpow.pop %v1396
        %v1398 = vmul.f32 %v1343, 1.442695
        %v1399 = vpow.pop %v1398
        %v1400 = vmul.f32 %v1344, 1.442695
        %v1401 = vpow.pop %v1400
        %v1402 = vmul.f32 %v1345, 1.442695
        %v1403 = vpow.pop %v1402
        %v1404 = vmul.f32 %v1346, 1.442695
        %v1405 = vpow.pop %v1404
        %v1406 = vmul.f32 %v1347, 1.442695
        %v1407 = vpow.pop %v1406
        %v1408 = vmul.f32 %v1348, 1.442695
        %v1409 = vpow.pop %v1408
        %v1410 = vmul.f32 %v1349, 1.442695
        %v1411 = vpow.pop %v1410
        %v1412 = vmul.f32 %v1350, 1.442695
        %v1413 = vpow.pop %v1412
        %v1414 = vmul.f32 %v1351, 1.442695
        %v1415 = vpow.pop %v1414
        %v1416 = vsub.f32 %v1271, %v1319
        %v1417 = vmul.f32 %v1416, 1.442695
        %v1418 = vpow.pop %v1417
        %v1419 = vadd.f32 %v1353, %v1355
        %v1420 = vadd.f32 %v1419, %v1357
        %v1421 = vadd.f32 %v1420, %v1359
        %v1422 = vadd.f32 %v1421, %v1361
        %v1423 = vadd.f32 %v1422, %v1363
        %v1424 = vadd.f32 %v1423, %v1365
        %v1425 = vadd.f32 %v1424, %v1367
        %v1426 = vadd.f32 %v1425, %v1369
        %v1427 = vadd.f32 %v1426, %v1371
        %v1428 = vadd.f32 %v1427, %v1373
        %v1429 = vadd.f32 %v1428, %v1375
        %v1430 = vadd.f32 %v1429, %v1377
        %v1431 = vadd.f32 %v1430, %v1379
        %v1432 = vadd.f32 %v1431, %v1381
        %v1433 = vadd.f32 %v1432, %v1383
        %v1434 = vadd.f32 %v1433, %v1385
        %v1435 = vadd.f32 %v1434, %v1387
        %v1436 = vadd.f32 %v1435, %v1389
        %v1437 = vadd.f32 %v1436, %v1391
        %v1438 = vadd.f32 %v1437, %v1393
        %v1439 = vadd.f32 %v1438, %v1395
        %v1440 = vadd.f32 %v1439, %v1397
        %v1441 = vadd.f32 %v1440, %v1399
        %v1442 = vadd.f32 %v1441, %v1401
        %v1443 = vadd.f32 %v1442, %v1403
        %v1444 = vadd.f32 %v1443, %v1405
        %v1445 = vadd.f32 %v1444, %v1407
        %v1446 = vadd.f32 %v1445, %v1409
        %v1447 = vadd.f32 %v1446, %v1411
        %v1448 = vadd.f32 %v1447, %v1413
        %v1449 = vadd.f32 %v1448, %v1415
        %v1450 = vrot.slane %v1449, 4
        %v1451 = vadd.f32 %v1449, %v1450
        %v1452 = vrot.slane %v1451, 2
        %v1453 = vadd.f32 %v1451, %v1452
        %v1454 = vrot.slane %v1453, 1
        %v1455 = vadd.f32 %v1453, %v1454
        %v1456 = vrot.slane %v1418, 4
        %v1457 = vadd.f32 %v1418, %v1456
        %v1458 = vrot.slane %v1457, 2
        %v1459 = vadd.f32 %v1457, %v1458
        %v1460 = vrot.slane %v1459, 1
        %v1461 = vadd.f32 %v1459, %v1460
        %v1462 = vadd.f32 %v1455, %v1461
        %v1463 = vpack.c.bf16 %v1355, %v1353
        %v1464 = vpack.c.bf16 %v1359, %v1357
        %v1465 = vpack.c.bf16 %v1363, %v1361
        %v1466 = vpack.c.bf16 %v1367, %v1365
        %v1467 = vpack.c.bf16 %v1371, %v1369
        %v1468 = vpack.c.bf16 %v1375, %v1373
        %v1469 = vpack.c.bf16 %v1379, %v1377
        %v1470 = vpack.c.bf16 %v1383, %v1381
        %v1471 = vpack.c.bf16 %v1387, %v1385
        %v1472 = vpack.c.bf16 %v1391, %v1389
        %v1473 = vpack.c.bf16 %v1395, %v1393
        %v1474 = vpack.c.bf16 %v1399, %v1397
        %v1475 = vpack.c.bf16 %v1403, %v1401
        %v1476 = vpack.c.bf16 %v1407, %v1405
        %v1477 = vpack.c.bf16 %v1411, %v1409
        %v1478 = vpack.c.bf16 %v1415, %v1413
        %v1479 = vld [vmem:[%s3] sm:$0xf]
        %v1480 = vld [vmem:[%s3 + $0x4] sm:$0xf]
        %v1481 = vld [vmem:[%s3 + $0x8] sm:$0xf]
        %v1482 = vld [vmem:[%s3 + $0xc] sm:$0xf]
        %v1483 = vpack.c.bf16 %v1418, %v1418
        %v1488 = vunpack.c.l.b16 %v1479
        %v1489 = vunpack.c.l.b16 %v1480
        %v1490 = vunpack.c.l.b16 %v1481
        %v1491 = vunpack.c.l.b16 %v1482
        %v1492 = vpack.c.b16 %v1489, %v1488
        %v1493 = vpack.c.b16 %v1491, %v1490
        %vm1494 = vcmask 64512
        %v1496 = vsel %vm1494, %v1492, 0
        %v1499 = vsel %vm1494, %v1493, 0
        %vm1501 = vcmask 1043456
        %v1503 = vsel %vm1501, %v1483, 0
        %1505 = vmatprep.subr.bf16.mxu0 0
        %1506 = vmatpush1.bf16.msra.mxu0 %v1503
        %1507 = vmatprep.subr.bf16.mxu0 0
        %1508 = vmatpush1.bf16.msra.mxu0 0
        %1509 = vmatprep.subr.bf16.mxu0 0
        %1510 = vmatpush1.bf16.msra.mxu0 0
        %1511 = vmatprep.subr.bf16.mxu0 0
        %1512 = vmatpush1.bf16.msra.mxu0 0
        %1513 = vmatprep.subr.bf16.mxu0 0
        %1514 = vmatpush1.bf16.msra.mxu0 0
        %1515 = vmatprep.subr.bf16.mxu0 0
        %1516 = vmatpush1.bf16.msra.mxu0 0
        %1517 = vmatprep.subr.bf16.mxu0 0
        %1518 = vmatpush1.bf16.msra.mxu0 0
        %1519 = vmatprep.subr.bf16.mxu0 0
        %1520 = vmatpush1.bf16.msra.mxu0 0
        %1521 = vmatprep.subr.bf16.mxu0 0
        %1522 = vmatpush1.bf16.msra.mxu0 0
        %1523 = vmatprep.subr.bf16.mxu0 0
        %1524 = vmatpush1.bf16.msra.mxu0 0
        %1525 = vmatprep.subr.bf16.mxu0 0
        %1526 = vmatpush1.bf16.msra.mxu0 0
        %1527 = vmatprep.subr.bf16.mxu0 0
        %1528 = vmatpush1.bf16.msra.mxu0 0
        %1529 = vmatprep.subr.bf16.mxu0 0
        %1530 = vmatpush1.bf16.msra.mxu0 0
        %1531 = vmatprep.subr.bf16.mxu0 0
        %1532 = vmatpush1.bf16.msra.mxu0 0
        %1533 = vmatprep.subr.bf16.mxu0 0
        %1534 = vmatpush1.bf16.msra.mxu0 0
        %1535 = vmatprep.subr.bf16.mxu0 0
        %1536 = vmatpush1.bf16.msra.mxu0 0
        %1537 = vmatprep.mubr.bf16.mxu0 0
        %1538 = vmatmul.mubr.bf16.gmra.mrb[0].mxu0 %v1496
        %v1539 = vpop.f32.mrb[0].mxu0
        %v1540 = vadd.f32 0.0, %v1539
        %v1541 = vpop.f32.mrb[0].mxu0
        %v1542 = vpop.f32.mrb[0].mxu0
        %v1543 = vadd.f32 0.0, %v1542
        %v1544 = vpop.f32.mrb[0].mxu0
        %1545 = vmatprep.mubr.bf16.mxu0 0
        %1546 = vmatmul.mubr.bf16.gmra.mrb[0].mxu0 %v1499
        %v1547 = vpop.f32.mrb[0].mxu0
        %v1548 = vadd.f32 0.0, %v1547
        %v1549 = vpop.f32.mrb[0].mxu0
        %v1550 = vpop.f32.mrb[0].mxu0
        %v1551 = vadd.f32 0.0, %v1550
        %v1552 = vpop.f32.mrb[0].mxu0
        %1553 = vdwg.mxu0
        %1554 = vmatprep.subr.bf16.mxu0 0
        %1555 = vmatpush1.bf16.msra.mxu0 %v1463
        %1556 = vmatprep.subr.bf16.mxu0 0
        %1557 = vmatpush1.bf16.msra.mxu0 %v1464
        %1558 = vmatprep.subr.bf16.mxu0 0
        %1559 = vmatpush1.bf16.msra.mxu0 %v1465
        %1560 = vmatprep.subr.bf16.mxu0 0
        %1561 = vmatpush1.bf16.msra.mxu0 %v1466
        %1562 = vmatprep.subr.bf16.mxu0 0
        %1563 = vmatpush1.bf16.msra.mxu0 %v1467
        %1564 = vmatprep.subr.bf16.mxu0 0
        %1565 = vmatpush1.bf16.msra.mxu0 %v1468
        %1566 = vmatprep.subr.bf16.mxu0 0
        %1567 = vmatpush1.bf16.msra.mxu0 %v1469
        %1568 = vmatprep.subr.bf16.mxu0 0
        %1569 = vmatpush1.bf16.msra.mxu0 %v1470
        %1570 = vmatprep.subr.bf16.mxu0 0
        %1571 = vmatpush1.bf16.msra.mxu0 %v1471
        %1572 = vmatprep.subr.bf16.mxu0 0
        %1573 = vmatpush1.bf16.msra.mxu0 %v1472
        %1574 = vmatprep.subr.bf16.mxu0 0
        %1575 = vmatpush1.bf16.msra.mxu0 %v1473
        %1576 = vmatprep.subr.bf16.mxu0 0
        %1577 = vmatpush1.bf16.msra.mxu0 %v1474
        %1578 = vmatprep.subr.bf16.mxu0 0
        %1579 = vmatpush1.bf16.msra.mxu0 %v1475
        %1580 = vmatprep.subr.bf16.mxu0 0
        %1581 = vmatpush1.bf16.msra.mxu0 %v1476
        %1582 = vmatprep.subr.bf16.mxu0 0
        %1583 = vmatpush1.bf16.msra.mxu0 %v1477
        %1584 = vmatprep.subr.bf16.mxu0 0
        %1585 = vmatpush1.bf16.msra.mxu0 %v1478
        %1586 = vmatprep.mubr.bf16.mxu0 %v951
        %1587 = vmatmul.mubr.bf16.gmra.mrb[0].mxu0 %v950
        %v1588 = vpop.f32.mrb[0].mxu0
        %v1589 = vadd.f32 %v1540, %v1588
        %v1590 = vpop.f32.mrb[0].mxu0
        %v1591 = vpop.f32.mrb[0].mxu0
        %v1592 = vadd.f32 %v1543, %v1591
        %v1593 = vpop.f32.mrb[0].mxu0
        %1594 = vmatprep.mubr.bf16.mxu0 %v953
        %1595 = vmatmul.mubr.bf16.gmra.mrb[0].mxu0 %v952
        %v1596 = vpop.f32.mrb[0].mxu0
        %v1597 = vadd.f32 %v1548, %v1596
        %v1598 = vpop.f32.mrb[0].mxu0
        %v1599 = vpop.f32.mrb[0].mxu0
        %v1600 = vadd.f32 %v1551, %v1599
        %v1601 = vpop.f32.mrb[0].mxu0
        %1602 = vdwg.mxu0
        %v1603 = vrcp.pop %v1462
        %v1604 = vmul.f32 %v1589, %v1603
        %v1605 = vmul.f32 %v1592, %v1603
        %v1606 = vmul.f32 %v1597, %v1603
        %v1607 = vmul.f32 %v1600, %v1603
        %v1608 = vpack.c.bf16 %v1605, %v1604
        %v1609 = vpack.c.bf16 %v1607, %v1606
        %1610 = vst [vmem:[#allocation3] sm:$0xff] %v1608
        %1611 = vst [vmem:[#allocation3 + $0x8] sm:$0xff] %v1609
        %v1612 = vld [vmem:[%s943 + $0x20] sm:$0xff]
        %v1613 = vld [vmem:[%s943 + $0x30] sm:$0xff]
        %v1614 = vld [vmem:[#allocation2 + $0xa0] sm:$0xff]
        %v1615 = vld [vmem:[#allocation2 + $0xa8] sm:$0xff]
        %v1616 = vld [vmem:[#allocation2 + $0xb0] sm:$0xff]
        %v1617 = vld [vmem:[#allocation2 + $0xb8] sm:$0xff]
        %v1618 = vld [vmem:[#allocation2 + $0x120] sm:$0xff]
        %v1619 = vld [vmem:[#allocation2 + $0x128] sm:$0xff]
        %v1620 = vld [vmem:[#allocation2 + $0x130] sm:$0xff]
        %v1621 = vld [vmem:[#allocation2 + $0x138] sm:$0xff]
        %1622 = vxpose.xlu0.c.b16.start [1/8] %v1614, 128
        %1623 = vxpose.xlu0.c.b16.cont [2/8] %v1616, 128
        %1624 = vxpose.xlu0.c.b16.cont [3/8] 0, 128
        %1625 = vxpose.xlu0.c.b16.cont [4/8] 0, 128
        %1626 = vxpose.xlu0.c.b16.cont [5/8] 0, 128
        %1627 = vxpose.xlu0.c.b16.cont [6/8] 0, 128
        %1628 = vxpose.xlu0.c.b16.cont [7/8] 0, 128
        %1629 = vxpose.xlu0.c.b16.end [8/8] 0, 128
        %v1630 = vpop.trf.xlu0
        %v1631 = vpop.trf.xlu0
        %v1632 = vpop.trf.xlu0
        %v1633 = vpop.trf.xlu0
        %v1634 = vpop.trf.xlu0
        %v1635 = vpop.trf.xlu0
        %v1636 = vpop.trf.xlu0
        %v1637 = vpop.trf.xlu0
        %1638 = vxpose.xlu0.c.b16.start [1/8] %v1615, 128
        %1639 = vxpose.xlu0.c.b16.cont [2/8] %v1617, 128
        %1640 = vxpose.xlu0.c.b16.cont [3/8] 0, 128
        %1641 = vxpose.xlu0.c.b16.cont [4/8] 0, 128
        %1642 = vxpose.xlu0.c.b16.cont [5/8] 0, 128
        %1643 = vxpose.xlu0.c.b16.cont [6/8] 0, 128
        %1644 = vxpose.xlu0.c.b16.cont [7/8] 0, 128
        %1645 = vxpose.xlu0.c.b16.end [8/8] 0, 128
        %v1646 = vpop.trf.xlu0
        %v1647 = vpop.trf.xlu0
        %v1648 = vpop.trf.xlu0
        %v1649 = vpop.trf.xlu0
        %v1650 = vpop.trf.xlu0
        %v1651 = vpop.trf.xlu0
        %v1652 = vpop.trf.xlu0
        %v1653 = vpop.trf.xlu0
        %v1655 = vsel %vm986, %v1630, 0
        %v1658 = vsel %vm986, %v1631, 0
        %v1661 = vsel %vm986, %v1632, 0
        %v1664 = vsel %vm986, %v1633, 0
        %v1667 = vsel %vm986, %v1634, 0
        %v1670 = vsel %vm986, %v1635, 0
        %v1673 = vsel %vm986, %v1636, 0
        %v1676 = vsel %vm986, %v1637, 0
        %v1679 = vsel %vm986, %v1646, 0
        %v1682 = vsel %vm986, %v1647, 0
        %v1685 = vsel %vm986, %v1648, 0
        %v1688 = vsel %vm986, %v1649, 0
        %v1691 = vsel %vm986, %v1650, 0
        %v1694 = vsel %vm986, %v1651, 0
        %v1697 = vsel %vm986, %v1652, 0
        %v1700 = vsel %vm986, %v1653, 0
        %1702 = vmatprep.subr.bf16.mxu0 0
        %1703 = vmatpush1.bf16.msra.mxu0 %v1612
        %1704 = vmatprep.subr.bf16.mxu0 0
        %1705 = vmatpush1.bf16.msra.mxu0 %v1613
        %1706 = vmatprep.subr.bf16.mxu0 0
        %1707 = vmatpush1.bf16.msra.mxu0 0
        %1708 = vmatprep.subr.bf16.mxu0 0
        %1709 = vmatpush1.bf16.msra.mxu0 0
        %1710 = vmatprep.subr.bf16.mxu0 0
        %1711 = vmatpush1.bf16.msra.mxu0 0
        %1712 = vmatprep.subr.bf16.mxu0 0
        %1713 = vmatpush1.bf16.msra.mxu0 0
        %1714 = vmatprep.subr.bf16.mxu0 0
        %1715 = vmatpush1.bf16.msra.mxu0 0
        %1716 = vmatprep.subr.bf16.mxu0 0
        %1717 = vmatpush1.bf16.msra.mxu0 0
        %1718 = vmatprep.subr.bf16.mxu0 0
        %1719 = vmatpush1.bf16.msra.mxu0 0
        %1720 = vmatprep.subr.bf16.mxu0 0
        %1721 = vmatpush1.bf16.msra.mxu0 0
        %1722 = vmatprep.subr.bf16.mxu0 0
        %1723 = vmatpush1.bf16.msra.mxu0 0
        %1724 = vmatprep.subr.bf16.mxu0 0
        %1725 = vmatpush1.bf16.msra.mxu0 0
        %1726 = vmatprep.subr.bf16.mxu0 0
        %1727 = vmatpush1.bf16.msra.mxu0 0
        %1728 = vmatprep.subr.bf16.mxu0 0
        %1729 = vmatpush1.bf16.msra.mxu0 0
        %1730 = vmatprep.subr.bf16.mxu0 0
        %1731 = vmatpush1.bf16.msra.mxu0 0
        %1732 = vmatprep.subr.bf16.mxu0 0
        %1733 = vmatpush1.bf16.msra.mxu0 0
        %1734 = vmatprep.mubr.bf16.mxu0 0
        %1735 = vmatmul.mubr.bf16.gmra.mrb[0].mxu0 %v1655
        %v1736 = vpop.f32.mrb[0].mxu0
        %v1737 = vadd.f32 0.0, %v1736
        %v1738 = vpop.f32.mrb[0].mxu0
        %v1739 = vpop.f32.mrb[0].mxu0
        %v1740 = vadd.f32 0.0, %v1739
        %v1741 = vpop.f32.mrb[0].mxu0
        %1742 = vmatprep.mubr.bf16.mxu0 0
        %1743 = vmatmul.mubr.bf16.gmra.mrb[0].mxu0 %v1658
        %v1744 = vpop.f32.mrb[0].mxu0
        %v1745 = vadd.f32 0.0, %v1744
        %v1746 = vpop.f32.mrb[0].mxu0
        %v1747 = vpop.f32.mrb[0].mxu0
        %v1748 = vadd.f32 0.0, %v1747
        %v1749 = vpop.f32.mrb[0].mxu0
        %1750 = vmatprep.mubr.bf16.mxu0 0
        %1751 = vmatmul.mubr.bf16.gmra.mrb[0].mxu0 %v1661
        %v1752 = vpop.f32.mrb[0].mxu0
        %v1753 = vadd.f32 0.0, %v1752
        %v1754 = vpop.f32.mrb[0].mxu0
        %v1755 = vpop.f32.mrb[0].mxu0
        %v1756 = vadd.f32 0.0, %v1755
        %v1757 = vpop.f32.mrb[0].mxu0
        %1758 = vmatprep.mubr.bf16.mxu0 0
        %1759 = vmatmul.mubr.bf16.gmra.mrb[0].mxu0 %v1664
        %v1760 = vpop.f32.mrb[0].mxu0
        %v1761 = vadd.f32 0.0, %v1760
        %v1762 = vpop.f32.mrb[0].mxu0
        %v1763 = vpop.f32.mrb[0].mxu0
        %v1764 = vadd.f32 0.0, %v1763
        %v1765 = vpop.f32.mrb[0].mxu0
        %1766 = vmatprep.mubr.bf16.mxu0 0
        %1767 = vmatmul.mubr.bf16.gmra.mrb[0].mxu0 %v1667
        %v1768 = vpop.f32.mrb[0].mxu0
        %v1769 = vadd.f32 0.0, %v1768
        %v1770 = vpop.f32.mrb[0].mxu0
        %v1771 = vpop.f32.mrb[0].mxu0
        %v1772 = vadd.f32 0.0, %v1771
        %v1773 = vpop.f32.mrb[0].mxu0
        %1774 = vmatprep.mubr.bf16.mxu0 0
        %1775 = vmatmul.mubr.bf16.gmra.mrb[0].mxu0 %v1670
        %v1776 = vpop.f32.mrb[0].mxu0
        %v1777 = vadd.f32 0.0, %v1776
        %v1778 = vpop.f32.mrb[0].mxu0
        %v1779 = vpop.f32.mrb[0].mxu0
        %v1780 = vadd.f32 0.0, %v1779
        %v1781 = vpop.f32.mrb[0].mxu0
        %1782 = vmatprep.mubr.bf16.mxu0 0
        %1783 = vmatmul.mubr.bf16.gmra.mrb[0].mxu0 %v1673
        %v1784 = vpop.f32.mrb[0].mxu0
        %v1785 = vadd.f32 0.0, %v1784
        %v1786 = vpop.f32.mrb[0].mxu0
        %v1787 = vpop.f32.mrb[0].mxu0
        %v1788 = vadd.f32 0.0, %v1787
        %v1789 = vpop.f32.mrb[0].mxu0
        %1790 = vmatprep.mubr.bf16.mxu0 0
        %1791 = vmatmul.mubr.bf16.gmra.mrb[0].mxu0 %v1676
        %v1792 = vpop.f32.mrb[0].mxu0
        %v1793 = vadd.f32 0.0, %v1792
        %v1794 = vpop.f32.mrb[0].mxu0
        %v1795 = vpop.f32.mrb[0].mxu0
        %v1796 = vadd.f32 0.0, %v1795
        %v1797 = vpop.f32.mrb[0].mxu0
        %1798 = vmatprep.mubr.bf16.mxu0 0
        %1799 = vmatmul.mubr.bf16.gmra.mrb[0].mxu0 %v1679
        %v1800 = vpop.f32.mrb[0].mxu0
        %v1801 = vadd.f32 0.0, %v1800
        %v1802 = vpop.f32.mrb[0].mxu0
        %v1803 = vpop.f32.mrb[0].mxu0
        %v1804 = vadd.f32 0.0, %v1803
        %v1805 = vpop.f32.mrb[0].mxu0
        %1806 = vmatprep.mubr.bf16.mxu0 0
        %1807 = vmatmul.mubr.bf16.gmra.mrb[0].mxu0 %v1682
        %v1808 = vpop.f32.mrb[0].mxu0
        %v1809 = vadd.f32 0.0, %v1808
        %v1810 = vpop.f32.mrb[0].mxu0
        %v1811 = vpop.f32.mrb[0].mxu0
        %v1812 = vadd.f32 0.0, %v1811
        %v1813 = vpop.f32.mrb[0].mxu0
        %1814 = vmatprep.mubr.bf16.mxu0 0
        %1815 = vmatmul.mubr.bf16.gmra.mrb[0].mxu0 %v1685
        %v1816 = vpop.f32.mrb[0].mxu0
        %v1817 = vadd.f32 0.0, %v1816
        %v1818 = vpop.f32.mrb[0].mxu0
        %v1819 = vpop.f32.mrb[0].mxu0
        %v1820 = vadd.f32 0.0, %v1819
        %v1821 = vpop.f32.mrb[0].mxu0
        %1822 = vmatprep.mubr.bf16.mxu0 0
        %1823 = vmatmul.mubr.bf16.gmra.mrb[0].mxu0 %v1688
        %v1824 = vpop.f32.mrb[0].mxu0
        %v1825 = vadd.f32 0.0, %v1824
        %v1826 = vpop.f32.mrb[0].mxu0
        %v1827 = vpop.f32.mrb[0].mxu0
        %v1828 = vadd.f32 0.0, %v1827
        %v1829 = vpop.f32.mrb[0].mxu0
        %1830 = vmatprep.mubr.bf16.mxu0 0
        %1831 = vmatmul.mubr.bf16.gmra.mrb[0].mxu0 %v1691
        %v1832 = vpop.f32.mrb[0].mxu0
        %v1833 = vadd.f32 0.0, %v1832
        %v1834 = vpop.f32.mrb[0].mxu0
        %v1835 = vpop.f32.mrb[0].mxu0
        %v1836 = vadd.f32 0.0, %v1835
        %v1837 = vpop.f32.mrb[0].mxu0
        %1838 = vmatprep.mubr.bf16.mxu0 0
        %1839 = vmatmul.mubr.bf16.gmra.mrb[0].mxu0 %v1694
        %v1840 = vpop.f32.mrb[0].mxu0
        %v1841 = vadd.f32 0.0, %v1840
        %v1842 = vpop.f32.mrb[0].mxu0
        %v1843 = vpop.f32.mrb[0].mxu0
        %v1844 = vadd.f32 0.0, %v1843
        %v1845 = vpop.f32.mrb[0].mxu0
        %1846 = vmatprep.mubr.bf16.mxu0 0
        %1847 = vmatmul.mubr.bf16.gmra.mrb[0].mxu0 %v1697
        %v1848 = vpop.f32.mrb[0].mxu0
        %v1849 = vadd.f32 0.0, %v1848
        %v1850 = vpop.f32.mrb[0].mxu0
        %v1851 = vpop.f32.mrb[0].mxu0
        %v1852 = vadd.f32 0.0, %v1851
        %v1853 = vpop.f32.mrb[0].mxu0
        %1854 = vmatprep.mubr.bf16.mxu0 0
        %1855 = vmatmul.mubr.bf16.gmra.mrb[0].mxu0 %v1700
        %v1856 = vpop.f32.mrb[0].mxu0
        %v1857 = vadd.f32 0.0, %v1856
        %v1858 = vpop.f32.mrb[0].mxu0
        %v1859 = vpop.f32.mrb[0].mxu0
        %v1860 = vadd.f32 0.0, %v1859
        %v1861 = vpop.f32.mrb[0].mxu0
        %1862 = vdwg.mxu0
        %s1863 = scalar_lea.vmem %s2, 16
        %v1864 = vld [vmem:[%s1863] sm:$0xf]
        %v1865 = vld [vmem:[%s1863 + $0x4] sm:$0xf]
        %v1866 = vld [vmem:[%s1863 + $0x8] sm:$0xf]
        %v1867 = vld [vmem:[%s1863 + $0xc] sm:$0xf]
        %v1872 = vunpack.c.l.b16 %v1864
        %v1873 = vunpack.c.l.b16 %v1865
        %v1874 = vunpack.c.l.b16 %v1866
        %v1875 = vunpack.c.l.b16 %v1867
        %v1876 = vpack.c.b16 %v1873, %v1872
        %v1877 = vpack.c.b16 %v1875, %v1874
        %1880 = vxpose.xlu0.c.b16.start [1/8] %v1876, 128
        %1881 = vxpose.xlu0.c.b16.cont [2/8] %v1877, 128
        %1882 = vxpose.xlu0.c.b16.cont [3/8] 0, 128
        %1883 = vxpose.xlu0.c.b16.cont [4/8] 0, 128
        %1884 = vxpose.xlu0.c.b16.cont [5/8] 0, 128
        %1885 = vxpose.xlu0.c.b16.cont [6/8] 0, 128
        %1886 = vxpose.xlu0.c.b16.cont [7/8] 0, 128
        %1887 = vxpose.xlu0.c.b16.end [8/8] 0, 128
        %v1888 = vpop.trf.xlu0
        %v1889 = vpop.trf.xlu0
        %v1890 = vpop.trf.xlu0
        %v1891 = vpop.trf.xlu0
        %v1892 = vpop.trf.xlu0
        %v1893 = vpop.trf.xlu0
        %v1894 = vpop.trf.xlu0
        %v1895 = vpop.trf.xlu0
        %v1897 = vsel %vm986, %v1888, 0
        %1899 = vmatprep.subr.bf16.mxu0 0
        %1900 = vmatpush1.bf16.msra.mxu0 %v1612
        %1901 = vmatprep.subr.bf16.mxu0 0
        %1902 = vmatpush1.bf16.msra.mxu0 %v1613
        %1903 = vmatprep.subr.bf16.mxu0 0
        %1904 = vmatpush1.bf16.msra.mxu0 0
        %1905 = vmatprep.subr.bf16.mxu0 0
        %1906 = vmatpush1.bf16.msra.mxu0 0
        %1907 = vmatprep.subr.bf16.mxu0 0
        %1908 = vmatpush1.bf16.msra.mxu0 0
        %1909 = vmatprep.subr.bf16.mxu0 0
        %1910 = vmatpush1.bf16.msra.mxu0 0
        %1911 = vmatprep.subr.bf16.mxu0 0
        %1912 = vmatpush1.bf16.msra.mxu0 0
        %1913 = vmatprep.subr.bf16.mxu0 0
        %1914 = vmatpush1.bf16.msra.mxu0 0
        %1915 = vmatprep.subr.bf16.mxu0 0
        %1916 = vmatpush1.bf16.msra.mxu0 0
        %1917 = vmatprep.subr.bf16.mxu0 0
        %1918 = vmatpush1.bf16.msra.mxu0 0
        %1919 = vmatprep.subr.bf16.mxu0 0
        %1920 = vmatpush1.bf16.msra.mxu0 0
        %1921 = vmatprep.subr.bf16.mxu0 0
        %1922 = vmatpush1.bf16.msra.mxu0 0
        %1923 = vmatprep.subr.bf16.mxu0 0
        %1924 = vmatpush1.bf16.msra.mxu0 0
        %1925 = vmatprep.subr.bf16.mxu0 0
        %1926 = vmatpush1.bf16.msra.mxu0 0
        %1927 = vmatprep.subr.bf16.mxu0 0
        %1928 = vmatpush1.bf16.msra.mxu0 0
        %1929 = vmatprep.subr.bf16.mxu0 0
        %1930 = vmatpush1.bf16.msra.mxu0 0
        %1931 = vmatprep.mubr.bf16.mxu0 0
        %1932 = vmatmul.mubr.bf16.gmra.mrb[0].mxu0 %v1897
        %v1933 = vpop.f32.mrb[0].mxu0
        %v1934 = vadd.f32 %v1203, %v1933
        %v1935 = vpop.f32.mrb[0].mxu0
        %v1936 = vpop.f32.mrb[0].mxu0
        %v1937 = vpop.f32.mrb[0].mxu0
        %1938 = vdwg.mxu0
        %v1939 = vmax.f32 %v1737, %v1753
        %v1940 = vmax.f32 %v1740, %v1756
        %v1941 = vmax.f32 %v1745, %v1761
        %v1942 = vmax.f32 %v1748, %v1764
        %v1943 = vmax.f32 %v1939, %v1769
        %v1944 = vmax.f32 %v1940, %v1772
        %v1945 = vmax.f32 %v1941, %v1777
        %v1946 = vmax.f32 %v1942, %v1780
        %v1947 = vmax.f32 %v1943, %v1785
        %v1948 = vmax.f32 %v1944, %v1788
        %v1949 = vmax.f32 %v1945, %v1793
        %v1950 = vmax.f32 %v1946, %v1796
        %v1951 = vmax.f32 %v1947, %v1801
        %v1952 = vmax.f32 %v1948, %v1804
        %v1953 = vmax.f32 %v1949, %v1809
        %v1954 = vmax.f32 %v1950, %v1812
        %v1955 = vmax.f32 %v1951, %v1817
        %v1956 = vmax.f32 %v1952, %v1820
        %v1957 = vmax.f32 %v1953, %v1825
        %v1958 = vmax.f32 %v1954, %v1828
        %v1959 = vmax.f32 %v1955, %v1833
        %v1960 = vmax.f32 %v1956, %v1836
        %v1961 = vmax.f32 %v1957, %v1841
        %v1962 = vmax.f32 %v1958, %v1844
        %v1963 = vmax.f32 %v1959, %v1849
        %v1964 = vmax.f32 %v1960, %v1852
        %v1965 = vmax.f32 %v1961, %v1857
        %v1966 = vmax.f32 %v1962, %v1860
        %v1967 = vmax.f32 %v1963, %v1964
        %v1968 = vmax.f32 %v1965, %v1966
        %v1969 = vmax.f32 %v1967, %v1968
        %v1970 = vrot.slane %v1969, 4
        %v1971 = vmax.f32 %v1969, %v1970
        %v1972 = vrot.slane %v1971, 2
        %v1973 = vmax.f32 %v1971, %v1972
        %v1974 = vrot.slane %v1973, 1
        %v1975 = vmax.f32 %v1973, %v1974
        %v1976 = vrot.slane %v1934, 4
        %v1977 = vmax.f32 %v1934, %v1976
        %v1978 = vrot.slane %v1977, 2
        %v1979 = vmax.f32 %v1977, %v1978
        %v1980 = vrot.slane %v1979, 1
        %v1981 = vmax.f32 %v1979, %v1980
        %v1982 = vmax.f32 %v1975, %v1981
        %v1983 = vsub.f32 %v1737, %v1982
        %v1984 = vsub.f32 %v1740, %v1982
        %v1985 = vsub.f32 %v1745, %v1982
        %v1986 = vsub.f32 %v1748, %v1982
        %v1987 = vsub.f32 %v1753, %v1982
        %v1988 = vsub.f32 %v1756, %v1982
        %v1989 = vsub.f32 %v1761, %v1982
        %v1990 = vsub.f32 %v1764, %v1982
        %v1991 = vsub.f32 %v1769, %v1982
        %v1992 = vsub.f32 %v1772, %v1982
        %v1993 = vsub.f32 %v1777, %v1982
        %v1994 = vsub.f32 %v1780, %v1982
        %v1995 = vsub.f32 %v1785, %v1982
        %v1996 = vsub.f32 %v1788, %v1982
        %v1997 = vsub.f32 %v1793, %v1982
        %v1998 = vsub.f32 %v1796, %v1982
        %v1999 = vsub.f32 %v1801, %v1982
        %v2000 = vsub.f32 %v1804, %v1982
        %v2001 = vsub.f32 %v1809, %v1982
        %v2002 = vsub.f32 %v1812, %v1982
        %v2003 = vsub.f32 %v1817, %v1982
        %v2004 = vsub.f32 %v1820, %v1982
        %v2005 = vsub.f32 %v1825, %v1982
        %v2006 = vsub.f32 %v1828, %v1982
        %v2007 = vsub.f32 %v1833, %v1982
        %v2008 = vsub.f32 %v1836, %v1982
        %v2009 = vsub.f32 %v1841, %v1982
        %v2010 = vsub.f32 %v1844, %v1982
        %v2011 = vsub.f32 %v1849, %v1982
        %v2012 = vsub.f32 %v1852, %v1982
        %v2013 = vsub.f32 %v1857, %v1982
        %v2014 = vsub.f32 %v1860, %v1982
        %v2015 = vmul.f32 %v1983, 1.442695
        %v2016 = vpow.pop %v2015
        %v2017 = vmul.f32 %v1984, 1.442695
        %v2018 = vpow.pop %v2017
        %v2019 = vmul.f32 %v1985, 1.442695
        %v2020 = vpow.pop %v2019
        %v2021 = vmul.f32 %v1986, 1.442695
        %v2022 = vpow.pop %v2021
        %v2023 = vmul.f32 %v1987, 1.442695
        %v2024 = vpow.pop %v2023
        %v2025 = vmul.f32 %v1988, 1.442695
        %v2026 = vpow.pop %v2025
        %v2027 = vmul.f32 %v1989, 1.442695
        %v2028 = vpow.pop %v2027
        %v2029 = vmul.f32 %v1990, 1.442695
        %v2030 = vpow.pop %v2029
        %v2031 = vmul.f32 %v1991, 1.442695
        %v2032 = vpow.pop %v2031
        %v2033 = vmul.f32 %v1992, 1.442695
        %v2034 = vpow.pop %v2033
        %v2035 = vmul.f32 %v1993, 1.442695
        %v2036 = vpow.pop %v2035
        %v2037 = vmul.f32 %v1994, 1.442695
        %v2038 = vpow.pop %v2037
        %v2039 = vmul.f32 %v1995, 1.442695
        %v2040 = vpow.pop %v2039
        %v2041 = vmul.f32 %v1996, 1.442695
        %v2042 = vpow.pop %v2041
        %v2043 = vmul.f32 %v1997, 1.442695
        %v2044 = vpow.pop %v2043
        %v2045 = vmul.f32 %v1998, 1.442695
        %v2046 = vpow.pop %v2045
        %v2047 = vmul.f32 %v1999, 1.442695
        %v2048 = vpow.pop %v2047
        %v2049 = vmul.f32 %v2000, 1.442695
        %v2050 = vpow.pop %v2049
        %v2051 = vmul.f32 %v2001, 1.442695
        %v2052 = vpow.pop %v2051
        %v2053 = vmul.f32 %v2002, 1.442695
        %v2054 = vpow.pop %v2053
        %v2055 = vmul.f32 %v2003, 1.442695
        %v2056 = vpow.pop %v2055
        %v2057 = vmul.f32 %v2004, 1.442695
        %v2058 = vpow.pop %v2057
        %v2059 = vmul.f32 %v2005, 1.442695
        %v2060 = vpow.pop %v2059
        %v2061 = vmul.f32 %v2006, 1.442695
        %v2062 = vpow.pop %v2061
        %v2063 = vmul.f32 %v2007, 1.442695
        %v2064 = vpow.pop %v2063
        %v2065 = vmul.f32 %v2008, 1.442695
        %v2066 = vpow.pop %v2065
        %v2067 = vmul.f32 %v2009, 1.442695
        %v2068 = vpow.pop %v2067
        %v2069 = vmul.f32 %v2010, 1.442695
        %v2070 = vpow.pop %v2069
        %v2071 = vmul.f32 %v2011, 1.442695
        %v2072 = vpow.pop %v2071
        %v2073 = vmul.f32 %v2012, 1.442695
        %v2074 = vpow.pop %v2073
        %v2075 = vmul.f32 %v2013, 1.442695
        %v2076 = vpow.pop %v2075
        %v2077 = vmul.f32 %v2014, 1.442695
        %v2078 = vpow.pop %v2077
        %v2079 = vsub.f32 %v1934, %v1982
        %v2080 = vmul.f32 %v2079, 1.442695
        %v2081 = vpow.pop %v2080
        %v2082 = vadd.f32 %v2016, %v2018
        %v2083 = vadd.f32 %v2082, %v2020
        %v2084 = vadd.f32 %v2083, %v2022
        %v2085 = vadd.f32 %v2084, %v2024
        %v2086 = vadd.f32 %v2085, %v2026
        %v2087 = vadd.f32 %v2086, %v2028
        %v2088 = vadd.f32 %v2087, %v2030
        %v2089 = vadd.f32 %v2088, %v2032
        %v2090 = vadd.f32 %v2089, %v2034
        %v2091 = vadd.f32 %v2090, %v2036
        %v2092 = vadd.f32 %v2091, %v2038
        %v2093 = vadd.f32 %v2092, %v2040
        %v2094 = vadd.f32 %v2093, %v2042
        %v2095 = vadd.f32 %v2094, %v2044
        %v2096 = vadd.f32 %v2095, %v2046
        %v2097 = vadd.f32 %v2096, %v2048
        %v2098 = vadd.f32 %v2097, %v2050
        %v2099 = vadd.f32 %v2098, %v2052
        %v2100 = vadd.f32 %v2099, %v2054
        %v2101 = vadd.f32 %v2100, %v2056
        %v2102 = vadd.f32 %v2101, %v2058
        %v2103 = vadd.f32 %v2102, %v2060
        %v2104 = vadd.f32 %v2103, %v2062
        %v2105 = vadd.f32 %v2104, %v2064
        %v2106 = vadd.f32 %v2105, %v2066
        %v2107 = vadd.f32 %v2106, %v2068
        %v2108 = vadd.f32 %v2107, %v2070
        %v2109 = vadd.f32 %v2108, %v2072
        %v2110 = vadd.f32 %v2109, %v2074
        %v2111 = vadd.f32 %v2110, %v2076
        %v2112 = vadd.f32 %v2111, %v2078
        %v2113 = vrot.slane %v2112, 4
        %v2114 = vadd.f32 %v2112, %v2113
        %v2115 = vrot.slane %v2114, 2
        %v2116 = vadd.f32 %v2114, %v2115
        %v2117 = vrot.slane %v2116, 1
        %v2118 = vadd.f32 %v2116, %v2117
        %v2119 = vrot.slane %v2081, 4
        %v2120 = vadd.f32 %v2081, %v2119
        %v2121 = vrot.slane %v2120, 2
        %v2122 = vadd.f32 %v2120, %v2121
        %v2123 = vrot.slane %v2122, 1
        %v2124 = vadd.f32 %v2122, %v2123
        %v2125 = vadd.f32 %v2118, %v2124
        %v2126 = vpack.c.bf16 %v2018, %v2016
        %v2127 = vpack.c.bf16 %v2022, %v2020
        %v2128 = vpack.c.bf16 %v2026, %v2024
        %v2129 = vpack.c.bf16 %v2030, %v2028
        %v2130 = vpack.c.bf16 %v2034, %v2032
        %v2131 = vpack.c.bf16 %v2038, %v2036
        %v2132 = vpack.c.bf16 %v2042, %v2040
        %v2133 = vpack.c.bf16 %v2046, %v2044
        %v2134 = vpack.c.bf16 %v2050, %v2048
        %v2135 = vpack.c.bf16 %v2054, %v2052
        %v2136 = vpack.c.bf16 %v2058, %v2056
        %v2137 = vpack.c.bf16 %v2062, %v2060
        %v2138 = vpack.c.bf16 %v2066, %v2064
        %v2139 = vpack.c.bf16 %v2070, %v2068
        %v2140 = vpack.c.bf16 %v2074, %v2072
        %v2141 = vpack.c.bf16 %v2078, %v2076
        %s2142 = scalar_lea.vmem %s3, 16
        %v2143 = vld [vmem:[%s2142] sm:$0xf]
        %v2144 = vld [vmem:[%s2142 + $0x4] sm:$0xf]
        %v2145 = vld [vmem:[%s2142 + $0x8] sm:$0xf]
        %v2146 = vld [vmem:[%s2142 + $0xc] sm:$0xf]
        %v2147 = vpack.c.bf16 %v2081, %v2081
        %v2152 = vunpack.c.l.b16 %v2143
        %v2153 = vunpack.c.l.b16 %v2144
        %v2154 = vunpack.c.l.b16 %v2145
        %v2155 = vunpack.c.l.b16 %v2146
        %v2156 = vpack.c.b16 %v2153, %v2152
        %v2157 = vpack.c.b16 %v2155, %v2154
        %v2159 = vsel %vm1494, %v2156, 0
        %v2162 = vsel %vm1494, %v2157, 0
        %v2165 = vsel %vm1501, %v2147, 0
        %2167 = vmatprep.subr.bf16.mxu0 0
        %2168 = vmatpush1.bf16.msra.mxu0 %v2165
        %2169 = vmatprep.subr.bf16.mxu0 0
        %2170 = vmatpush1.bf16.msra.mxu0 0
        %2171 = vmatprep.subr.bf16.mxu0 0
        %2172 = vmatpush1.bf16.msra.mxu0 0
        %2173 = vmatprep.subr.bf16.mxu0 0
        %2174 = vmatpush1.bf16.msra.mxu0 0
        %2175 = vmatprep.subr.bf16.mxu0 0
        %2176 = vmatpush1.bf16.msra.mxu0 0
        %2177 = vmatprep.subr.bf16.mxu0 0
        %2178 = vmatpush1.bf16.msra.mxu0 0
        %2179 = vmatprep.subr.bf16.mxu0 0
        %2180 = vmatpush1.bf16.msra.mxu0 0
        %2181 = vmatprep.subr.bf16.mxu0 0
        %2182 = vmatpush1.bf16.msra.mxu0 0
        %2183 = vmatprep.subr.bf16.mxu0 0
        %2184 = vmatpush1.bf16.msra.mxu0 0
        %2185 = vmatprep.subr.bf16.mxu0 0
        %2186 = vmatpush1.bf16.msra.mxu0 0
        %2187 = vmatprep.subr.bf16.mxu0 0
        %2188 = vmatpush1.bf16.msra.mxu0 0
        %2189 = vmatprep.subr.bf16.mxu0 0
        %2190 = vmatpush1.bf16.msra.mxu0 0
        %2191 = vmatprep.subr.bf16.mxu0 0
        %2192 = vmatpush1.bf16.msra.mxu0 0
        %2193 = vmatprep.subr.bf16.mxu0 0
        %2194 = vmatpush1.bf16.msra.mxu0 0
        %2195 = vmatprep.subr.bf16.mxu0 0
        %2196 = vmatpush1.bf16.msra.mxu0 0
        %2197 = vmatprep.subr.bf16.mxu0 0
        %2198 = vmatpush1.bf16.msra.mxu0 0
        %2199 = vmatprep.mubr.bf16.mxu0 0
        %2200 = vmatmul.mubr.bf16.gmra.mrb[0].mxu0 %v2159
        %v2201 = vpop.f32.mrb[0].mxu0
        %v2202 = vadd.f32 0.0, %v2201
        %v2203 = vpop.f32.mrb[0].mxu0
        %v2204 = vpop.f32.mrb[0].mxu0
        %v2205 = vadd.f32 0.0, %v2204
        %v2206 = vpop.f32.mrb[0].mxu0
        %2207 = vmatprep.mubr.bf16.mxu0 0
        %2208 = vmatmul.mubr.bf16.gmra.mrb[0].mxu0 %v2162
        %v2209 = vpop.f32.mrb[0].mxu0
        %v2210 = vadd.f32 0.0, %v2209
        %v2211 = vpop.f32.mrb[0].mxu0
        %v2212 = vpop.f32.mrb[0].mxu0
        %v2213 = vadd.f32 0.0, %v2212
        %v2214 = vpop.f32.mrb[0].mxu0
        %2215 = vdwg.mxu0
        %2216 = vmatprep.subr.bf16.mxu0 0
        %2217 = vmatpush1.bf16.msra.mxu0 %v2126
        %2218 = vmatprep.subr.bf16.mxu0 0
        %2219 = vmatpush1.bf16.msra.mxu0 %v2127
        %2220 = vmatprep.subr.bf16.mxu0 0
        %2221 = vmatpush1.bf16.msra.mxu0 %v2128
        %2222 = vmatprep.subr.bf16.mxu0 0
        %2223 = vmatpush1.bf16.msra.mxu0 %v2129
        %2224 = vmatprep.subr.bf16.mxu0 0
        %2225 = vmatpush1.bf16.msra.mxu0 %v2130
        %2226 = vmatprep.subr.bf16.mxu0 0
        %2227 = vmatpush1.bf16.msra.mxu0 %v2131
        %2228 = vmatprep.subr.bf16.mxu0 0
        %2229 = vmatpush1.bf16.msra.mxu0 %v2132
        %2230 = vmatprep.subr.bf16.mxu0 0
        %2231 = vmatpush1.bf16.msra.mxu0 %v2133
        %2232 = vmatprep.subr.bf16.mxu0 0
        %2233 = vmatpush1.bf16.msra.mxu0 %v2134
        %2234 = vmatprep.subr.bf16.mxu0 0
        %2235 = vmatpush1.bf16.msra.mxu0 %v2135
        %2236 = vmatprep.subr.bf16.mxu0 0
        %2237 = vmatpush1.bf16.msra.mxu0 %v2136
        %2238 = vmatprep.subr.bf16.mxu0 0
        %2239 = vmatpush1.bf16.msra.mxu0 %v2137
        %2240 = vmatprep.subr.bf16.mxu0 0
        %2241 = vmatpush1.bf16.msra.mxu0 %v2138
        %2242 = vmatprep.subr.bf16.mxu0 0
        %2243 = vmatpush1.bf16.msra.mxu0 %v2139
        %2244 = vmatprep.subr.bf16.mxu0 0
        %2245 = vmatpush1.bf16.msra.mxu0 %v2140
        %2246 = vmatprep.subr.bf16.mxu0 0
        %2247 = vmatpush1.bf16.msra.mxu0 %v2141
        %2248 = vmatprep.mubr.bf16.mxu0 %v1619
        %2249 = vmatmul.mubr.bf16.gmra.mrb[0].mxu0 %v1618
        %v2250 = vpop.f32.mrb[0].mxu0
        %v2251 = vadd.f32 %v2202, %v2250
        %v2252 = vpop.f32.mrb[0].mxu0
        %v2253 = vpop.f32.mrb[0].mxu0
        %v2254 = vadd.f32 %v2205, %v2253
        %v2255 = vpop.f32.mrb[0].mxu0
        %2256 = vmatprep.mubr.bf16.mxu0 %v1621
        %2257 = vmatmul.mubr.bf16.gmra.mrb[0].mxu0 %v1620
        %v2258 = vpop.f32.mrb[0].mxu0
        %v2259 = vadd.f32 %v2210, %v2258
        %v2260 = vpop.f32.mrb[0].mxu0
        %v2261 = vpop.f32.mrb[0].mxu0
        %v2262 = vadd.f32 %v2213, %v2261
        %v2263 = vpop.f32.mrb[0].mxu0
        %2264 = vdwg.mxu0
        %v2265 = vrcp.pop %v2125
        %v2266 = vmul.f32 %v2251, %v2265
        %v2267 = vmul.f32 %v2254, %v2265
        %v2268 = vmul.f32 %v2259, %v2265
        %v2269 = vmul.f32 %v2262, %v2265
        %v2270 = vpack.c.bf16 %v2267, %v2266
        %v2271 = vpack.c.bf16 %v2269, %v2268
        %2272 = vst [vmem:[#allocation3 + $0x10] sm:$0xff] %v2270
        %2273 = vst [vmem:[#allocation3 + $0x18] sm:$0xff] %v2271
        %v2274 = vld [vmem:[%s943 + $0x40] sm:$0xff]
        %v2275 = vld [vmem:[%s943 + $0x50] sm:$0xff]
        %v2276 = vld [vmem:[#allocation2 + $0xc0] sm:$0xff]
        %v2277 = vld [vmem:[#allocation2 + $0xc8] sm:$0xff]
        %v2278 = vld [vmem:[#allocation2 + $0xd0] sm:$0xff]
        %v2279 = vld [vmem:[#allocation2 + $0xd8] sm:$0xff]
        %v2280 = vld [vmem:[#allocation2 + $0x140] sm:$0xff]
        %v2281 = vld [vmem:[#allocation2 + $0x148] sm:$0xff]
        %v2282 = vld [vmem:[#allocation2 + $0x150] sm:$0xff]
        %v2283 = vld [vmem:[#allocation2 + $0x158] sm:$0xff]
        %2284 = vxpose.xlu0.c.b16.start [1/8] %v2276, 128
        %2285 = vxpose.xlu0.c.b16.cont [2/8] %v2278, 128
        %2286 = vxpose.xlu0.c.b16.cont [3/8] 0, 128
        %2287 = vxpose.xlu0.c.b16.cont [4/8] 0, 128
        %2288 = vxpose.xlu0.c.b16.cont [5/8] 0, 128
        %2289 = vxpose.xlu0.c.b16.cont [6/8] 0, 128
        %2290 = vxpose.xlu0.c.b16.cont [7/8] 0, 128
        %2291 = vxpose.xlu0.c.b16.end [8/8] 0, 128
        %v2292 = vpop.trf.xlu0
        %v2293 = vpop.trf.xlu0
        %v2294 = vpop.trf.xlu0
        %v2295 = vpop.trf.xlu0
        %v2296 = vpop.trf.xlu0
        %v2297 = vpop.trf.xlu0
        %v2298 = vpop.trf.xlu0
        %v2299 = vpop.trf.xlu0
        %2300 = vxpose.xlu0.c.b16.start [1/8] %v2277, 128
        %2301 = vxpose.xlu0.c.b16.cont [2/8] %v2279, 128
        %2302 = vxpose.xlu0.c.b16.cont [3/8] 0, 128
        %2303 = vxpose.xlu0.c.b16.cont [4/8] 0, 128
        %2304 = vxpose.xlu0.c.b16.cont [5/8] 0, 128
        %2305 = vxpose.xlu0.c.b16.cont [6/8] 0, 128
        %2306 = vxpose.xlu0.c.b16.cont [7/8] 0, 128
        %2307 = vxpose.xlu0.c.b16.end [8/8] 0, 128
        %v2308 = vpop.trf.xlu0
        %v2309 = vpop.trf.xlu0
        %v2310 = vpop.trf.xlu0
        %v2311 = vpop.trf.xlu0
        %v2312 = vpop.trf.xlu0
        %v2313 = vpop.trf.xlu0
        %v2314 = vpop.trf.xlu0
        %v2315 = vpop.trf.xlu0
        %v2317 = vsel %vm986, %v2292, 0
        %v2320 = vsel %vm986, %v2293, 0
        %v2323 = vsel %vm986, %v2294, 0
        %v2326 = vsel %vm986, %v2295, 0
        %v2329 = vsel %vm986, %v2296, 0
        %v2332 = vsel %vm986, %v2297, 0
        %v2335 = vsel %vm986, %v2298, 0
        %v2338 = vsel %vm986, %v2299, 0
        %v2341 = vsel %vm986, %v2308, 0
        %v2344 = vsel %vm986, %v2309, 0
        %v2347 = vsel %vm986, %v2310, 0
        %v2350 = vsel %vm986, %v2311, 0
        %v2353 = vsel %vm986, %v2312, 0
        %v2356 = vsel %vm986, %v2313, 0
        %v2359 = vsel %vm986, %v2314, 0
        %v2362 = vsel %vm986, %v2315, 0
        %2364 = vmatprep.subr.bf16.mxu0 0
        %2365 = vmatpush1.bf16.msra.mxu0 %v2274
        %2366 = vmatprep.subr.bf16.mxu0 0
        %2367 = vmatpush1.bf16.msra.mxu0 %v2275
        %2368 = vmatprep.subr.bf16.mxu0 0
        %2369 = vmatpush1.bf16.msra.mxu0 0
        %2370 = vmatprep.subr.bf16.mxu0 0
        %2371 = vmatpush1.bf16.msra.mxu0 0
        %2372 = vmatprep.subr.bf16.mxu0 0
        %2373 = vmatpush1.bf16.msra.mxu0 0
        %2374 = vmatprep.subr.bf16.mxu0 0
        %2375 = vmatpush1.bf16.msra.mxu0 0
        %2376 = vmatprep.subr.bf16.mxu0 0
        %2377 = vmatpush1.bf16.msra.mxu0 0
        %2378 = vmatprep.subr.bf16.mxu0 0
        %2379 = vmatpush1.bf16.msra.mxu0 0
        %2380 = vmatprep.subr.bf16.mxu0 0
        %2381 = vmatpush1.bf16.msra.mxu0 0
        %2382 = vmatprep.subr.bf16.mxu0 0
        %2383 = vmatpush1.bf16.msra.mxu0 0
        %2384 = vmatprep.subr.bf16.mxu0 0
        %2385 = vmatpush1.bf16.msra.mxu0 0
        %2386 = vmatprep.subr.bf16.mxu0 0
        %2387 = vmatpush1.bf16.msra.mxu0 0
        %2388 = vmatprep.subr.bf16.mxu0 0
        %2389 = vmatpush1.bf16.msra.mxu0 0
        %2390 = vmatprep.subr.bf16.mxu0 0
        %2391 = vmatpush1.bf16.msra.mxu0 0
        %2392 = vmatprep.subr.bf16.mxu0 0
        %2393 = vmatpush1.bf16.msra.mxu0 0
        %2394 = vmatprep.subr.bf16.mxu0 0
        %2395 = vmatpush1.bf16.msra.mxu0 0
        %2396 = vmatprep.mubr.bf16.mxu0 0
        %2397 = vmatmul.mubr.bf16.gmra.mrb[0].mxu0 %v2317
        %v2398 = vpop.f32.mrb[0].mxu0
        %v2399 = vadd.f32 0.0, %v2398
        %v2400 = vpop.f32.mrb[0].mxu0
        %v2401 = vpop.f32.mrb[0].mxu0
        %v2402 = vadd.f32 0.0, %v2401
        %v2403 = vpop.f32.mrb[0].mxu0
        %2404 = vmatprep.mubr.bf16.mxu0 0
        %2405 = vmatmul.mubr.bf16.gmra.mrb[0].mxu0 %v2320
        %v2406 = vpop.f32.mrb[0].mxu0
        %v2407 = vadd.f32 0.0, %v2406
        %v2408 = vpop.f32.mrb[0].mxu0
        %v2409 = vpop.f32.mrb[0].mxu0
        %v2410 = vadd.f32 0.0, %v2409
        %v2411 = vpop.f32.mrb[0].mxu0
        %2412 = vmatprep.mubr.bf16.mxu0 0
        %2413 = vmatmul.mubr.bf16.gmra.mrb[0].mxu0 %v2323
        %v2414 = vpop.f32.mrb[0].mxu0
        %v2415 = vadd.f32 0.0, %v2414
        %v2416 = vpop.f32.mrb[0].mxu0
        %v2417 = vpop.f32.mrb[0].mxu0
        %v2418 = vadd.f32 0.0, %v2417
        %v2419 = vpop.f32.mrb[0].mxu0
        %2420 = vmatprep.mubr.bf16.mxu0 0
        %2421 = vmatmul.mubr.bf16.gmra.mrb[0].mxu0 %v2326
        %v2422 = vpop.f32.mrb[0].mxu0
        %v2423 = vadd.f32 0.0, %v2422
        %v2424 = vpop.f32.mrb[0].mxu0
        %v2425 = vpop.f32.mrb[0].mxu0
        %v2426 = vadd.f32 0.0, %v2425
        %v2427 = vpop.f32.mrb[0].mxu0
        %2428 = vmatprep.mubr.bf16.mxu0 0
        %2429 = vmatmul.mubr.bf16.gmra.mrb[0].mxu0 %v2329
        %v2430 = vpop.f32.mrb[0].mxu0
        %v2431 = vadd.f32 0.0, %v2430
        %v2432 = vpop.f32.mrb[0].mxu0
        %v2433 = vpop.f32.mrb[0].mxu0
        %v2434 = vadd.f32 0.0, %v2433
        %v2435 = vpop.f32.mrb[0].mxu0
        %2436 = vmatprep.mubr.bf16.mxu0 0
        %2437 = vmatmul.mubr.bf16.gmra.mrb[0].mxu0 %v2332
        %v2438 = vpop.f32.mrb[0].mxu0
        %v2439 = vadd.f32 0.0, %v2438
        %v2440 = vpop.f32.mrb[0].mxu0
        %v2441 = vpop.f32.mrb[0].mxu0
        %v2442 = vadd.f32 0.0, %v2441
        %v2443 = vpop.f32.mrb[0].mxu0
        %2444 = vmatprep.mubr.bf16.mxu0 0
        %2445 = vmatmul.mubr.bf16.gmra.mrb[0].mxu0 %v2335
        %v2446 = vpop.f32.mrb[0].mxu0
        %v2447 = vadd.f32 0.0, %v2446
        %v2448 = vpop.f32.mrb[0].mxu0
        %v2449 = vpop.f32.mrb[0].mxu0
        %v2450 = vadd.f32 0.0, %v2449
        %v2451 = vpop.f32.mrb[0].mxu0
        %2452 = vmatprep.mubr.bf16.mxu0 0
        %2453 = vmatmul.mubr.bf16.gmra.mrb[0].mxu0 %v2338
        %v2454 = vpop.f32.mrb[0].mxu0
        %v2455 = vadd.f32 0.0, %v2454
        %v2456 = vpop.f32.mrb[0].mxu0
        %v2457 = vpop.f32.mrb[0].mxu0
        %v2458 = vadd.f32 0.0, %v2457
        %v2459 = vpop.f32.mrb[0].mxu0
        %2460 = vmatprep.mubr.bf16.mxu0 0
        %2461 = vmatmul.mubr.bf16.gmra.mrb[0].mxu0 %v2341
        %v2462 = vpop.f32.mrb[0].mxu0
        %v2463 = vadd.f32 0.0, %v2462
        %v2464 = vpop.f32.mrb[0].mxu0
        %v2465 = vpop.f32.mrb[0].mxu0
        %v2466 = vadd.f32 0.0, %v2465
        %v2467 = vpop.f32.mrb[0].mxu0
        %2468 = vmatprep.mubr.bf16.mxu0 0
        %2469 = vmatmul.mubr.bf16.gmra.mrb[0].mxu0 %v2344
        %v2470 = vpop.f32.mrb[0].mxu0
        %v2471 = vadd.f32 0.0, %v2470
        %v2472 = vpop.f32.mrb[0].mxu0
        %v2473 = vpop.f32.mrb[0].mxu0
        %v2474 = vadd.f32 0.0, %v2473
        %v2475 = vpop.f32.mrb[0].mxu0
        %2476 = vmatprep.mubr.bf16.mxu0 0
        %2477 = vmatmul.mubr.bf16.gmra.mrb[0].mxu0 %v2347
        %v2478 = vpop.f32.mrb[0].mxu0
        %v2479 = vadd.f32 0.0, %v2478
        %v2480 = vpop.f32.mrb[0].mxu0
        %v2481 = vpop.f32.mrb[0].mxu0
        %v2482 = vadd.f32 0.0, %v2481
        %v2483 = vpop.f32.mrb[0].mxu0
        %2484 = vmatprep.mubr.bf16.mxu0 0
        %2485 = vmatmul.mubr.bf16.gmra.mrb[0].mxu0 %v2350
        %v2486 = vpop.f32.mrb[0].mxu0
        %v2487 = vadd.f32 0.0, %v2486
        %v2488 = vpop.f32.mrb[0].mxu0
        %v2489 = vpop.f32.mrb[0].mxu0
        %v2490 = vadd.f32 0.0, %v2489
        %v2491 = vpop.f32.mrb[0].mxu0
        %2492 = vmatprep.mubr.bf16.mxu0 0
        %2493 = vmatmul.mubr.bf16.gmra.mrb[0].mxu0 %v2353
        %v2494 = vpop.f32.mrb[0].mxu0
        %v2495 = vadd.f32 0.0, %v2494
        %v2496 = vpop.f32.mrb[0].mxu0
        %v2497 = vpop.f32.mrb[0].mxu0
        %v2498 = vadd.f32 0.0, %v2497
        %v2499 = vpop.f32.mrb[0].mxu0
        %2500 = vmatprep.mubr.bf16.mxu0 0
        %2501 = vmatmul.mubr.bf16.gmra.mrb[0].mxu0 %v2356
        %v2502 = vpop.f32.mrb[0].mxu0
        %v2503 = vadd.f32 0.0, %v2502
        %v2504 = vpop.f32.mrb[0].mxu0
        %v2505 = vpop.f32.mrb[0].mxu0
        %v2506 = vadd.f32 0.0, %v2505
        %v2507 = vpop.f32.mrb[0].mxu0
        %2508 = vmatprep.mubr.bf16.mxu0 0
        %2509 = vmatmul.mubr.bf16.gmra.mrb[0].mxu0 %v2359
        %v2510 = vpop.f32.mrb[0].mxu0
        %v2511 = vadd.f32 0.0, %v2510
        %v2512 = vpop.f32.mrb[0].mxu0
        %v2513 = vpop.f32.mrb[0].mxu0
        %v2514 = vadd.f32 0.0, %v2513
        %v2515 = vpop.f32.mrb[0].mxu0
        %2516 = vmatprep.mubr.bf16.mxu0 0
        %2517 = vmatmul.mubr.bf16.gmra.mrb[0].mxu0 %v2362
        %v2518 = vpop.f32.mrb[0].mxu0
        %v2519 = vadd.f32 0.0, %v2518
        %v2520 = vpop.f32.mrb[0].mxu0
        %v2521 = vpop.f32.mrb[0].mxu0
        %v2522 = vadd.f32 0.0, %v2521
        %v2523 = vpop.f32.mrb[0].mxu0
        %2524 = vdwg.mxu0
        %s2525 = scalar_lea.vmem %s2, 32
        %v2526 = vld [vmem:[%s2525] sm:$0xf]
        %v2527 = vld [vmem:[%s2525 + $0x4] sm:$0xf]
        %v2528 = vld [vmem:[%s2525 + $0x8] sm:$0xf]
        %v2529 = vld [vmem:[%s2525 + $0xc] sm:$0xf]
        %v2534 = vunpack.c.l.b16 %v2526
        %v2535 = vunpack.c.l.b16 %v2527
        %v2536 = vunpack.c.l.b16 %v2528
        %v2537 = vunpack.c.l.b16 %v2529
        %v2538 = vpack.c.b16 %v2535, %v2534
        %v2539 = vpack.c.b16 %v2537, %v2536
        %2542 = vxpose.xlu0.c.b16.start [1/8] %v2538, 128
        %2543 = vxpose.xlu0.c.b16.cont [2/8] %v2539, 128
        %2544 = vxpose.xlu0.c.b16.cont [3/8] 0, 128
        %2545 = vxpose.xlu0.c.b16.cont [4/8] 0, 128
        %2546 = vxpose.xlu0.c.b16.cont [5/8] 0, 128
        %2547 = vxpose.xlu0.c.b16.cont [6/8] 0, 128
        %2548 = vxpose.xlu0.c.b16.cont [7/8] 0, 128
        %2549 = vxpose.xlu0.c.b16.end [8/8] 0, 128
        %v2550 = vpop.trf.xlu0
        %v2551 = vpop.trf.xlu0
        %v2552 = vpop.trf.xlu0
        %v2553 = vpop.trf.xlu0
        %v2554 = vpop.trf.xlu0
        %v2555 = vpop.trf.xlu0
        %v2556 = vpop.trf.xlu0
        %v2557 = vpop.trf.xlu0
        %v2559 = vsel %vm986, %v2550, 0
        %2561 = vmatprep.subr.bf16.mxu0 0
        %2562 = vmatpush1.bf16.msra.mxu0 %v2274
        %2563 = vmatprep.subr.bf16.mxu0 0
        %2564 = vmatpush1.bf16.msra.mxu0 %v2275
        %2565 = vmatprep.subr.bf16.mxu0 0
        %2566 = vmatpush1.bf16.msra.mxu0 0
        %2567 = vmatprep.subr.bf16.mxu0 0
        %2568 = vmatpush1.bf16.msra.mxu0 0
        %2569 = vmatprep.subr.bf16.mxu0 0
        %2570 = vmatpush1.bf16.msra.mxu0 0
        %2571 = vmatprep.subr.bf16.mxu0 0
        %2572 = vmatpush1.bf16.msra.mxu0 0
        %2573 = vmatprep.subr.bf16.mxu0 0
        %2574 = vmatpush1.bf16.msra.mxu0 0
        %2575 = vmatprep.subr.bf16.mxu0 0
        %2576 = vmatpush1.bf16.msra.mxu0 0
        %2577 = vmatprep.subr.bf16.mxu0 0
        %2578 = vmatpush1.bf16.msra.mxu0 0
        %2579 = vmatprep.subr.bf16.mxu0 0
        %2580 = vmatpush1.bf16.msra.mxu0 0
        %2581 = vmatprep.subr.bf16.mxu0 0
        %2582 = vmatpush1.bf16.msra.mxu0 0
        %2583 = vmatprep.subr.bf16.mxu0 0
        %2584 = vmatpush1.bf16.msra.mxu0 0
        %2585 = vmatprep.subr.bf16.mxu0 0
        %2586 = vmatpush1.bf16.msra.mxu0 0
        %2587 = vmatprep.subr.bf16.mxu0 0
        %2588 = vmatpush1.bf16.msra.mxu0 0
        %2589 = vmatprep.subr.bf16.mxu0 0
        %2590 = vmatpush1.bf16.msra.mxu0 0
        %2591 = vmatprep.subr.bf16.mxu0 0
        %2592 = vmatpush1.bf16.msra.mxu0 0
        %2593 = vmatprep.mubr.bf16.mxu0 0
        %2594 = vmatmul.mubr.bf16.gmra.mrb[0].mxu0 %v2559
        %v2595 = vpop.f32.mrb[0].mxu0
        %v2596 = vadd.f32 %v1203, %v2595
        %v2597 = vpop.f32.mrb[0].mxu0
        %v2598 = vpop.f32.mrb[0].mxu0
        %v2599 = vpop.f32.mrb[0].mxu0
        %2600 = vdwg.mxu0
        %v2601 = vmax.f32 %v2399, %v2415
        %v2602 = vmax.f32 %v2402, %v2418
        %v2603 = vmax.f32 %v2407, %v2423
        %v2604 = vmax.f32 %v2410, %v2426
        %v2605 = vmax.f32 %v2601, %v2431
        %v2606 = vmax.f32 %v2602, %v2434
        %v2607 = vmax.f32 %v2603, %v2439
        %v2608 = vmax.f32 %v2604, %v2442
        %v2609 = vmax.f32 %v2605, %v2447
        %v2610 = vmax.f32 %v2606, %v2450
        %v2611 = vmax.f32 %v2607, %v2455
        %v2612 = vmax.f32 %v2608, %v2458
        %v2613 = vmax.f32 %v2609, %v2463
        %v2614 = vmax.f32 %v2610, %v2466
        %v2615 = vmax.f32 %v2611, %v2471
        %v2616 = vmax.f32 %v2612, %v2474
        %v2617 = vmax.f32 %v2613, %v2479
        %v2618 = vmax.f32 %v2614, %v2482
        %v2619 = vmax.f32 %v2615, %v2487
        %v2620 = vmax.f32 %v2616, %v2490
        %v2621 = vmax.f32 %v2617, %v2495
        %v2622 = vmax.f32 %v2618, %v2498
        %v2623 = vmax.f32 %v2619, %v2503
        %v2624 = vmax.f32 %v2620, %v2506
        %v2625 = vmax.f32 %v2621, %v2511
        %v2626 = vmax.f32 %v2622, %v2514
        %v2627 = vmax.f32 %v2623, %v2519
        %v2628 = vmax.f32 %v2624, %v2522
        %v2629 = vmax.f32 %v2625, %v2626
        %v2630 = vmax.f32 %v2627, %v2628
        %v2631 = vmax.f32 %v2629, %v2630
        %v2632 = vrot.slane %v2631, 4
        %v2633 = vmax.f32 %v2631, %v2632
        %v2634 = vrot.slane %v2633, 2
        %v2635 = vmax.f32 %v2633, %v2634
        %v2636 = vrot.slane %v2635, 1
        %v2637 = vmax.f32 %v2635, %v2636
        %v2638 = vrot.slane %v2596, 4
        %v2639 = vmax.f32 %v2596, %v2638
        %v2640 = vrot.slane %v2639, 2
        %v2641 = vmax.f32 %v2639, %v2640
        %v2642 = vrot.slane %v2641, 1
        %v2643 = vmax.f32 %v2641, %v2642
        %v2644 = vmax.f32 %v2637, %v2643
        %v2645 = vsub.f32 %v2399, %v2644
        %v2646 = vsub.f32 %v2402, %v2644
        %v2647 = vsub.f32 %v2407, %v2644
        %v2648 = vsub.f32 %v2410, %v2644
        %v2649 = vsub.f32 %v2415, %v2644
        %v2650 = vsub.f32 %v2418, %v2644
        %v2651 = vsub.f32 %v2423, %v2644
        %v2652 = vsub.f32 %v2426, %v2644
        %v2653 = vsub.f32 %v2431, %v2644
        %v2654 = vsub.f32 %v2434, %v2644
        %v2655 = vsub.f32 %v2439, %v2644
        %v2656 = vsub.f32 %v2442, %v2644
        %v2657 = vsub.f32 %v2447, %v2644
        %v2658 = vsub.f32 %v2450, %v2644
        %v2659 = vsub.f32 %v2455, %v2644
        %v2660 = vsub.f32 %v2458, %v2644
        %v2661 = vsub.f32 %v2463, %v2644
        %v2662 = vsub.f32 %v2466, %v2644
        %v2663 = vsub.f32 %v2471, %v2644
        %v2664 = vsub.f32 %v2474, %v2644
        %v2665 = vsub.f32 %v2479, %v2644
        %v2666 = vsub.f32 %v2482, %v2644
        %v2667 = vsub.f32 %v2487, %v2644
        %v2668 = vsub.f32 %v2490, %v2644
        %v2669 = vsub.f32 %v2495, %v2644
        %v2670 = vsub.f32 %v2498, %v2644
        %v2671 = vsub.f32 %v2503, %v2644
        %v2672 = vsub.f32 %v2506, %v2644
        %v2673 = vsub.f32 %v2511, %v2644
        %v2674 = vsub.f32 %v2514, %v2644
        %v2675 = vsub.f32 %v2519, %v2644
        %v2676 = vsub.f32 %v2522, %v2644
        %v2677 = vmul.f32 %v2645, 1.442695
        %v2678 = vpow.pop %v2677
        %v2679 = vmul.f32 %v2646, 1.442695
        %v2680 = vpow.pop %v2679
        %v2681 = vmul.f32 %v2647, 1.442695
        %v2682 = vpow.pop %v2681
        %v2683 = vmul.f32 %v2648, 1.442695
        %v2684 = vpow.pop %v2683
        %v2685 = vmul.f32 %v2649, 1.442695
        %v2686 = vpow.pop %v2685
        %v2687 = vmul.f32 %v2650, 1.442695
        %v2688 = vpow.pop %v2687
        %v2689 = vmul.f32 %v2651, 1.442695
        %v2690 = vpow.pop %v2689
        %v2691 = vmul.f32 %v2652, 1.442695
        %v2692 = vpow.pop %v2691
        %v2693 = vmul.f32 %v2653, 1.442695
        %v2694 = vpow.pop %v2693
        %v2695 = vmul.f32 %v2654, 1.442695
        %v2696 = vpow.pop %v2695
        %v2697 = vmul.f32 %v2655, 1.442695
        %v2698 = vpow.pop %v2697
        %v2699 = vmul.f32 %v2656, 1.442695
        %v2700 = vpow.pop %v2699
        %v2701 = vmul.f32 %v2657, 1.442695
        %v2702 = vpow.pop %v2701
        %v2703 = vmul.f32 %v2658, 1.442695
        %v2704 = vpow.pop %v2703
        %v2705 = vmul.f32 %v2659, 1.442695
        %v2706 = vpow.pop %v2705
        %v2707 = vmul.f32 %v2660, 1.442695
        %v2708 = vpow.pop %v2707
        %v2709 = vmul.f32 %v2661, 1.442695
        %v2710 = vpow.pop %v2709
        %v2711 = vmul.f32 %v2662, 1.442695
        %v2712 = vpow.pop %v2711
        %v2713 = vmul.f32 %v2663, 1.442695
        %v2714 = vpow.pop %v2713
        %v2715 = vmul.f32 %v2664, 1.442695
        %v2716 = vpow.pop %v2715
        %v2717 = vmul.f32 %v2665, 1.442695
        %v2718 = vpow.pop %v2717
        %v2719 = vmul.f32 %v2666, 1.442695
        %v2720 = vpow.pop %v2719
        %v2721 = vmul.f32 %v2667, 1.442695
        %v2722 = vpow.pop %v2721
        %v2723 = vmul.f32 %v2668, 1.442695
        %v2724 = vpow.pop %v2723
        %v2725 = vmul.f32 %v2669, 1.442695
        %v2726 = vpow.pop %v2725
        %v2727 = vmul.f32 %v2670, 1.442695
        %v2728 = vpow.pop %v2727
        %v2729 = vmul.f32 %v2671, 1.442695
        %v2730 = vpow.pop %v2729
        %v2731 = vmul.f32 %v2672, 1.442695
        %v2732 = vpow.pop %v2731
        %v2733 = vmul.f32 %v2673, 1.442695
        %v2734 = vpow.pop %v2733
        %v2735 = vmul.f32 %v2674, 1.442695
        %v2736 = vpow.pop %v2735
        %v2737 = vmul.f32 %v2675, 1.442695
        %v2738 = vpow.pop %v2737
        %v2739 = vmul.f32 %v2676, 1.442695
        %v2740 = vpow.pop %v2739
        %v2741 = vsub.f32 %v2596, %v2644
        %v2742 = vmul.f32 %v2741, 1.442695
        %v2743 = vpow.pop %v2742
        %v2744 = vadd.f32 %v2678, %v2680
        %v2745 = vadd.f32 %v2744, %v2682
        %v2746 = vadd.f32 %v2745, %v2684
        %v2747 = vadd.f32 %v2746, %v2686
        %v2748 = vadd.f32 %v2747, %v2688
        %v2749 = vadd.f32 %v2748, %v2690
        %v2750 = vadd.f32 %v2749, %v2692
        %v2751 = vadd.f32 %v2750, %v2694
        %v2752 = vadd.f32 %v2751, %v2696
        %v2753 = vadd.f32 %v2752, %v2698
        %v2754 = vadd.f32 %v2753, %v2700
        %v2755 = vadd.f32 %v2754, %v2702
        %v2756 = vadd.f32 %v2755, %v2704
        %v2757 = vadd.f32 %v2756, %v2706
        %v2758 = vadd.f32 %v2757, %v2708
        %v2759 = vadd.f32 %v2758, %v2710
        %v2760 = vadd.f32 %v2759, %v2712
        %v2761 = vadd.f32 %v2760, %v2714
        %v2762 = vadd.f32 %v2761, %v2716
        %v2763 = vadd.f32 %v2762, %v2718
        %v2764 = vadd.f32 %v2763, %v2720
        %v2765 = vadd.f32 %v2764, %v2722
        %v2766 = vadd.f32 %v2765, %v2724
        %v2767 = vadd.f32 %v2766, %v2726
        %v2768 = vadd.f32 %v2767, %v2728
        %v2769 = vadd.f32 %v2768, %v2730
        %v2770 = vadd.f32 %v2769, %v2732
        %v2771 = vadd.f32 %v2770, %v2734
        %v2772 = vadd.f32 %v2771, %v2736
        %v2773 = vadd.f32 %v2772, %v2738
        %v2774 = vadd.f32 %v2773, %v2740
        %v2775 = vrot.slane %v2774, 4
        %v2776 = vadd.f32 %v2774, %v2775
        %v2777 = vrot.slane %v2776, 2
        %v2778 = vadd.f32 %v2776, %v2777
        %v2779 = vrot.slane %v2778, 1
        %v2780 = vadd.f32 %v2778, %v2779
        %v2781 = vrot.slane %v2743, 4
        %v2782 = vadd.f32 %v2743, %v2781
        %v2783 = vrot.slane %v2782, 2
        %v2784 = vadd.f32 %v2782, %v2783
        %v2785 = vrot.slane %v2784, 1
        %v2786 = vadd.f32 %v2784, %v2785
        %v2787 = vadd.f32 %v2780, %v2786
        %v2788 = vpack.c.bf16 %v2680, %v2678
        %v2789 = vpack.c.bf16 %v2684, %v2682
        %v2790 = vpack.c.bf16 %v2688, %v2686
        %v2791 = vpack.c.bf16 %v2692, %v2690
        %v2792 = vpack.c.bf16 %v2696, %v2694
        %v2793 = vpack.c.bf16 %v2700, %v2698
        %v2794 = vpack.c.bf16 %v2704, %v2702
        %v2795 = vpack.c.bf16 %v2708, %v2706
        %v2796 = vpack.c.bf16 %v2712, %v2710
        %v2797 = vpack.c.bf16 %v2716, %v2714
        %v2798 = vpack.c.bf16 %v2720, %v2718
        %v2799 = vpack.c.bf16 %v2724, %v2722
        %v2800 = vpack.c.bf16 %v2728, %v2726
        %v2801 = vpack.c.bf16 %v2732, %v2730
        %v2802 = vpack.c.bf16 %v2736, %v2734
        %v2803 = vpack.c.bf16 %v2740, %v2738
        %s2804 = scalar_lea.vmem %s3, 32
        %v2805 = vld [vmem:[%s2804] sm:$0xf]
        %v2806 = vld [vmem:[%s2804 + $0x4] sm:$0xf]
        %v2807 = vld [vmem:[%s2804 + $0x8] sm:$0xf]
        %v2808 = vld [vmem:[%s2804 + $0xc] sm:$0xf]
        %v2809 = vpack.c.bf16 %v2743, %v2743
        %v2814 = vunpack.c.l.b16 %v2805
        %v2815 = vunpack.c.l.b16 %v2806
        %v2816 = vunpack.c.l.b16 %v2807
        %v2817 = vunpack.c.l.b16 %v2808
        %v2818 = vpack.c.b16 %v2815, %v2814
        %v2819 = vpack.c.b16 %v2817, %v2816
        %v2821 = vsel %vm1494, %v2818, 0
        %v2824 = vsel %vm1494, %v2819, 0
        %v2827 = vsel %vm1501, %v2809, 0
        %2829 = vmatprep.subr.bf16.mxu0 0
        %2830 = vmatpush1.bf16.msra.mxu0 %v2827
        %2831 = vmatprep.subr.bf16.mxu0 0
        %2832 = vmatpush1.bf16.msra.mxu0 0
        %2833 = vmatprep.subr.bf16.mxu0 0
        %2834 = vmatpush1.bf16.msra.mxu0 0
        %2835 = vmatprep.subr.bf16.mxu0 0
        %2836 = vmatpush1.bf16.msra.mxu0 0
        %2837 = vmatprep.subr.bf16.mxu0 0
        %2838 = vmatpush1.bf16.msra.mxu0 0
        %2839 = vmatprep.subr.bf16.mxu0 0
        %2840 = vmatpush1.bf16.msra.mxu0 0
        %2841 = vmatprep.subr.bf16.mxu0 0
        %2842 = vmatpush1.bf16.msra.mxu0 0
        %2843 = vmatprep.subr.bf16.mxu0 0
        %2844 = vmatpush1.bf16.msra.mxu0 0
        %2845 = vmatprep.subr.bf16.mxu0 0
        %2846 = vmatpush1.bf16.msra.mxu0 0
        %2847 = vmatprep.subr.bf16.mxu0 0
        %2848 = vmatpush1.bf16.msra.mxu0 0
        %2849 = vmatprep.subr.bf16.mxu0 0
        %2850 = vmatpush1.bf16.msra.mxu0 0
        %2851 = vmatprep.subr.bf16.mxu0 0
        %2852 = vmatpush1.bf16.msra.mxu0 0
        %2853 = vmatprep.subr.bf16.mxu0 0
        %2854 = vmatpush1.bf16.msra.mxu0 0
        %2855 = vmatprep.subr.bf16.mxu0 0
        %2856 = vmatpush1.bf16.msra.mxu0 0
        %2857 = vmatprep.subr.bf16.mxu0 0
        %2858 = vmatpush1.bf16.msra.mxu0 0
        %2859 = vmatprep.subr.bf16.mxu0 0
        %2860 = vmatpush1.bf16.msra.mxu0 0
        %2861 = vmatprep.mubr.bf16.mxu0 0
        %2862 = vmatmul.mubr.bf16.gmra.mrb[0].mxu0 %v2821
        %v2863 = vpop.f32.mrb[0].mxu0
        %v2864 = vadd.f32 0.0, %v2863
        %v2865 = vpop.f32.mrb[0].mxu0
        %v2866 = vpop.f32.mrb[0].mxu0
        %v2867 = vadd.f32 0.0, %v2866
        %v2868 = vpop.f32.mrb[0].mxu0
        %2869 = vmatprep.mubr.bf16.mxu0 0
        %2870 = vmatmul.mubr.bf16.gmra.mrb[0].mxu0 %v2824
        %v2871 = vpop.f32.mrb[0].mxu0
        %v2872 = vadd.f32 0.0, %v2871
        %v2873 = vpop.f32.mrb[0].mxu0
        %v2874 = vpop.f32.mrb[0].mxu0
        %v2875 = vadd.f32 0.0, %v2874
        %v2876 = vpop.f32.mrb[0].mxu0
        %2877 = vdwg.mxu0
        %2878 = vmatprep.subr.bf16.mxu0 0
        %2879 = vmatpush1.bf16.msra.mxu0 %v2788
        %2880 = vmatprep.subr.bf16.mxu0 0
        %2881 = vmatpush1.bf16.msra.mxu0 %v2789
        %2882 = vmatprep.subr.bf16.mxu0 0
        %2883 = vmatpush1.bf16.msra.mxu0 %v2790
        %2884 = vmatprep.subr.bf16.mxu0 0
        %2885 = vmatpush1.bf16.msra.mxu0 %v2791
        %2886 = vmatprep.subr.bf16.mxu0 0
        %2887 = vmatpush1.bf16.msra.mxu0 %v2792
        %2888 = vmatprep.subr.bf16.mxu0 0
        %2889 = vmatpush1.bf16.msra.mxu0 %v2793
        %2890 = vmatprep.subr.bf16.mxu0 0
        %2891 = vmatpush1.bf16.msra.mxu0 %v2794
        %2892 = vmatprep.subr.bf16.mxu0 0
        %2893 = vmatpush1.bf16.msra.mxu0 %v2795
        %2894 = vmatprep.subr.bf16.mxu0 0
        %2895 = vmatpush1.bf16.msra.mxu0 %v2796
        %2896 = vmatprep.subr.bf16.mxu0 0
        %2897 = vmatpush1.bf16.msra.mxu0 %v2797
        %2898 = vmatprep.subr.bf16.mxu0 0
        %2899 = vmatpush1.bf16.msra.mxu0 %v2798
        %2900 = vmatprep.subr.bf16.mxu0 0
        %2901 = vmatpush1.bf16.msra.mxu0 %v2799
        %2902 = vmatprep.subr.bf16.mxu0 0
        %2903 = vmatpush1.bf16.msra.mxu0 %v2800
        %2904 = vmatprep.subr.bf16.mxu0 0
        %2905 = vmatpush1.bf16.msra.mxu0 %v2801
        %2906 = vmatprep.subr.bf16.mxu0 0
        %2907 = vmatpush1.bf16.msra.mxu0 %v2802
        %2908 = vmatprep.subr.bf16.mxu0 0
        %2909 = vmatpush1.bf16.msra.mxu0 %v2803
        %2910 = vmatprep.mubr.bf16.mxu0 %v2281
        %2911 = vmatmul.mubr.bf16.gmra.mrb[0].mxu0 %v2280
        %v2912 = vpop.f32.mrb[0].mxu0
        %v2913 = vadd.f32 %v2864, %v2912
        %v2914 = vpop.f32.mrb[0].mxu0
        %v2915 = vpop.f32.mrb[0].mxu0
        %v2916 = vadd.f32 %v2867, %v2915
        %v2917 = vpop.f32.mrb[0].mxu0
        %2918 = vmatprep.mubr.bf16.mxu0 %v2283
        %2919 = vmatmul.mubr.bf16.gmra.mrb[0].mxu0 %v2282
        %v2920 = vpop.f32.mrb[0].mxu0
        %v2921 = vadd.f32 %v2872, %v2920
        %v2922 = vpop.f32.mrb[0].mxu0
        %v2923 = vpop.f32.mrb[0].mxu0
        %v2924 = vadd.f32 %v2875, %v2923
        %v2925 = vpop.f32.mrb[0].mxu0
        %2926 = vdwg.mxu0
        %v2927 = vrcp.pop %v2787
        %v2928 = vmul.f32 %v2913, %v2927
        %v2929 = vmul.f32 %v2916, %v2927
        %v2930 = vmul.f32 %v2921, %v2927
        %v2931 = vmul.f32 %v2924, %v2927
        %v2932 = vpack.c.bf16 %v2929, %v2928
        %v2933 = vpack.c.bf16 %v2931, %v2930
        %2934 = vst [vmem:[#allocation3 + $0x20] sm:$0xff] %v2932
        %2935 = vst [vmem:[#allocation3 + $0x28] sm:$0xff] %v2933
        %v2936 = vld [vmem:[%s943 + $0x60] sm:$0xff]
        %v2937 = vld [vmem:[%s943 + $0x70] sm:$0xff]
        %v2938 = vld [vmem:[#allocation2 + $0xe0] sm:$0xff]
        %v2939 = vld [vmem:[#allocation2 + $0xe8] sm:$0xff]
        %v2940 = vld [vmem:[#allocation2 + $0xf0] sm:$0xff]
        %v2941 = vld [vmem:[#allocation2 + $0xf8] sm:$0xff]
        %v2942 = vld [vmem:[#allocation2 + $0x160] sm:$0xff]
        %v2943 = vld [vmem:[#allocation2 + $0x168] sm:$0xff]
        %v2944 = vld [vmem:[#allocation2 + $0x170] sm:$0xff]
        %v2945 = vld [vmem:[#allocation2 + $0x178] sm:$0xff]
        %2946 = vxpose.xlu0.c.b16.start [1/8] %v2938, 128
        %2947 = vxpose.xlu0.c.b16.cont [2/8] %v2940, 128
        %2948 = vxpose.xlu0.c.b16.cont [3/8] 0, 128
        %2949 = vxpose.xlu0.c.b16.cont [4/8] 0, 128
        %2950 = vxpose.xlu0.c.b16.cont [5/8] 0, 128
        %2951 = vxpose.xlu0.c.b16.cont [6/8] 0, 128
        %2952 = vxpose.xlu0.c.b16.cont [7/8] 0, 128
        %2953 = vxpose.xlu0.c.b16.end [8/8] 0, 128
        %v2954 = vpop.trf.xlu0
        %v2955 = vpop.trf.xlu0
        %v2956 = vpop.trf.xlu0
        %v2957 = vpop.trf.xlu0
        %v2958 = vpop.trf.xlu0
        %v2959 = vpop.trf.xlu0
        %v2960 = vpop.trf.xlu0
        %v2961 = vpop.trf.xlu0
        %2962 = vxpose.xlu0.c.b16.start [1/8] %v2939, 128
        %2963 = vxpose.xlu0.c.b16.cont [2/8] %v2941, 128
        %2964 = vxpose.xlu0.c.b16.cont [3/8] 0, 128
        %2965 = vxpose.xlu0.c.b16.cont [4/8] 0, 128
        %2966 = vxpose.xlu0.c.b16.cont [5/8] 0, 128
        %2967 = vxpose.xlu0.c.b16.cont [6/8] 0, 128
        %2968 = vxpose.xlu0.c.b16.cont [7/8] 0, 128
        %2969 = vxpose.xlu0.c.b16.end [8/8] 0, 128
        %v2970 = vpop.trf.xlu0
        %v2971 = vpop.trf.xlu0
        %v2972 = vpop.trf.xlu0
        %v2973 = vpop.trf.xlu0
        %v2974 = vpop.trf.xlu0
        %v2975 = vpop.trf.xlu0
        %v2976 = vpop.trf.xlu0
        %v2977 = vpop.trf.xlu0
        %v2979 = vsel %vm986, %v2954, 0
        %v2982 = vsel %vm986, %v2955, 0
        %v2985 = vsel %vm986, %v2956, 0
        %v2988 = vsel %vm986, %v2957, 0
        %v2991 = vsel %vm986, %v2958, 0
        %v2994 = vsel %vm986, %v2959, 0
        %v2997 = vsel %vm986, %v2960, 0
        %v3000 = vsel %vm986, %v2961, 0
        %v3003 = vsel %vm986, %v2970, 0
        %v3006 = vsel %vm986, %v2971, 0
        %v3009 = vsel %vm986, %v2972, 0
        %v3012 = vsel %vm986, %v2973, 0
        %v3015 = vsel %vm986, %v2974, 0
        %v3018 = vsel %vm986, %v2975, 0
        %v3021 = vsel %vm986, %v2976, 0
        %v3024 = vsel %vm986, %v2977, 0
        %3026 = vmatprep.subr.bf16.mxu0 0
        %3027 = vmatpush1.bf16.msra.mxu0 %v2936
        %3028 = vmatprep.subr.bf16.mxu0 0
        %3029 = vmatpush1.bf16.msra.mxu0 %v2937
        %3030 = vmatprep.subr.bf16.mxu0 0
        %3031 = vmatpush1.bf16.msra.mxu0 0
        %3032 = vmatprep.subr.bf16.mxu0 0
        %3033 = vmatpush1.bf16.msra.mxu0 0
        %3034 = vmatprep.subr.bf16.mxu0 0
        %3035 = vmatpush1.bf16.msra.mxu0 0
        %3036 = vmatprep.subr.bf16.mxu0 0
        %3037 = vmatpush1.bf16.msra.mxu0 0
        %3038 = vmatprep.subr.bf16.mxu0 0
        %3039 = vmatpush1.bf16.msra.mxu0 0
        %3040 = vmatprep.subr.bf16.mxu0 0
        %3041 = vmatpush1.bf16.msra.mxu0 0
        %3042 = vmatprep.subr.bf16.mxu0 0
        %3043 = vmatpush1.bf16.msra.mxu0 0
        %3044 = vmatprep.subr.bf16.mxu0 0
        %3045 = vmatpush1.bf16.msra.mxu0 0
        %3046 = vmatprep.subr.bf16.mxu0 0
        %3047 = vmatpush1.bf16.msra.mxu0 0
        %3048 = vmatprep.subr.bf16.mxu0 0
        %3049 = vmatpush1.bf16.msra.mxu0 0
        %3050 = vmatprep.subr.bf16.mxu0 0
        %3051 = vmatpush1.bf16.msra.mxu0 0
        %3052 = vmatprep.subr.bf16.mxu0 0
        %3053 = vmatpush1.bf16.msra.mxu0 0
        %3054 = vmatprep.subr.bf16.mxu0 0
        %3055 = vmatpush1.bf16.msra.mxu0 0
        %3056 = vmatprep.subr.bf16.mxu0 0
        %3057 = vmatpush1.bf16.msra.mxu0 0
        %3058 = vmatprep.mubr.bf16.mxu0 0
        %3059 = vmatmul.mubr.bf16.gmra.mrb[0].mxu0 %v2979
        %v3060 = vpop.f32.mrb[0].mxu0
        %v3061 = vadd.f32 0.0, %v3060
        %v3062 = vpop.f32.mrb[0].mxu0
        %v3063 = vpop.f32.mrb[0].mxu0
        %v3064 = vadd.f32 0.0, %v3063
        %v3065 = vpop.f32.mrb[0].mxu0
        %3066 = vmatprep.mubr.bf16.mxu0 0
        %3067 = vmatmul.mubr.bf16.gmra.mrb[0].mxu0 %v2982
        %v3068 = vpop.f32.mrb[0].mxu0
        %v3069 = vadd.f32 0.0, %v3068
        %v3070 = vpop.f32.mrb[0].mxu0
        %v3071 = vpop.f32.mrb[0].mxu0
        %v3072 = vadd.f32 0.0, %v3071
        %v3073 = vpop.f32.mrb[0].mxu0
        %3074 = vmatprep.mubr.bf16.mxu0 0
        %3075 = vmatmul.mubr.bf16.gmra.mrb[0].mxu0 %v2985
        %v3076 = vpop.f32.mrb[0].mxu0
        %v3077 = vadd.f32 0.0, %v3076
        %v3078 = vpop.f32.mrb[0].mxu0
        %v3079 = vpop.f32.mrb[0].mxu0
        %v3080 = vadd.f32 0.0, %v3079
        %v3081 = vpop.f32.mrb[0].mxu0
        %3082 = vmatprep.mubr.bf16.mxu0 0
        %3083 = vmatmul.mubr.bf16.gmra.mrb[0].mxu0 %v2988
        %v3084 = vpop.f32.mrb[0].mxu0
        %v3085 = vadd.f32 0.0, %v3084
        %v3086 = vpop.f32.mrb[0].mxu0
        %v3087 = vpop.f32.mrb[0].mxu0
        %v3088 = vadd.f32 0.0, %v3087
        %v3089 = vpop.f32.mrb[0].mxu0
        %3090 = vmatprep.mubr.bf16.mxu0 0
        %3091 = vmatmul.mubr.bf16.gmra.mrb[0].mxu0 %v2991
        %v3092 = vpop.f32.mrb[0].mxu0
        %v3093 = vadd.f32 0.0, %v3092
        %v3094 = vpop.f32.mrb[0].mxu0
        %v3095 = vpop.f32.mrb[0].mxu0
        %v3096 = vadd.f32 0.0, %v3095
        %v3097 = vpop.f32.mrb[0].mxu0
        %3098 = vmatprep.mubr.bf16.mxu0 0
        %3099 = vmatmul.mubr.bf16.gmra.mrb[0].mxu0 %v2994
        %v3100 = vpop.f32.mrb[0].mxu0
        %v3101 = vadd.f32 0.0, %v3100
        %v3102 = vpop.f32.mrb[0].mxu0
        %v3103 = vpop.f32.mrb[0].mxu0
        %v3104 = vadd.f32 0.0, %v3103
        %v3105 = vpop.f32.mrb[0].mxu0
        %3106 = vmatprep.mubr.bf16.mxu0 0
        %3107 = vmatmul.mubr.bf16.gmra.mrb[0].mxu0 %v2997
        %v3108 = vpop.f32.mrb[0].mxu0
        %v3109 = vadd.f32 0.0, %v3108
        %v3110 = vpop.f32.mrb[0].mxu0
        %v3111 = vpop.f32.mrb[0].mxu0
        %v3112 = vadd.f32 0.0, %v3111
        %v3113 = vpop.f32.mrb[0].mxu0
        %3114 = vmatprep.mubr.bf16.mxu0 0
        %3115 = vmatmul.mubr.bf16.gmra.mrb[0].mxu0 %v3000
        %v3116 = vpop.f32.mrb[0].mxu0
        %v3117 = vadd.f32 0.0, %v3116
        %v3118 = vpop.f32.mrb[0].mxu0
        %v3119 = vpop.f32.mrb[0].mxu0
        %v3120 = vadd.f32 0.0, %v3119
        %v3121 = vpop.f32.mrb[0].mxu0
        %3122 = vmatprep.mubr.bf16.mxu0 0
        %3123 = vmatmul.mubr.bf16.gmra.mrb[0].mxu0 %v3003
        %v3124 = vpop.f32.mrb[0].mxu0
        %v3125 = vadd.f32 0.0, %v3124
        %v3126 = vpop.f32.mrb[0].mxu0
        %v3127 = vpop.f32.mrb[0].mxu0
        %v3128 = vadd.f32 0.0, %v3127
        %v3129 = vpop.f32.mrb[0].mxu0
        %3130 = vmatprep.mubr.bf16.mxu0 0
        %3131 = vmatmul.mubr.bf16.gmra.mrb[0].mxu0 %v3006
        %v3132 = vpop.f32.mrb[0].mxu0
        %v3133 = vadd.f32 0.0, %v3132
        %v3134 = vpop.f32.mrb[0].mxu0
        %v3135 = vpop.f32.mrb[0].mxu0
        %v3136 = vadd.f32 0.0, %v3135
        %v3137 = vpop.f32.mrb[0].mxu0
        %3138 = vmatprep.mubr.bf16.mxu0 0
        %3139 = vmatmul.mubr.bf16.gmra.mrb[0].mxu0 %v3009
        %v3140 = vpop.f32.mrb[0].mxu0
        %v3141 = vadd.f32 0.0, %v3140
        %v3142 = vpop.f32.mrb[0].mxu0
        %v3143 = vpop.f32.mrb[0].mxu0
        %v3144 = vadd.f32 0.0, %v3143
        %v3145 = vpop.f32.mrb[0].mxu0
        %3146 = vmatprep.mubr.bf16.mxu0 0
        %3147 = vmatmul.mubr.bf16.gmra.mrb[0].mxu0 %v3012
        %v3148 = vpop.f32.mrb[0].mxu0
        %v3149 = vadd.f32 0.0, %v3148
        %v3150 = vpop.f32.mrb[0].mxu0
        %v3151 = vpop.f32.mrb[0].mxu0
        %v3152 = vadd.f32 0.0, %v3151
        %v3153 = vpop.f32.mrb[0].mxu0
        %3154 = vmatprep.mubr.bf16.mxu0 0
        %3155 = vmatmul.mubr.bf16.gmra.mrb[0].mxu0 %v3015
        %v3156 = vpop.f32.mrb[0].mxu0
        %v3157 = vadd.f32 0.0, %v3156
        %v3158 = vpop.f32.mrb[0].mxu0
        %v3159 = vpop.f32.mrb[0].mxu0
        %v3160 = vadd.f32 0.0, %v3159
        %v3161 = vpop.f32.mrb[0].mxu0
        %3162 = vmatprep.mubr.bf16.mxu0 0
        %3163 = vmatmul.mubr.bf16.gmra.mrb[0].mxu0 %v3018
        %v3164 = vpop.f32.mrb[0].mxu0
        %v3165 = vadd.f32 0.0, %v3164
        %v3166 = vpop.f32.mrb[0].mxu0
        %v3167 = vpop.f32.mrb[0].mxu0
        %v3168 = vadd.f32 0.0, %v3167
        %v3169 = vpop.f32.mrb[0].mxu0
        %3170 = vmatprep.mubr.bf16.mxu0 0
        %3171 = vmatmul.mubr.bf16.gmra.mrb[0].mxu0 %v3021
        %v3172 = vpop.f32.mrb[0].mxu0
        %v3173 = vadd.f32 0.0, %v3172
        %v3174 = vpop.f32.mrb[0].mxu0
        %v3175 = vpop.f32.mrb[0].mxu0
        %v3176 = vadd.f32 0.0, %v3175
        %v3177 = vpop.f32.mrb[0].mxu0
        %3178 = vmatprep.mubr.bf16.mxu0 0
        %3179 = vmatmul.mubr.bf16.gmra.mrb[0].mxu0 %v3024
        %v3180 = vpop.f32.mrb[0].mxu0
        %v3181 = vadd.f32 0.0, %v3180
        %v3182 = vpop.f32.mrb[0].mxu0
        %v3183 = vpop.f32.mrb[0].mxu0
        %v3184 = vadd.f32 0.0, %v3183
        %v3185 = vpop.f32.mrb[0].mxu0
        %3186 = vdwg.mxu0
        %s3187 = scalar_lea.vmem %s2, 48
        %v3188 = vld [vmem:[%s3187] sm:$0xf]
        %v3189 = vld [vmem:[%s3187 + $0x4] sm:$0xf]
        %v3190 = vld [vmem:[%s3187 + $0x8] sm:$0xf]
        %v3191 = vld [vmem:[%s3187 + $0xc] sm:$0xf]
        %v3196 = vunpack.c.l.b16 %v3188
        %v3197 = vunpack.c.l.b16 %v3189
        %v3198 = vunpack.c.l.b16 %v3190
        %v3199 = vunpack.c.l.b16 %v3191
        %v3200 = vpack.c.b16 %v3197, %v3196
        %v3201 = vpack.c.b16 %v3199, %v3198
        %3204 = vxpose.xlu0.c.b16.start [1/8] %v3200, 128
        %3205 = vxpose.xlu0.c.b16.cont [2/8] %v3201, 128
        %3206 = vxpose.xlu0.c.b16.cont [3/8] 0, 128
        %3207 = vxpose.xlu0.c.b16.cont [4/8] 0, 128
        %3208 = vxpose.xlu0.c.b16.cont [5/8] 0, 128
        %3209 = vxpose.xlu0.c.b16.cont [6/8] 0, 128
        %3210 = vxpose.xlu0.c.b16.cont [7/8] 0, 128
        %3211 = vxpose.xlu0.c.b16.end [8/8] 0, 128
        %v3212 = vpop.trf.xlu0
        %v3213 = vpop.trf.xlu0
        %v3214 = vpop.trf.xlu0
        %v3215 = vpop.trf.xlu0
        %v3216 = vpop.trf.xlu0
        %v3217 = vpop.trf.xlu0
        %v3218 = vpop.trf.xlu0
        %v3219 = vpop.trf.xlu0
        %v3221 = vsel %vm986, %v3212, 0
        %3223 = vmatprep.subr.bf16.mxu0 0
        %3224 = vmatpush1.bf16.msra.mxu0 %v2936
        %3225 = vmatprep.subr.bf16.mxu0 0
        %3226 = vmatpush1.bf16.msra.mxu0 %v2937
        %3227 = vmatprep.subr.bf16.mxu0 0
        %3228 = vmatpush1.bf16.msra.mxu0 0
        %3229 = vmatprep.subr.bf16.mxu0 0
        %3230 = vmatpush1.bf16.msra.mxu0 0
        %3231 = vmatprep.subr.bf16.mxu0 0
        %3232 = vmatpush1.bf16.msra.mxu0 0
        %3233 = vmatprep.subr.bf16.mxu0 0
        %3234 = vmatpush1.bf16.msra.mxu0 0
        %3235 = vmatprep.subr.bf16.mxu0 0
        %3236 = vmatpush1.bf16.msra.mxu0 0
        %3237 = vmatprep.subr.bf16.mxu0 0
        %3238 = vmatpush1.bf16.msra.mxu0 0
        %3239 = vmatprep.subr.bf16.mxu0 0
        %3240 = vmatpush1.bf16.msra.mxu0 0
        %3241 = vmatprep.subr.bf16.mxu0 0
        %3242 = vmatpush1.bf16.msra.mxu0 0
        %3243 = vmatprep.subr.bf16.mxu0 0
        %3244 = vmatpush1.bf16.msra.mxu0 0
        %3245 = vmatprep.subr.bf16.mxu0 0
        %3246 = vmatpush1.bf16.msra.mxu0 0
        %3247 = vmatprep.subr.bf16.mxu0 0
        %3248 = vmatpush1.bf16.msra.mxu0 0
        %3249 = vmatprep.subr.bf16.mxu0 0
        %3250 = vmatpush1.bf16.msra.mxu0 0
        %3251 = vmatprep.subr.bf16.mxu0 0
        %3252 = vmatpush1.bf16.msra.mxu0 0
        %3253 = vmatprep.subr.bf16.mxu0 0
        %3254 = vmatpush1.bf16.msra.mxu0 0
        %3255 = vmatprep.mubr.bf16.mxu0 0
        %3256 = vmatmul.mubr.bf16.gmra.mrb[0].mxu0 %v3221
        %v3257 = vpop.f32.mrb[0].mxu0
        %v3258 = vadd.f32 %v1203, %v3257
        %v3259 = vpop.f32.mrb[0].mxu0
        %v3260 = vpop.f32.mrb[0].mxu0
        %v3261 = vpop.f32.mrb[0].mxu0
        %3262 = vdwg.mxu0
        %v3263 = vmax.f32 %v3061, %v3077
        %v3264 = vmax.f32 %v3064, %v3080
        %v3265 = vmax.f32 %v3069, %v3085
        %v3266 = vmax.f32 %v3072, %v3088
        %v3267 = vmax.f32 %v3263, %v3093
        %v3268 = vmax.f32 %v3264, %v3096
        %v3269 = vmax.f32 %v3265, %v3101
        %v3270 = vmax.f32 %v3266, %v3104
        %v3271 = vmax.f32 %v3267, %v3109
        %v3272 = vmax.f32 %v3268, %v3112
        %v3273 = vmax.f32 %v3269, %v3117
        %v3274 = vmax.f32 %v3270, %v3120
        %v3275 = vmax.f32 %v3271, %v3125
        %v3276 = vmax.f32 %v3272, %v3128
        %v3277 = vmax.f32 %v3273, %v3133
        %v3278 = vmax.f32 %v3274, %v3136
        %v3279 = vmax.f32 %v3275, %v3141
        %v3280 = vmax.f32 %v3276, %v3144
        %v3281 = vmax.f32 %v3277, %v3149
        %v3282 = vmax.f32 %v3278, %v3152
        %v3283 = vmax.f32 %v3279, %v3157
        %v3284 = vmax.f32 %v3280, %v3160
        %v3285 = vmax.f32 %v3281, %v3165
        %v3286 = vmax.f32 %v3282, %v3168
        %v3287 = vmax.f32 %v3283, %v3173
        %v3288 = vmax.f32 %v3284, %v3176
        %v3289 = vmax.f32 %v3285, %v3181
        %v3290 = vmax.f32 %v3286, %v3184
        %v3291 = vmax.f32 %v3287, %v3288
        %v3292 = vmax.f32 %v3289, %v3290
        %v3293 = vmax.f32 %v3291, %v3292
        %v3294 = vrot.slane %v3293, 4
        %v3295 = vmax.f32 %v3293, %v3294
        %v3296 = vrot.slane %v3295, 2
        %v3297 = vmax.f32 %v3295, %v3296
        %v3298 = vrot.slane %v3297, 1
        %v3299 = vmax.f32 %v3297, %v3298
        %v3300 = vrot.slane %v3258, 4
        %v3301 = vmax.f32 %v3258, %v3300
        %v3302 = vrot.slane %v3301, 2
        %v3303 = vmax.f32 %v3301, %v3302
        %v3304 = vrot.slane %v3303, 1
        %v3305 = vmax.f32 %v3303, %v3304
        %v3306 = vmax.f32 %v3299, %v3305
        %v3307 = vsub.f32 %v3061, %v3306
        %v3308 = vsub.f32 %v3064, %v3306
        %v3309 = vsub.f32 %v3069, %v3306
        %v3310 = vsub.f32 %v3072, %v3306
        %v3311 = vsub.f32 %v3077, %v3306
        %v3312 = vsub.f32 %v3080, %v3306
        %v3313 = vsub.f32 %v3085, %v3306
        %v3314 = vsub.f32 %v3088, %v3306
        %v3315 = vsub.f32 %v3093, %v3306
        %v3316 = vsub.f32 %v3096, %v3306
        %v3317 = vsub.f32 %v3101, %v3306
        %v3318 = vsub.f32 %v3104, %v3306
        %v3319 = vsub.f32 %v3109, %v3306
        %v3320 = vsub.f32 %v3112, %v3306
        %v3321 = vsub.f32 %v3117, %v3306
        %v3322 = vsub.f32 %v3120, %v3306
        %v3323 = vsub.f32 %v3125, %v3306
        %v3324 = vsub.f32 %v3128, %v3306
        %v3325 = vsub.f32 %v3133, %v3306
        %v3326 = vsub.f32 %v3136, %v3306
        %v3327 = vsub.f32 %v3141, %v3306
        %v3328 = vsub.f32 %v3144, %v3306
        %v3329 = vsub.f32 %v3149, %v3306
        %v3330 = vsub.f32 %v3152, %v3306
        %v3331 = vsub.f32 %v3157, %v3306
        %v3332 = vsub.f32 %v3160, %v3306
        %v3333 = vsub.f32 %v3165, %v3306
        %v3334 = vsub.f32 %v3168, %v3306
        %v3335 = vsub.f32 %v3173, %v3306
        %v3336 = vsub.f32 %v3176, %v3306
        %v3337 = vsub.f32 %v3181, %v3306
        %v3338 = vsub.f32 %v3184, %v3306
        %v3339 = vmul.f32 %v3307, 1.442695
        %v3340 = vpow.pop %v3339
        %v3341 = vmul.f32 %v3308, 1.442695
        %v3342 = vpow.pop %v3341
        %v3343 = vmul.f32 %v3309, 1.442695
        %v3344 = vpow.pop %v3343
        %v3345 = vmul.f32 %v3310, 1.442695
        %v3346 = vpow.pop %v3345
        %v3347 = vmul.f32 %v3311, 1.442695
        %v3348 = vpow.pop %v3347
        %v3349 = vmul.f32 %v3312, 1.442695
        %v3350 = vpow.pop %v3349
        %v3351 = vmul.f32 %v3313, 1.442695
        %v3352 = vpow.pop %v3351
        %v3353 = vmul.f32 %v3314, 1.442695
        %v3354 = vpow.pop %v3353
        %v3355 = vmul.f32 %v3315, 1.442695
        %v3356 = vpow.pop %v3355
        %v3357 = vmul.f32 %v3316, 1.442695
        %v3358 = vpow.pop %v3357
        %v3359 = vmul.f32 %v3317, 1.442695
        %v3360 = vpow.pop %v3359
        %v3361 = vmul.f32 %v3318, 1.442695
        %v3362 = vpow.pop %v3361
        %v3363 = vmul.f32 %v3319, 1.442695
        %v3364 = vpow.pop %v3363
        %v3365 = vmul.f32 %v3320, 1.442695
        %v3366 = vpow.pop %v3365
        %v3367 = vmul.f32 %v3321, 1.442695
        %v3368 = vpow.pop %v3367
        %v3369 = vmul.f32 %v3322, 1.442695
        %v3370 = vpow.pop %v3369
        %v3371 = vmul.f32 %v3323, 1.442695
        %v3372 = vpow.pop %v3371
        %v3373 = vmul.f32 %v3324, 1.442695
        %v3374 = vpow.pop %v3373
        %v3375 = vmul.f32 %v3325, 1.442695
        %v3376 = vpow.pop %v3375
        %v3377 = vmul.f32 %v3326, 1.442695
        %v3378 = vpow.pop %v3377
        %v3379 = vmul.f32 %v3327, 1.442695
        %v3380 = vpow.pop %v3379
        %v3381 = vmul.f32 %v3328, 1.442695
        %v3382 = vpow.pop %v3381
        %v3383 = vmul.f32 %v3329, 1.442695
        %v3384 = vpow.pop %v3383
        %v3385 = vmul.f32 %v3330, 1.442695
        %v3386 = vpow.pop %v3385
        %v3387 = vmul.f32 %v3331, 1.442695
        %v3388 = vpow.pop %v3387
        %v3389 = vmul.f32 %v3332, 1.442695
        %v3390 = vpow.pop %v3389
        %v3391 = vmul.f32 %v3333, 1.442695
        %v3392 = vpow.pop %v3391
        %v3393 = vmul.f32 %v3334, 1.442695
        %v3394 = vpow.pop %v3393
        %v3395 = vmul.f32 %v3335, 1.442695
        %v3396 = vpow.pop %v3395
        %v3397 = vmul.f32 %v3336, 1.442695
        %v3398 = vpow.pop %v3397
        %v3399 = vmul.f32 %v3337, 1.442695
        %v3400 = vpow.pop %v3399
        %v3401 = vmul.f32 %v3338, 1.442695
        %v3402 = vpow.pop %v3401
        %v3403 = vsub.f32 %v3258, %v3306
        %v3404 = vmul.f32 %v3403, 1.442695
        %v3405 = vpow.pop %v3404
        %v3406 = vadd.f32 %v3340, %v3342
        %v3407 = vadd.f32 %v3406, %v3344
        %v3408 = vadd.f32 %v3407, %v3346
        %v3409 = vadd.f32 %v3408, %v3348
        %v3410 = vadd.f32 %v3409, %v3350
        %v3411 = vadd.f32 %v3410, %v3352
        %v3412 = vadd.f32 %v3411, %v3354
        %v3413 = vadd.f32 %v3412, %v3356
        %v3414 = vadd.f32 %v3413, %v3358
        %v3415 = vadd.f32 %v3414, %v3360
        %v3416 = vadd.f32 %v3415, %v3362
        %v3417 = vadd.f32 %v3416, %v3364
        %v3418 = vadd.f32 %v3417, %v3366
        %v3419 = vadd.f32 %v3418, %v3368
        %v3420 = vadd.f32 %v3419, %v3370
        %v3421 = vadd.f32 %v3420, %v3372
        %v3422 = vadd.f32 %v3421, %v3374
        %v3423 = vadd.f32 %v3422, %v3376
        %v3424 = vadd.f32 %v3423, %v3378
        %v3425 = vadd.f32 %v3424, %v3380
        %v3426 = vadd.f32 %v3425, %v3382
        %v3427 = vadd.f32 %v3426, %v3384
        %v3428 = vadd.f32 %v3427, %v3386
        %v3429 = vadd.f32 %v3428, %v3388
        %v3430 = vadd.f32 %v3429, %v3390
        %v3431 = vadd.f32 %v3430, %v3392
        %v3432 = vadd.f32 %v3431, %v3394
        %v3433 = vadd.f32 %v3432, %v3396
        %v3434 = vadd.f32 %v3433, %v3398
        %v3435 = vadd.f32 %v3434, %v3400
        %v3436 = vadd.f32 %v3435, %v3402
        %v3437 = vrot.slane %v3436, 4
        %v3438 = vadd.f32 %v3436, %v3437
        %v3439 = vrot.slane %v3438, 2
        %v3440 = vadd.f32 %v3438, %v3439
        %v3441 = vrot.slane %v3440, 1
        %v3442 = vadd.f32 %v3440, %v3441
        %v3443 = vrot.slane %v3405, 4
        %v3444 = vadd.f32 %v3405, %v3443
        %v3445 = vrot.slane %v3444, 2
        %v3446 = vadd.f32 %v3444, %v3445
        %v3447 = vrot.slane %v3446, 1
        %v3448 = vadd.f32 %v3446, %v3447
        %v3449 = vadd.f32 %v3442, %v3448
        %v3450 = vpack.c.bf16 %v3342, %v3340
        %v3451 = vpack.c.bf16 %v3346, %v3344
        %v3452 = vpack.c.bf16 %v3350, %v3348
        %v3453 = vpack.c.bf16 %v3354, %v3352
        %v3454 = vpack.c.bf16 %v3358, %v3356
        %v3455 = vpack.c.bf16 %v3362, %v3360
        %v3456 = vpack.c.bf16 %v3366, %v3364
        %v3457 = vpack.c.bf16 %v3370, %v3368
        %v3458 = vpack.c.bf16 %v3374, %v3372
        %v3459 = vpack.c.bf16 %v3378, %v3376
        %v3460 = vpack.c.bf16 %v3382, %v3380
        %v3461 = vpack.c.bf16 %v3386, %v3384
        %v3462 = vpack.c.bf16 %v3390, %v3388
        %v3463 = vpack.c.bf16 %v3394, %v3392
        %v3464 = vpack.c.bf16 %v3398, %v3396
        %v3465 = vpack.c.bf16 %v3402, %v3400
        %s3466 = scalar_lea.vmem %s3, 48
        %v3467 = vld [vmem:[%s3466] sm:$0xf]
        %v3468 = vld [vmem:[%s3466 + $0x4] sm:$0xf]
        %v3469 = vld [vmem:[%s3466 + $0x8] sm:$0xf]
        %v3470 = vld [vmem:[%s3466 + $0xc] sm:$0xf]
        %v3471 = vpack.c.bf16 %v3405, %v3405
        %v3476 = vunpack.c.l.b16 %v3467
        %v3477 = vunpack.c.l.b16 %v3468
        %v3478 = vunpack.c.l.b16 %v3469
        %v3479 = vunpack.c.l.b16 %v3470
        %v3480 = vpack.c.b16 %v3477, %v3476
        %v3481 = vpack.c.b16 %v3479, %v3478
        %v3483 = vsel %vm1494, %v3480, 0
        %v3486 = vsel %vm1494, %v3481, 0
        %v3489 = vsel %vm1501, %v3471, 0
        %3491 = vmatprep.subr.bf16.mxu0 0
        %3492 = vmatpush1.bf16.msra.mxu0 %v3489
        %3493 = vmatprep.subr.bf16.mxu0 0
        %3494 = vmatpush1.bf16.msra.mxu0 0
        %3495 = vmatprep.subr.bf16.mxu0 0
        %3496 = vmatpush1.bf16.msra.mxu0 0
        %3497 = vmatprep.subr.bf16.mxu0 0
        %3498 = vmatpush1.bf16.msra.mxu0 0
        %3499 = vmatprep.subr.bf16.mxu0 0
        %3500 = vmatpush1.bf16.msra.mxu0 0
        %3501 = vmatprep.subr.bf16.mxu0 0
        %3502 = vmatpush1.bf16.msra.mxu0 0
        %3503 = vmatprep.subr.bf16.mxu0 0
        %3504 = vmatpush1.bf16.msra.mxu0 0
        %3505 = vmatprep.subr.bf16.mxu0 0
        %3506 = vmatpush1.bf16.msra.mxu0 0
        %3507 = vmatprep.subr.bf16.mxu0 0
        %3508 = vmatpush1.bf16.msra.mxu0 0
        %3509 = vmatprep.subr.bf16.mxu0 0
        %3510 = vmatpush1.bf16.msra.mxu0 0
        %3511 = vmatprep.subr.bf16.mxu0 0
        %3512 = vmatpush1.bf16.msra.mxu0 0
        %3513 = vmatprep.subr.bf16.mxu0 0
        %3514 = vmatpush1.bf16.msra.mxu0 0
        %3515 = vmatprep.subr.bf16.mxu0 0
        %3516 = vmatpush1.bf16.msra.mxu0 0
        %3517 = vmatprep.subr.bf16.mxu0 0
        %3518 = vmatpush1.bf16.msra.mxu0 0
        %3519 = vmatprep.subr.bf16.mxu0 0
        %3520 = vmatpush1.bf16.msra.mxu0 0
        %3521 = vmatprep.subr.bf16.mxu0 0
        %3522 = vmatpush1.bf16.msra.mxu0 0
        %3523 = vmatprep.mubr.bf16.mxu0 0
        %3524 = vmatmul.mubr.bf16.gmra.mrb[0].mxu0 %v3483
        %v3525 = vpop.f32.mrb[0].mxu0
        %v3526 = vadd.f32 0.0, %v3525
        %v3527 = vpop.f32.mrb[0].mxu0
        %v3528 = vpop.f32.mrb[0].mxu0
        %v3529 = vadd.f32 0.0, %v3528
        %v3530 = vpop.f32.mrb[0].mxu0
        %3531 = vmatprep.mubr.bf16.mxu0 0
        %3532 = vmatmul.mubr.bf16.gmra.mrb[0].mxu0 %v3486
        %v3533 = vpop.f32.mrb[0].mxu0
        %v3534 = vadd.f32 0.0, %v3533
        %v3535 = vpop.f32.mrb[0].mxu0
        %v3536 = vpop.f32.mrb[0].mxu0
        %v3537 = vadd.f32 0.0, %v3536
        %v3538 = vpop.f32.mrb[0].mxu0
        %3539 = vdwg.mxu0
        %3540 = vmatprep.subr.bf16.mxu0 0
        %3541 = vmatpush1.bf16.msra.mxu0 %v3450
        %3542 = vmatprep.subr.bf16.mxu0 0
        %3543 = vmatpush1.bf16.msra.mxu0 %v3451
        %3544 = vmatprep.subr.bf16.mxu0 0
        %3545 = vmatpush1.bf16.msra.mxu0 %v3452
        %3546 = vmatprep.subr.bf16.mxu0 0
        %3547 = vmatpush1.bf16.msra.mxu0 %v3453
        %3548 = vmatprep.subr.bf16.mxu0 0
        %3549 = vmatpush1.bf16.msra.mxu0 %v3454
        %3550 = vmatprep.subr.bf16.mxu0 0
        %3551 = vmatpush1.bf16.msra.mxu0 %v3455
        %3552 = vmatprep.subr.bf16.mxu0 0
        %3553 = vmatpush1.bf16.msra.mxu0 %v3456
        %3554 = vmatprep.subr.bf16.mxu0 0
        %3555 = vmatpush1.bf16.msra.mxu0 %v3457
        %3556 = vmatprep.subr.bf16.mxu0 0
        %3557 = vmatpush1.bf16.msra.mxu0 %v3458
        %3558 = vmatprep.subr.bf16.mxu0 0
        %3559 = vmatpush1.bf16.msra.mxu0 %v3459
        %3560 = vmatprep.subr.bf16.mxu0 0
        %3561 = vmatpush1.bf16.msra.mxu0 %v3460
        %3562 = vmatprep.subr.bf16.mxu0 0
        %3563 = vmatpush1.bf16.msra.mxu0 %v3461
        %3564 = vmatprep.subr.bf16.mxu0 0
        %3565 = vmatpush1.bf16.msra.mxu0 %v3462
        %3566 = vmatprep.subr.bf16.mxu0 0
        %3567 = vmatpush1.bf16.msra.mxu0 %v3463
        %3568 = vmatprep.subr.bf16.mxu0 0
        %3569 = vmatpush1.bf16.msra.mxu0 %v3464
        %3570 = vmatprep.subr.bf16.mxu0 0
        %3571 = vmatpush1.bf16.msra.mxu0 %v3465
        %3572 = vmatprep.mubr.bf16.mxu0 %v2943
        %3573 = vmatmul.mubr.bf16.gmra.mrb[0].mxu0 %v2942
        %v3574 = vpop.f32.mrb[0].mxu0
        %v3575 = vadd.f32 %v3526, %v3574
        %v3576 = vpop.f32.mrb[0].mxu0
        %v3577 = vpop.f32.mrb[0].mxu0
        %v3578 = vadd.f32 %v3529, %v3577
        %v3579 = vpop.f32.mrb[0].mxu0
        %3580 = vmatprep.mubr.bf16.mxu0 %v2945
        %3581 = vmatmul.mubr.bf16.gmra.mrb[0].mxu0 %v2944
        %v3582 = vpop.f32.mrb[0].mxu0
        %v3583 = vadd.f32 %v3534, %v3582
        %v3584 = vpop.f32.mrb[0].mxu0
        %v3585 = vpop.f32.mrb[0].mxu0
        %v3586 = vadd.f32 %v3537, %v3585
        %v3587 = vpop.f32.mrb[0].mxu0
        %3588 = vdwg.mxu0
        %v3589 = vrcp.pop %v3449
        %v3590 = vmul.f32 %v3575, %v3589
        %v3591 = vmul.f32 %v3578, %v3589
        %v3592 = vmul.f32 %v3583, %v3589
        %v3593 = vmul.f32 %v3586, %v3589
        %v3594 = vpack.c.bf16 %v3591, %v3590
        %v3595 = vpack.c.bf16 %v3593, %v3592
        %3596 = vst [vmem:[#allocation3 + $0x30] sm:$0xff] %v3594
        %3597 = vst [vmem:[#allocation3 + $0x38] sm:$0xff] %v3595
        %v3598 = vld [vmem:[%s5] sm:$0xf]
        %v3599 = vld [vmem:[%s5 + $0x4] sm:$0xf]
        %v3600 = vld [vmem:[#allocation3] sm:$0xff]
        %v3601 = vld [vmem:[#allocation3 + $0x8] sm:$0xff]
        %v3602 = vld [vmem:[#allocation3 + $0x10] sm:$0xff]
        %v3603 = vld [vmem:[#allocation3 + $0x18] sm:$0xff]
        %v3604 = vld [vmem:[#allocation3 + $0x20] sm:$0xff]
        %v3605 = vld [vmem:[#allocation3 + $0x28] sm:$0xff]
        %v3606 = vld [vmem:[#allocation3 + $0x30] sm:$0xff]
        %v3607 = vld [vmem:[#allocation3 + $0x38] sm:$0xff]
        %v3608 = vld [vmem:[%s6] sm:$0xff]
        %v3609 = vld [vmem:[%s6 + $0x8] sm:$0xff]
        %3611 = vset.pattern.permute.xlu0 0
        %3612 = vperm.xlu0 %3611, %v3608
        %v3613 = vpop.permute.xlu0 %3612
        %3616 = vset.pattern.permute.xlu0 0
        %3617 = vperm.xlu0 %3616, %v3609
        %v3618 = vpop.permute.xlu0 %3617
        %v3622 = vunpack.c.l.b16 %v3598
        %v3623 = vunpack.c.l.b16 %v3599
        %v3624 = vpack.c.b16 %v3623, %v3622
        %3626 = vmatprep.subr.bf16.mxu0 0
        %3627 = vmatpush1.bf16.msra.mxu0 %v3600
        %3628 = vmatprep.subr.bf16.mxu0 0
        %3629 = vmatpush1.bf16.msra.mxu0 %v3601
        %3630 = vmatprep.subr.bf16.mxu0 0
        %3631 = vmatpush1.bf16.msra.mxu0 %v3602
        %3632 = vmatprep.subr.bf16.mxu0 0
        %3633 = vmatpush1.bf16.msra.mxu0 %v3603
        %3634 = vmatprep.subr.bf16.mxu0 0
        %3635 = vmatpush1.bf16.msra.mxu0 %v3604
        %3636 = vmatprep.subr.bf16.mxu0 0
        %3637 = vmatpush1.bf16.msra.mxu0 %v3605
        %3638 = vmatprep.subr.bf16.mxu0 0
        %3639 = vmatpush1.bf16.msra.mxu0 %v3606
        %3640 = vmatprep.subr.bf16.mxu0 0
        %3641 = vmatpush1.bf16.msra.mxu0 %v3607
        %3642 = vmatprep.subr.bf16.mxu0 0
        %3643 = vmatpush1.bf16.msra.mxu0 0
        %3644 = vmatprep.subr.bf16.mxu0 0
        %3645 = vmatpush1.bf16.msra.mxu0 0
        %3646 = vmatprep.subr.bf16.mxu0 0
        %3647 = vmatpush1.bf16.msra.mxu0 0
        %3648 = vmatprep.subr.bf16.mxu0 0
        %3649 = vmatpush1.bf16.msra.mxu0 0
        %3650 = vmatprep.subr.bf16.mxu0 0
        %3651 = vmatpush1.bf16.msra.mxu0 0
        %3652 = vmatprep.subr.bf16.mxu0 0
        %3653 = vmatpush1.bf16.msra.mxu0 0
        %3654 = vmatprep.subr.bf16.mxu0 0
        %3655 = vmatpush1.bf16.msra.mxu0 0
        %3656 = vmatprep.subr.bf16.mxu0 0
        %3657 = vmatpush1.bf16.msra.mxu0 0
        %3658 = vmatprep.mubr.bf16.mxu0 0
        %3659 = vmatmul.mubr.bf16.gmra.mrb[0].mxu0 %v3624
        %v3660 = vpop.f32.mrb[0].mxu0
        %v3661 = vadd.f32 %v3613, %v3660
        %v3662 = vpop.f32.mrb[0].mxu0
        %v3663 = vpop.f32.mrb[0].mxu0
        %v3664 = vadd.f32 %v3618, %v3663
        %v3665 = vpop.f32.mrb[0].mxu0
        %3666 = vdwg.mxu0
        %3667 = vst [vmem:[%s285] sm:$0xff] %v3661
        %3668 = vst [vmem:[%s285 + $0x8] sm:$0xff] %v3664
        %s3669 = sand.u32 %s195, 1
        %s3670 = scalar_lea.sflag [#allocation5], %s3669
        %s3671 = sand.u32 %s195, 1
        %s3672 = smul.addr %s3671, 16
        %s3673 = scalar_lea.vmem [#allocation4], %s3672
        // Predicated region
        $region53: #{tpu_custom_call.1} parent=47 // pred_check
          %p3674 = pneg %p205
        $region54: #{tpu_custom_call.1} parent=47 // pred_check_branch
          %3676 = sbr.rel (%p3674) target = $region56
        $region55: #{tpu_custom_call.1} parent=47 // pred_region
          %s3678 = ssub.s32 256, 256
          %3679 = vsyncadd %s3670, %s3678
          %s3680 = smul.addr %s25, 4
          %s3681 = sadd.s32 %s26, %s3680
          %s3682 = smul.addr %s3681, 128
          %s3683 = scalar_lea.hbm %s7, %s3682
          %s3684 = sshll.u32 %s3673, 4
          %s3685 = int_to_ptr.vmem [resolvable:$true] %s3684
          %3690 = dma.vmem_to_hbm [thread:$0]  %s3685, 256, %s3683, %s3670, 128, 256, 8
        $region56: #{tpu_custom_call.1} parent=47 // pred_fallthru
          _
      $region48: #{tpu_custom_call.1} parent=5 // pred_fallthru
        _
      %p3691 = scmp.le.s32.totalorder 2, %s16
      // Predicated region
      $region57: #{tpu_custom_call.1} parent=5 // pred_check
        %p3692 = pneg %p3691
      $region58: #{tpu_custom_call.1} parent=5 // pred_check_branch
        %3694 = sbr.rel (%p3692) target = $region60
      $region59: #{tpu_custom_call.1} parent=5 // pred_region
        %s3695 = ssub.s32 %s16, 2
        // Predicated region
        $region61: #{tpu_custom_call.1} parent=59 // pred_check
          %p3696 = pneg %p211
        $region62: #{tpu_custom_call.1} parent=59 // pred_check_branch
          %3698 = sbr.rel (%p3696) target = $region64
        $region63: #{tpu_custom_call.1} parent=59 // pred_region
          %s3699 = sand.u32 %s196, 1
          %s3700 = scalar_lea.sflag [#allocation5], %s3699
          %s3701 = sand.u32 %s196, 1
          %s3702 = smul.addr %s3701, 16
          %s3703 = scalar_lea.vmem [#allocation4], %s3702
          %3704 = dma.done %s3700, 256
        $region64: #{tpu_custom_call.1} parent=59 // pred_fallthru
          _
      $region60: #{tpu_custom_call.1} parent=5 // pred_fallthru
        _
    $region6: #{tpu_custom_call.1} parent=1 // loop_footer
      %s20 = sadd.s32 1, %s16
    $region7: #{tpu_custom_call.1} parent=1 // loop_footer_branch
      %15 = sbr.rel target = $region3
    $region8: #{tpu_custom_call.1} parent=1 // loop_exit
      _
    %3705 = vsyncpa [#allocation5], 1
    %s3706 = scalar_lea.sflag [#allocation5], 1
    %3707 = vsyncpa %s3706, 1

</llo_original>
